<compile_context>
chip_gen: v5e
topology: v5e:2x2
jax: 0.10.0
libtpu: 0.0.40
codegen_flags: <defaults>
</compile_context>

<pallas_src>
import jax
import jax.numpy as jnp
from jax.experimental import pallas as pl
from jax.experimental.pallas import tpu as pltpu

HP = 128          # per-gate padded hidden width = one full vreg lane group
GW = 4 * HP       # total gate width (i, f, g, o) - lane-aligned 128-wide blocks
F1, F2 = 64, 32   # fc head widths fixed by the module: 4H -> 64 -> 32 -> n_labels
# bias-slab row indices: rows 0..3 = LSTM layer biases, 4..6 = fc biases
B_FC1, B_FC2, B_FC3 = 4, 5, 6


def _round_up(x, m):
    return (x + m - 1) // m * m


# ------------------------------ slab layout -----------------------------------

def build_layout(dim_rain, dim_geo, dim_hidden):
    """Row layout of the packed bf16 weight slab (all row offsets 16-aligned)."""
    assert dim_hidden <= HP
    HS = _round_up(dim_hidden, 16)   # contraction rows for h / layer sequences
    DR = _round_up(dim_rain, 16)
    DG = _round_up(dim_geo, 16)
    layout = {"HS": HS, "DR": DR, "DG": DG}
    r = 0

    def add(name, rows):
        nonlocal r
        layout[name] = r
        r += rows

    add("wr0", DR)                       # layer-0 rain projection
    add("wg0", DG)                       # layer-0 geo projection
    add("whh0", HS)
    for l in (1, 2, 3):
        add(f"wih{l}", HS)
        add(f"whh{l}", HS)
    for l in range(4):
        add(f"w1_{l}", HS)               # fc1 split into per-layer blocks
    add("w2", HP)
    add("w3", HP)
    layout["total_rows"] = _round_up(r, 16)
    return layout


# --------------------------------- kernel -------------------------------------

def make_rnn_kernel(T, B, layout):
    HS = layout["HS"]

    def kernel(x_ref, geo_ref, w_ref, b_ref, out_ref, seq_ref):
        def mm(a, w):
            # bf16 MXU matmul with f32 accumulation.
            return jnp.dot(a.astype(jnp.bfloat16), w,
                           preferred_element_type=jnp.float32)

        def sigm(x):
            # logistic via a single EUP tanh (instead of exp + reciprocal).
            return 0.5 * jnp.tanh(0.5 * x) + 0.5

        def wblk(name, rows, cols=GW):
            r0 = layout[name]
            return w_ref[r0:r0 + rows, 0:cols]

        def brow(i, cols=GW):
            return b_ref[i:i + 1, 0:cols]

        def run_layer(x_proj, whh, write_seq):
            """x_proj: (T*B, GW) pre-projected input (all biases folded in).
            Only the HS-row h @ W_hh matmul stays on the serialized path."""
            c = jnp.zeros((B, HS), jnp.float32)
            hb = jnp.zeros((B, HS), jnp.bfloat16)
            for t in range(T):                        # fully unrolled, T static
                gates = x_proj[t * B:(t + 1) * B, :] + mm(hb, whh)
                # gate slices start at 128-aligned lane offsets -> no lane moves
                i_g = sigm(gates[:, 0 * HP:0 * HP + HS])
                f_g = sigm(gates[:, 1 * HP:1 * HP + HS])
                g_g = jnp.tanh(gates[:, 2 * HP:2 * HP + HS])
                o_g = sigm(gates[:, 3 * HP:3 * HP + HS])
                c = f_g * c + i_g * g_g
                hb = (o_g * jnp.tanh(c)).astype(jnp.bfloat16)
                if write_seq:
                    seq_ref[t * B:(t + 1) * B, :] = hb
            return hb

        # ---- layer 0: hoisted rain projection; geo proj + bias folded pre-loop ----
        xp = mm(x_ref[...], wblk("wr0", layout["DR"]))                 # (T*B, GW)
        geo_b = mm(geo_ref[...], wblk("wg0", layout["DG"])) + brow(0)  # (B, GW)
        xp = xp + jnp.concatenate([geo_b] * T, axis=0)                 # bcast over T
        hb = run_layer(xp, wblk("whh0", HS), True)
        # fc1 partial product accumulated as each layer finishes (no flat scratch).
        z1 = brow(B_FC1, HP) + mm(hb, wblk("w1_0", HS, HP))            # (B, HP)

        # ---- layers 1..3 (last layer skips the sequence writeback) ----------------
        for l in (1, 2, 3):
            xp = mm(seq_ref[...], wblk(f"wih{l}", HS)) + brow(l)       # (T*B, GW)
            hb = run_layer(xp, wblk(f"whh{l}", HS), l < 3)
            z1 = z1 + mm(hb, wblk(f"w1_{l}", HS, HP))

        # ---- MLP head: ReLU -> Linear -> ReLU -> Linear -> Softmax ----------------
        z1 = jnp.maximum(z1, 0.0)
        z2 = jnp.maximum(mm(z1, wblk("w2", HP, HP)) + brow(B_FC2, HP), 0.0)
        logits = mm(z2, wblk("w3", HP, HP)) + brow(B_FC3, HP)          # dead lanes -1e30
        logits = logits - jnp.max(logits, axis=1, keepdims=True)
        e = jnp.exp(logits)                                            # dead lanes -> 0
        out_ref[...] = e / jnp.sum(e, axis=1, keepdims=True)           # exact softmax

    return kernel


def make_rnn_forward(dim_rain, dim_geo, n_labels, T, B, layout):
    kernel = make_rnn_kernel(T, B, layout)
    HS, DR, DG = layout["HS"], layout["DR"], layout["DG"]

    @jax.jit
    def forward(rain, geodata, w_slab, b_slab):
        # Time-major, flattened to (T*B, DR): row index = t*B + b.
        x2d = jnp.transpose(rain, (1, 0, 2)).reshape(T * B, dim_rain)
        x2d = jnp.pad(x2d.astype(jnp.float32), ((0, 0), (0, DR - dim_rain)))
        geo = jnp.pad(geodata.astype(jnp.float32), ((0, 0), (0, DG - dim_geo)))
        out_pad = pl.pallas_call(
            kernel,
            out_shape=jax.ShapeDtypeStruct((B, HP), jnp.float32),
            in_specs=[pl.BlockSpec(memory_space=pltpu.MemorySpace.VMEM)] * 4,
            out_specs=pl.BlockSpec(memory_space=pltpu.MemorySpace.VMEM),
            scratch_shapes=[pltpu.VMEM((T * B, HS), jnp.bfloat16)],  # layer sequence
        )(x2d, geo, w_slab, b_slab)
        # Lane-dense (B, 128) kernel output; real labels are the first n_labels cols.
        return out_pad[:, :n_labels]

    return forward


# --------------------------- parameter construction ---------------------------

def init_params(key, dim_rain, dim_geo, dim_hidden, n_labels):
    """Deterministic synthetic parameters in PyTorch layout."""
    D_in = dim_rain + dim_geo
    H = dim_hidden
    keys = iter(jax.random.split(key, 32))

    def u(k, shape, fan_in):
        bound = 1.0 / jnp.sqrt(jnp.float32(fan_in))
        return jax.random.uniform(k, shape, jnp.float32, -bound, bound)

    lstm = []
    for layer in range(4):
        d_l = D_in if layer == 0 else H
        lstm.append(dict(w_ih=u(next(keys), (4 * H, d_l), H),     # torch (4H, D)
                         w_hh=u(next(keys), (4 * H, H), H),       # torch (4H, H)
                         b_ih=u(next(keys), (4 * H,), H),
                         b_hh=u(next(keys), (4 * H,), H)))
    fc = []
    for fin, fout in [(4 * H, F1), (F1, F2), (F2, n_labels)]:
        fc.append(dict(w=u(next(keys), (fout, fin), fin),         # torch (out, in)
                       b=u(next(keys), (fout,), fin)))
    return dict(lstm=lstm, fc=fc)


def prepare_params(params, dim_rain, dim_geo, dim_hidden, n_labels, layout):
    """Pack everything into one bf16 weight slab + one f32 bias slab.
    Gate/feature blocks are widened to 128 lanes; padded weight/bias columns are
    exactly 0 so padded h/c lanes stay 0 through every step."""
    H = dim_hidden
    assert H <= HP and n_labels <= HP

    def pad_gates(w):  # (rows, 4H) -> (rows, GW): each gate block widened to HP lanes
        out = jnp.zeros((w.shape[0], GW), jnp.float32)
        for g in range(4):
            out = out.at[:, g * HP:g * HP + H].set(w[:, g * H:(g + 1) * H])
        return out

    w_slab = jnp.zeros((layout["total_rows"], GW), jnp.float32)
    b_slab = jnp.zeros((8, GW), jnp.float32)

    for l, p in enumerate(params["lstm"]):
        w_ih_t = p["w_ih"].T                           # (D_l, 4H)
        w_hh_t = p["w_hh"].T                           # (H, 4H)
        bias = (p["b_ih"] + p["b_hh"]).reshape(1, 4 * H)
        if l == 0:
            r = layout["wr0"]
            w_slab = w_slab.at[r:r + dim_rain, :].set(pad_gates(w_ih_t[:dim_rain]))
            r = layout["wg0"]
            w_slab = w_slab.at[r:r + dim_geo, :].set(pad_gates(w_ih_t[dim_rain:]))
        else:
            r = layout[f"wih{l}"]
            w_slab = w_slab.at[r:r + H, :].set(pad_gates(w_ih_t))
        r = layout[f"whh{l}"]
        w_slab = w_slab.at[r:r + H, :].set(pad_gates(w_hh_t))
        b_slab = b_slab.at[l:l + 1, :].set(pad_gates(bias))

    # fc1: split into per-layer 32-row blocks (contraction with each final h_l)
    w1_t = params["fc"][0]["w"].T                       # (4H, F1)
    for l in range(4):
        r = layout[f"w1_{l}"]
        w_slab = w_slab.at[r:r + H, :F1].set(w1_t[l * H:(l + 1) * H, :])
    b_slab = b_slab.at[B_FC1, :F1].set(params["fc"][0]["b"])
    # fc2
    w2_t = params["fc"][1]["w"].T                       # (F1, F2)
    r = layout["w2"]
    w_slab = w_slab.at[r:r + F1, :F2].set(w2_t)
    b_slab = b_slab.at[B_FC2, :F2].set(params["fc"][1]["b"])
    # fc3 (dead logit lanes get -1e30 so exp() is exactly 0)
    w3_t = params["fc"][2]["w"].T                       # (F2, n_labels)
    r = layout["w3"]
    w_slab = w_slab.at[r:r + F2, :n_labels].set(w3_t)
    b_slab = b_slab.at[B_FC3, :n_labels].set(params["fc"][2]["b"])
    b_slab = b_slab.at[B_FC3, n_labels:HP].set(-1e30)

    return w_slab.astype(jnp.bfloat16), b_slab


# ------------------------------ plain-JAX reference ----------------------------

def rnn_reference(rain, geodata, params, n_labels):
    """Reference forward mirroring the kernel's bf16-matmul / f32-accumulate precision."""
    bf16 = jnp.bfloat16

    def mm(a, w):
        return jnp.dot(a.astype(bf16), w.astype(bf16),
                       preferred_element_type=jnp.float32)

    B, T, _ = rain.shape
    H = params["lstm"][0]["w_hh"].shape[1]
    geo_rep = jnp.repeat(geodata[:, None, :], T, axis=1)
    seq = jnp.concatenate([rain, geo_rep], axis=2).astype(jnp.float32)
    finals = []
    for p in params["lstm"]:
        w_ih_t, w_hh_t = p["w_ih"].T, p["w_hh"].T
        b = (p["b_ih"] + p["b_hh"])[None, :]
        h = jnp.zeros((B, H), jnp.float32)
        c = jnp.zeros((B, H), jnp.float32)
        outs = []
        for t in range(T):
            gates = mm(seq[:, t, :], w_ih_t) + b + mm(h, w_hh_t)
            i = jax.nn.sigmoid(gates[:, 0:H])
            f = jax.nn.sigmoid(gates[:, H:2 * H])
            g = jnp.tanh(gates[:, 2 * H:3 * H])
            o = jax.nn.sigmoid(gates[:, 3 * H:4 * H])
            c = f * c + i * g
            h = o * jnp.tanh(c)
            outs.append(h)
        seq = jnp.stack(outs, axis=1)
        finals.append(h)
    flat = jnp.concatenate(finals, axis=1)
    z1 = jax.nn.relu(mm(flat, params["fc"][0]["w"].T) + params["fc"][0]["b"])
    z2 = jax.nn.relu(mm(z1, params["fc"][1]["w"].T) + params["fc"][1]["b"])
    logits = mm(z2, params["fc"][2]["w"].T) + params["fc"][2]["b"]
    return jax.nn.softmax(logits, axis=1)


# ----------------------------------- main --------------------------------------

if __name__ == "__main__":
    B, T = 2, 8
    dim_rain, dim_geo, dim_hidden, n_labels = 4, 4, 32, 5

    key = jax.random.PRNGKey(0)
    k_rain, k_geo, k_params = jax.random.split(key, 3)
    rain = jax.random.normal(k_rain, (B, T, dim_rain), jnp.float32)
    geodata = jax.random.normal(k_geo, (B, dim_geo), jnp.float32)

    torch_params = init_params(k_params, dim_rain, dim_geo, dim_hidden, n_labels)
    layout = build_layout(dim_rain, dim_geo, dim_hidden)
    w_slab, b_slab = prepare_params(torch_params, dim_rain, dim_geo,
                                    dim_hidden, n_labels, layout)

    forward = make_rnn_forward(dim_rain, dim_geo, n_labels, T, B, layout)
    out = jax.block_until_ready(forward(rain, geodata, w_slab, b_slab))

    assert out.shape == (B, n_labels)
    assert bool(jnp.all(jnp.isfinite(out)))
    # exact softmax division -> rows sum to 1 up to f32 rounding
    assert bool(jnp.allclose(jnp.sum(out, axis=1), 1.0, atol=1e-4))
    # validate against a plain-JAX reference built from the unpacked PyTorch params
    ref = rnn_reference(rain, geodata, torch_params, n_labels)
    assert bool(jnp.allclose(out, ref, atol=5e-3))

    print("KERNEL_OK")
</pallas_src>

<mosaic_0001>
module attributes {stable_mosaic.version = 11 : i64} {
  func.func @kernel(%arg0: memref<16x16xf32, #tpu.memory_space<vmem>>, %arg1: memref<2x16xf32, #tpu.memory_space<vmem>>, %arg2: memref<640x512xbf16, #tpu.memory_space<vmem>>, %arg3: memref<8x512xf32, #tpu.memory_space<vmem>>, %arg4: memref<2x128xf32, #tpu.memory_space<vmem>>, %arg5: memref<16x32xbf16, #tpu.memory_space<vmem>>) attributes {dimension_semantics = [], scalar_prefetch = 0 : i64, scratch_operands = 1 : i64, tpu.core_type = #tpu.core_type<tc>} {
    %c0 = arith.constant 0 : index
    %c0_0 = arith.constant 0 : index
    %0 = vector.load %arg0[%c0, %c0_0] : memref<16x16xf32, #tpu.memory_space<vmem>>, vector<16x16xf32>
    %c0_1 = arith.constant 0 : index
    %c0_2 = arith.constant 0 : index
    %1 = vector.load %arg2[%c0_1, %c0_2] : memref<640x512xbf16, #tpu.memory_space<vmem>>, vector<16x512xbf16>
    %2 = arith.truncf %0 : vector<16x16xf32> to vector<16x16xbf16>
    %cst = arith.constant dense<0.000000e+00> : vector<16x512xf32>
    %3 = tpu.matmul %2, %1, %cst {dimension_numbers = #tpu.dot_dimension_numbers<[1], [0], [0], [1], [0, 0, 1, 1], [], []>} : vector<16x16xbf16>, vector<16x512xbf16>, vector<16x512xf32> -> vector<16x512xf32>
    %c0_3 = arith.constant 0 : index
    %c0_4 = arith.constant 0 : index
    %4 = vector.load %arg1[%c0_3, %c0_4] : memref<2x16xf32, #tpu.memory_space<vmem>>, vector<2x16xf32>
    %c16 = arith.constant 16 : index
    %c0_5 = arith.constant 0 : index
    %5 = vector.load %arg2[%c16, %c0_5] : memref<640x512xbf16, #tpu.memory_space<vmem>>, vector<16x512xbf16>
    %6 = arith.truncf %4 : vector<2x16xf32> to vector<2x16xbf16>
    %cst_6 = arith.constant dense<0.000000e+00> : vector<2x512xf32>
    %7 = tpu.matmul %6, %5, %cst_6 {dimension_numbers = #tpu.dot_dimension_numbers<[1], [0], [0], [1], [0, 0, 1, 1], [], []>} : vector<2x16xbf16>, vector<16x512xbf16>, vector<2x512xf32> -> vector<2x512xf32>
    %c0_7 = arith.constant 0 : index
    %c0_8 = arith.constant 0 : index
    %8 = vector.load %arg3[%c0_7, %c0_8] : memref<8x512xf32, #tpu.memory_space<vmem>>, vector<1x512xf32>
    %9 = vector.broadcast %8 : vector<1x512xf32> to vector<2x512xf32>
    %10 = arith.addf %7, %9 : vector<2x512xf32>
    %11 = tpu.concatenate %10, %10, %10, %10, %10, %10, %10, %10 in 0 : vector<2x512xf32>, vector<2x512xf32>, vector<2x512xf32>, vector<2x512xf32>, vector<2x512xf32>, vector<2x512xf32>, vector<2x512xf32>, vector<2x512xf32> -> vector<16x512xf32>
    %12 = arith.addf %3, %11 : vector<16x512xf32>
    %c32 = arith.constant 32 : index
    %c0_9 = arith.constant 0 : index
    %13 = vector.load %arg2[%c32, %c0_9] : memref<640x512xbf16, #tpu.memory_space<vmem>>, vector<32x512xbf16>
    %cst_10 = arith.constant 0.000000e+00 : f32
    %14 = vector.broadcast %cst_10 : f32 to vector<2x32xf32>
    %cst_11 = arith.constant 0.000000e+00 : bf16
    %15 = vector.broadcast %cst_11 : bf16 to vector<2x32xbf16>
    %16 = vector.extract_strided_slice %12 {offsets = [0, 0], sizes = [2, 512], strides = [1, 1]} : vector<16x512xf32> to vector<2x512xf32>
    %cst_12 = arith.constant dense<0.000000e+00> : vector<2x512xf32>
    %17 = tpu.matmul %15, %13, %cst_12 {dimension_numbers = #tpu.dot_dimension_numbers<[1], [0], [0], [1], [0, 0, 1, 1], [], []>} : vector<2x32xbf16>, vector<32x512xbf16>, vector<2x512xf32> -> vector<2x512xf32>
    %18 = arith.addf %16, %17 : vector<2x512xf32>
    %19 = vector.extract_strided_slice %18 {offsets = [0, 0], sizes = [2, 32], strides = [1, 1]} : vector<2x512xf32> to vector<2x32xf32>
    %cst_13 = arith.constant 5.000000e-01 : f32
    %20 = vector.broadcast %cst_13 : f32 to vector<2x32xf32>
    %21 = arith.mulf %20, %19 : vector<2x32xf32>
    %22 = math.tanh %21 : vector<2x32xf32>
    %cst_14 = arith.constant 5.000000e-01 : f32
    %23 = vector.broadcast %cst_14 : f32 to vector<2x32xf32>
    %24 = arith.mulf %23, %22 : vector<2x32xf32>
    %cst_15 = arith.constant 5.000000e-01 : f32
    %25 = vector.broadcast %cst_15 : f32 to vector<2x32xf32>
    %26 = arith.addf %24, %25 : vector<2x32xf32>
    %27 = vector.extract_strided_slice %18 {offsets = [0, 128], sizes = [2, 32], strides = [1, 1]} : vector<2x512xf32> to vector<2x32xf32>
    %cst_16 = arith.constant 5.000000e-01 : f32
    %28 = vector.broadcast %cst_16 : f32 to vector<2x32xf32>
    %29 = arith.mulf %28, %27 : vector<2x32xf32>
    %30 = math.tanh %29 : vector<2x32xf32>
    %cst_17 = arith.constant 5.000000e-01 : f32
    %31 = vector.broadcast %cst_17 : f32 to vector<2x32xf32>
    %32 = arith.mulf %31, %30 : vector<2x32xf32>
    %cst_18 = arith.constant 5.000000e-01 : f32
    %33 = vector.broadcast %cst_18 : f32 to vector<2x32xf32>
    %34 = arith.addf %32, %33 : vector<2x32xf32>
    %35 = vector.extract_strided_slice %18 {offsets = [0, 256], sizes = [2, 32], strides = [1, 1]} : vector<2x512xf32> to vector<2x32xf32>
    %36 = math.tanh %35 : vector<2x32xf32>
    %37 = vector.extract_strided_slice %18 {offsets = [0, 384], sizes = [2, 32], strides = [1, 1]} : vector<2x512xf32> to vector<2x32xf32>
    %cst_19 = arith.constant 5.000000e-01 : f32
    %38 = vector.broadcast %cst_19 : f32 to vector<2x32xf32>
    %39 = arith.mulf %38, %37 : vector<2x32xf32>
    %40 = math.tanh %39 : vector<2x32xf32>
    %cst_20 = arith.constant 5.000000e-01 : f32
    %41 = vector.broadcast %cst_20 : f32 to vector<2x32xf32>
    %42 = arith.mulf %41, %40 : vector<2x32xf32>
    %cst_21 = arith.constant 5.000000e-01 : f32
    %43 = vector.broadcast %cst_21 : f32 to vector<2x32xf32>
    %44 = arith.addf %42, %43 : vector<2x32xf32>
    %45 = arith.mulf %34, %14 : vector<2x32xf32>
    %46 = arith.mulf %26, %36 : vector<2x32xf32>
    %47 = arith.addf %45, %46 : vector<2x32xf32>
    %48 = math.tanh %47 : vector<2x32xf32>
    %49 = arith.mulf %44, %48 : vector<2x32xf32>
    %50 = arith.truncf %49 : vector<2x32xf32> to vector<2x32xbf16>
    %c0_22 = arith.constant 0 : index
    %c0_23 = arith.constant 0 : index
    %51 = vector.load %arg5[%c0_22, %c0_23] : memref<16x32xbf16, #tpu.memory_space<vmem>>, vector<2x32xbf16>
    tpu.vector_store %arg5[%c0_22, %c0_23], %50 {strides = array<i32>} : memref<16x32xbf16, #tpu.memory_space<vmem>>, vector<2x32xbf16>,
    %52 = vector.extract_strided_slice %12 {offsets = [2, 0], sizes = [2, 512], strides = [1, 1]} : vector<16x512xf32> to vector<2x512xf32>
    %cst_24 = arith.constant dense<0.000000e+00> : vector<2x512xf32>
    %53 = tpu.matmul %50, %13, %cst_24 {dimension_numbers = #tpu.dot_dimension_numbers<[1], [0], [0], [1], [0, 0, 1, 1], [], []>} : vector<2x32xbf16>, vector<32x512xbf16>, vector<2x512xf32> -> vector<2x512xf32>
    %54 = arith.addf %52, %53 : vector<2x512xf32>
    %55 = vector.extract_strided_slice %54 {offsets = [0, 0], sizes = [2, 32], strides = [1, 1]} : vector<2x512xf32> to vector<2x32xf32>
    %cst_25 = arith.constant 5.000000e-01 : f32
    %56 = vector.broadcast %cst_25 : f32 to vector<2x32xf32>
    %57 = arith.mulf %56, %55 : vector<2x32xf32>
    %58 = math.tanh %57 : vector<2x32xf32>
    %cst_26 = arith.constant 5.000000e-01 : f32
    %59 = vector.broadcast %cst_26 : f32 to vector<2x32xf32>
    %60 = arith.mulf %59, %58 : vector<2x32xf32>
    %cst_27 = arith.constant 5.000000e-01 : f32
    %61 = vector.broadcast %cst_27 : f32 to vector<2x32xf32>
    %62 = arith.addf %60, %61 : vector<2x32xf32>
    %63 = vector.extract_strided_slice %54 {offsets = [0, 128], sizes = [2, 32], strides = [1, 1]} : vector<2x512xf32> to vector<2x32xf32>
    %cst_28 = arith.constant 5.000000e-01 : f32
    %64 = vector.broadcast %cst_28 : f32 to vector<2x32xf32>
    %65 = arith.mulf %64, %63 : vector<2x32xf32>
    %66 = math.tanh %65 : vector<2x32xf32>
    %cst_29 = arith.constant 5.000000e-01 : f32
    %67 = vector.broadcast %cst_29 : f32 to vector<2x32xf32>
    %68 = arith.mulf %67, %66 : vector<2x32xf32>
    %cst_30 = arith.constant 5.000000e-01 : f32
    %69 = vector.broadcast %cst_30 : f32 to vector<2x32xf32>
    %70 = arith.addf %68, %69 : vector<2x32xf32>
    %71 = vector.extract_strided_slice %54 {offsets = [0, 256], sizes = [2, 32], strides = [1, 1]} : vector<2x512xf32> to vector<2x32xf32>
    %72 = math.tanh %71 : vector<2x32xf32>
    %73 = vector.extract_strided_slice %54 {offsets = [0, 384], sizes = [2, 32], strides = [1, 1]} : vector<2x512xf32> to vector<2x32xf32>
    %cst_31 = arith.constant 5.000000e-01 : f32
    %74 = vector.broadcast %cst_31 : f32 to vector<2x32xf32>
    %75 = arith.mulf %74, %73 : vector<2x32xf32>
    %76 = math.tanh %75 : vector<2x32xf32>
    %cst_32 = arith.constant 5.000000e-01 : f32
    %77 = vector.broadcast %cst_32 : f32 to vector<2x32xf32>
    %78 = arith.mulf %77, %76 : vector<2x32xf32>
    %cst_33 = arith.constant 5.000000e-01 : f32
    %79 = vector.broadcast %cst_33 : f32 to vector<2x32xf32>
    %80 = arith.addf %78, %79 : vector<2x32xf32>
    %81 = arith.mulf %70, %47 : vector<2x32xf32>
    %82 = arith.mulf %62, %72 : vector<2x32xf32>
    %83 = arith.addf %81, %82 : vector<2x32xf32>
    %84 = math.tanh %83 : vector<2x32xf32>
    %85 = arith.mulf %80, %84 : vector<2x32xf32>
    %86 = arith.truncf %85 : vector<2x32xf32> to vector<2x32xbf16>
    %c2 = arith.constant 2 : index
    %c0_34 = arith.constant 0 : index
    %87 = vector.load %arg5[%c2, %c0_34] : memref<16x32xbf16, #tpu.memory_space<vmem>>, vector<2x32xbf16>
    tpu.vector_store %arg5[%c2, %c0_34], %86 {strides = array<i32>} : memref<16x32xbf16, #tpu.memory_space<vmem>>, vector<2x32xbf16>,
    %88 = vector.extract_strided_slice %12 {offsets = [4, 0], sizes = [2, 512], strides = [1, 1]} : vector<16x512xf32> to vector<2x512xf32>
    %cst_35 = arith.constant dense<0.000000e+00> : vector<2x512xf32>
    %89 = tpu.matmul %86, %13, %cst_35 {dimension_numbers = #tpu.dot_dimension_numbers<[1], [0], [0], [1], [0, 0, 1, 1], [], []>} : vector<2x32xbf16>, vector<32x512xbf16>, vector<2x512xf32> -> vector<2x512xf32>
    %90 = arith.addf %88, %89 : vector<2x512xf32>
    %91 = vector.extract_strided_slice %90 {offsets = [0, 0], sizes = [2, 32], strides = [1, 1]} : vector<2x512xf32> to vector<2x32xf32>
    %cst_36 = arith.constant 5.000000e-01 : f32
    %92 = vector.broadcast %cst_36 : f32 to vector<2x32xf32>
    %93 = arith.mulf %92, %91 : vector<2x32xf32>
    %94 = math.tanh %93 : vector<2x32xf32>
    %cst_37 = arith.constant 5.000000e-01 : f32
    %95 = vector.broadcast %cst_37 : f32 to vector<2x32xf32>
    %96 = arith.mulf %95, %94 : vector<2x32xf32>
    %cst_38 = arith.constant 5.000000e-01 : f32
    %97 = vector.broadcast %cst_38 : f32 to vector<2x32xf32>
    %98 = arith.addf %96, %97 : vector<2x32xf32>
    %99 = vector.extract_strided_slice %90 {offsets = [0, 128], sizes = [2, 32], strides = [1, 1]} : vector<2x512xf32> to vector<2x32xf32>
    %cst_39 = arith.constant 5.000000e-01 : f32
    %100 = vector.broadcast %cst_39 : f32 to vector<2x32xf32>
    %101 = arith.mulf %100, %99 : vector<2x32xf32>
    %102 = math.tanh %101 : vector<2x32xf32>
    %cst_40 = arith.constant 5.000000e-01 : f32
    %103 = vector.broadcast %cst_40 : f32 to vector<2x32xf32>
    %104 = arith.mulf %103, %102 : vector<2x32xf32>
    %cst_41 = arith.constant 5.000000e-01 : f32
    %105 = vector.broadcast %cst_41 : f32 to vector<2x32xf32>
    %106 = arith.addf %104, %105 : vector<2x32xf32>
    %107 = vector.extract_strided_slice %90 {offsets = [0, 256], sizes = [2, 32], strides = [1, 1]} : vector<2x512xf32> to vector<2x32xf32>
    %108 = math.tanh %107 : vector<2x32xf32>
    %109 = vector.extract_strided_slice %90 {offsets = [0, 384], sizes = [2, 32], strides = [1, 1]} : vector<2x512xf32> to vector<2x32xf32>
    %cst_42 = arith.constant 5.000000e-01 : f32
    %110 = vector.broadcast %cst_42 : f32 to vector<2x32xf32>
    %111 = arith.mulf %110, %109 : vector<2x32xf32>
    %112 = math.tanh %111 : vector<2x32xf32>
    %cst_43 = arith.constant 5.000000e-01 : f32
    %113 = vector.broadcast %cst_43 : f32 to vector<2x32xf32>
    %114 = arith.mulf %113, %112 : vector<2x32xf32>
    %cst_44 = arith.constant 5.000000e-01 : f32
    %115 = vector.broadcast %cst_44 : f32 to vector<2x32xf32>
    %116 = arith.addf %114, %115 : vector<2x32xf32>
    %117 = arith.mulf %106, %83 : vector<2x32xf32>
    %118 = arith.mulf %98, %108 : vector<2x32xf32>
    %119 = arith.addf %117, %118 : vector<2x32xf32>
    %120 = math.tanh %119 : vector<2x32xf32>
    %121 = arith.mulf %116, %120 : vector<2x32xf32>
    %122 = arith.truncf %121 : vector<2x32xf32> to vector<2x32xbf16>
    %c4 = arith.constant 4 : index
    %c0_45 = arith.constant 0 : index
    %123 = vector.load %arg5[%c4, %c0_45] : memref<16x32xbf16, #tpu.memory_space<vmem>>, vector<2x32xbf16>
    tpu.vector_store %arg5[%c4, %c0_45], %122 {strides = array<i32>} : memref<16x32xbf16, #tpu.memory_space<vmem>>, vector<2x32xbf16>,
    %124 = vector.extract_strided_slice %12 {offsets = [6, 0], sizes = [2, 512], strides = [1, 1]} : vector<16x512xf32> to vector<2x512xf32>
    %cst_46 = arith.constant dense<0.000000e+00> : vector<2x512xf32>
    %125 = tpu.matmul %122, %13, %cst_46 {dimension_numbers = #tpu.dot_dimension_numbers<[1], [0], [0], [1], [0, 0, 1, 1], [], []>} : vector<2x32xbf16>, vector<32x512xbf16>, vector<2x512xf32> -> vector<2x512xf32>
    %126 = arith.addf %124, %125 : vector<2x512xf32>
    %127 = vector.extract_strided_slice %126 {offsets = [0, 0], sizes = [2, 32], strides = [1, 1]} : vector<2x512xf32> to vector<2x32xf32>
    %cst_47 = arith.constant 5.000000e-01 : f32
    %128 = vector.broadcast %cst_47 : f32 to vector<2x32xf32>
    %129 = arith.mulf %128, %127 : vector<2x32xf32>
    %130 = math.tanh %129 : vector<2x32xf32>
    %cst_48 = arith.constant 5.000000e-01 : f32
    %131 = vector.broadcast %cst_48 : f32 to vector<2x32xf32>
    %132 = arith.mulf %131, %130 : vector<2x32xf32>
    %cst_49 = arith.constant 5.000000e-01 : f32
    %133 = vector.broadcast %cst_49 : f32 to vector<2x32xf32>
    %134 = arith.addf %132, %133 : vector<2x32xf32>
    %135 = vector.extract_strided_slice %126 {offsets = [0, 128], sizes = [2, 32], strides = [1, 1]} : vector<2x512xf32> to vector<2x32xf32>
    %cst_50 = arith.constant 5.000000e-01 : f32
    %136 = vector.broadcast %cst_50 : f32 to vector<2x32xf32>
    %137 = arith.mulf %136, %135 : vector<2x32xf32>
    %138 = math.tanh %137 : vector<2x32xf32>
    %cst_51 = arith.constant 5.000000e-01 : f32
    %139 = vector.broadcast %cst_51 : f32 to vector<2x32xf32>
    %140 = arith.mulf %139, %138 : vector<2x32xf32>
    %cst_52 = arith.constant 5.000000e-01 : f32
    %141 = vector.broadcast %cst_52 : f32 to vector<2x32xf32>
    %142 = arith.addf %140, %141 : vector<2x32xf32>
    %143 = vector.extract_strided_slice %126 {offsets = [0, 256], sizes = [2, 32], strides = [1, 1]} : vector<2x512xf32> to vector<2x32xf32>
    %144 = math.tanh %143 : vector<2x32xf32>
    %145 = vector.extract_strided_slice %126 {offsets = [0, 384], sizes = [2, 32], strides = [1, 1]} : vector<2x512xf32> to vector<2x32xf32>
    %cst_53 = arith.constant 5.000000e-01 : f32
    %146 = vector.broadcast %cst_53 : f32 to vector<2x32xf32>
    %147 = arith.mulf %146, %145 : vector<2x32xf32>
    %148 = math.tanh %147 : vector<2x32xf32>
    %cst_54 = arith.constant 5.000000e-01 : f32
    %149 = vector.broadcast %cst_54 : f32 to vector<2x32xf32>
    %150 = arith.mulf %149, %148 : vector<2x32xf32>
    %cst_55 = arith.constant 5.000000e-01 : f32
    %151 = vector.broadcast %cst_55 : f32 to vector<2x32xf32>
    %152 = arith.addf %150, %151 : vector<2x32xf32>
    %153 = arith.mulf %142, %119 : vector<2x32xf32>
    %154 = arith.mulf %134, %144 : vector<2x32xf32>
    %155 = arith.addf %153, %154 : vector<2x32xf32>
    %156 = math.tanh %155 : vector<2x32xf32>
    %157 = arith.mulf %152, %156 : vector<2x32xf32>
    %158 = arith.truncf %157 : vector<2x32xf32> to vector<2x32xbf16>
    %c6 = arith.constant 6 : index
    %c0_56 = arith.constant 0 : index
    %159 = vector.load %arg5[%c6, %c0_56] : memref<16x32xbf16, #tpu.memory_space<vmem>>, vector<2x32xbf16>
    tpu.vector_store %arg5[%c6, %c0_56], %158 {strides = array<i32>} : memref<16x32xbf16, #tpu.memory_space<vmem>>, vector<2x32xbf16>,
    %160 = vector.extract_strided_slice %12 {offsets = [8, 0], sizes = [2, 512], strides = [1, 1]} : vector<16x512xf32> to vector<2x512xf32>
    %cst_57 = arith.constant dense<0.000000e+00> : vector<2x512xf32>
    %161 = tpu.matmul %158, %13, %cst_57 {dimension_numbers = #tpu.dot_dimension_numbers<[1], [0], [0], [1], [0, 0, 1, 1], [], []>} : vector<2x32xbf16>, vector<32x512xbf16>, vector<2x512xf32> -> vector<2x512xf32>
    %162 = arith.addf %160, %161 : vector<2x512xf32>
    %163 = vector.extract_strided_slice %162 {offsets = [0, 0], sizes = [2, 32], strides = [1, 1]} : vector<2x512xf32> to vector<2x32xf32>
    %cst_58 = arith.constant 5.000000e-01 : f32
    %164 = vector.broadcast %cst_58 : f32 to vector<2x32xf32>
    %165 = arith.mulf %164, %163 : vector<2x32xf32>
    %166 = math.tanh %165 : vector<2x32xf32>
    %cst_59 = arith.constant 5.000000e-01 : f32
    %167 = vector.broadcast %cst_59 : f32 to vector<2x32xf32>
    %168 = arith.mulf %167, %166 : vector<2x32xf32>
    %cst_60 = arith.constant 5.000000e-01 : f32
    %169 = vector.broadcast %cst_60 : f32 to vector<2x32xf32>
    %170 = arith.addf %168, %169 : vector<2x32xf32>
    %171 = vector.extract_strided_slice %162 {offsets = [0, 128], sizes = [2, 32], strides = [1, 1]} : vector<2x512xf32> to vector<2x32xf32>
    %cst_61 = arith.constant 5.000000e-01 : f32
    %172 = vector.broadcast %cst_61 : f32 to vector<2x32xf32>
    %173 = arith.mulf %172, %171 : vector<2x32xf32>
    %174 = math.tanh %173 : vector<2x32xf32>
    %cst_62 = arith.constant 5.000000e-01 : f32
    %175 = vector.broadcast %cst_62 : f32 to vector<2x32xf32>
    %176 = arith.mulf %175, %174 : vector<2x32xf32>
    %cst_63 = arith.constant 5.000000e-01 : f32
    %177 = vector.broadcast %cst_63 : f32 to vector<2x32xf32>
    %178 = arith.addf %176, %177 : vector<2x32xf32>
    %179 = vector.extract_strided_slice %162 {offsets = [0, 256], sizes = [2, 32], strides = [1, 1]} : vector<2x512xf32> to vector<2x32xf32>
    %180 = math.tanh %179 : vector<2x32xf32>
    %181 = vector.extract_strided_slice %162 {offsets = [0, 384], sizes = [2, 32], strides = [1, 1]} : vector<2x512xf32> to vector<2x32xf32>
    %cst_64 = arith.constant 5.000000e-01 : f32
    %182 = vector.broadcast %cst_64 : f32 to vector<2x32xf32>
    %183 = arith.mulf %182, %181 : vector<2x32xf32>
    %184 = math.tanh %183 : vector<2x32xf32>
    %cst_65 = arith.constant 5.000000e-01 : f32
    %185 = vector.broadcast %cst_65 : f32 to vector<2x32xf32>
    %186 = arith.mulf %185, %184 : vector<2x32xf32>
    %cst_66 = arith.constant 5.000000e-01 : f32
    %187 = vector.broadcast %cst_66 : f32 to vector<2x32xf32>
    %188 = arith.addf %186, %187 : vector<2x32xf32>
    %189 = arith.mulf %178, %155 : vector<2x32xf32>
    %190 = arith.mulf %170, %180 : vector<2x32xf32>
    %191 = arith.addf %189, %190 : vector<2x32xf32>
    %192 = math.tanh %191 : vector<2x32xf32>
    %193 = arith.mulf %188, %192 : vector<2x32xf32>
    %194 = arith.truncf %193 : vector<2x32xf32> to vector<2x32xbf16>
    %c8 = arith.constant 8 : index
    %c0_67 = arith.constant 0 : index
    %195 = vector.load %arg5[%c8, %c0_67] : memref<16x32xbf16, #tpu.memory_space<vmem>>, vector<2x32xbf16>
    tpu.vector_store %arg5[%c8, %c0_67], %194 {strides = array<i32>} : memref<16x32xbf16, #tpu.memory_space<vmem>>, vector<2x32xbf16>,
    %196 = vector.extract_strided_slice %12 {offsets = [10, 0], sizes = [2, 512], strides = [1, 1]} : vector<16x512xf32> to vector<2x512xf32>
    %cst_68 = arith.constant dense<0.000000e+00> : vector<2x512xf32>
    %197 = tpu.matmul %194, %13, %cst_68 {dimension_numbers = #tpu.dot_dimension_numbers<[1], [0], [0], [1], [0, 0, 1, 1], [], []>} : vector<2x32xbf16>, vector<32x512xbf16>, vector<2x512xf32> -> vector<2x512xf32>
    %198 = arith.addf %196, %197 : vector<2x512xf32>
    %199 = vector.extract_strided_slice %198 {offsets = [0, 0], sizes = [2, 32], strides = [1, 1]} : vector<2x512xf32> to vector<2x32xf32>
    %cst_69 = arith.constant 5.000000e-01 : f32
    %200 = vector.broadcast %cst_69 : f32 to vector<2x32xf32>
    %201 = arith.mulf %200, %199 : vector<2x32xf32>
    %202 = math.tanh %201 : vector<2x32xf32>
    %cst_70 = arith.constant 5.000000e-01 : f32
    %203 = vector.broadcast %cst_70 : f32 to vector<2x32xf32>
    %204 = arith.mulf %203, %202 : vector<2x32xf32>
    %cst_71 = arith.constant 5.000000e-01 : f32
    %205 = vector.broadcast %cst_71 : f32 to vector<2x32xf32>
    %206 = arith.addf %204, %205 : vector<2x32xf32>
    %207 = vector.extract_strided_slice %198 {offsets = [0, 128], sizes = [2, 32], strides = [1, 1]} : vector<2x512xf32> to vector<2x32xf32>
    %cst_72 = arith.constant 5.000000e-01 : f32
    %208 = vector.broadcast %cst_72 : f32 to vector<2x32xf32>
    %209 = arith.mulf %208, %207 : vector<2x32xf32>
    %210 = math.tanh %209 : vector<2x32xf32>
    %cst_73 = arith.constant 5.000000e-01 : f32
    %211 = vector.broadcast %cst_73 : f32 to vector<2x32xf32>
    %212 = arith.mulf %211, %210 : vector<2x32xf32>
    %cst_74 = arith.constant 5.000000e-01 : f32
    %213 = vector.broadcast %cst_74 : f32 to vector<2x32xf32>
    %214 = arith.addf %212, %213 : vector<2x32xf32>
    %215 = vector.extract_strided_slice %198 {offsets = [0, 256], sizes = [2, 32], strides = [1, 1]} : vector<2x512xf32> to vector<2x32xf32>
    %216 = math.tanh %215 : vector<2x32xf32>
    %217 = vector.extract_strided_slice %198 {offsets = [0, 384], sizes = [2, 32], strides = [1, 1]} : vector<2x512xf32> to vector<2x32xf32>
    %cst_75 = arith.constant 5.000000e-01 : f32
    %218 = vector.broadcast %cst_75 : f32 to vector<2x32xf32>
    %219 = arith.mulf %218, %217 : vector<2x32xf32>
    %220 = math.tanh %219 : vector<2x32xf32>
    %cst_76 = arith.constant 5.000000e-01 : f32
    %221 = vector.broadcast %cst_76 : f32 to vector<2x32xf32>
    %222 = arith.mulf %221, %220 : vector<2x32xf32>
    %cst_77 = arith.constant 5.000000e-01 : f32
    %223 = vector.broadcast %cst_77 : f32 to vector<2x32xf32>
    %224 = arith.addf %222, %223 : vector<2x32xf32>
    %225 = arith.mulf %214, %191 : vector<2x32xf32>
    %226 = arith.mulf %206, %216 : vector<2x32xf32>
    %227 = arith.addf %225, %226 : vector<2x32xf32>
    %228 = math.tanh %227 : vector<2x32xf32>
    %229 = arith.mulf %224, %228 : vector<2x32xf32>
    %230 = arith.truncf %229 : vector<2x32xf32> to vector<2x32xbf16>
    %c10 = arith.constant 10 : index
    %c0_78 = arith.constant 0 : index
    %231 = vector.load %arg5[%c10, %c0_78] : memref<16x32xbf16, #tpu.memory_space<vmem>>, vector<2x32xbf16>
    tpu.vector_store %arg5[%c10, %c0_78], %230 {strides = array<i32>} : memref<16x32xbf16, #tpu.memory_space<vmem>>, vector<2x32xbf16>,
    %232 = vector.extract_strided_slice %12 {offsets = [12, 0], sizes = [2, 512], strides = [1, 1]} : vector<16x512xf32> to vector<2x512xf32>
    %cst_79 = arith.constant dense<0.000000e+00> : vector<2x512xf32>
    %233 = tpu.matmul %230, %13, %cst_79 {dimension_numbers = #tpu.dot_dimension_numbers<[1], [0], [0], [1], [0, 0, 1, 1], [], []>} : vector<2x32xbf16>, vector<32x512xbf16>, vector<2x512xf32> -> vector<2x512xf32>
    %234 = arith.addf %232, %233 : vector<2x512xf32>
    %235 = vector.extract_strided_slice %234 {offsets = [0, 0], sizes = [2, 32], strides = [1, 1]} : vector<2x512xf32> to vector<2x32xf32>
    %cst_80 = arith.constant 5.000000e-01 : f32
    %236 = vector.broadcast %cst_80 : f32 to vector<2x32xf32>
    %237 = arith.mulf %236, %235 : vector<2x32xf32>
    %238 = math.tanh %237 : vector<2x32xf32>
    %cst_81 = arith.constant 5.000000e-01 : f32
    %239 = vector.broadcast %cst_81 : f32 to vector<2x32xf32>
    %240 = arith.mulf %239, %238 : vector<2x32xf32>
    %cst_82 = arith.constant 5.000000e-01 : f32
    %241 = vector.broadcast %cst_82 : f32 to vector<2x32xf32>
    %242 = arith.addf %240, %241 : vector<2x32xf32>
    %243 = vector.extract_strided_slice %234 {offsets = [0, 128], sizes = [2, 32], strides = [1, 1]} : vector<2x512xf32> to vector<2x32xf32>
    %cst_83 = arith.constant 5.000000e-01 : f32
    %244 = vector.broadcast %cst_83 : f32 to vector<2x32xf32>
    %245 = arith.mulf %244, %243 : vector<2x32xf32>
    %246 = math.tanh %245 : vector<2x32xf32>
    %cst_84 = arith.constant 5.000000e-01 : f32
    %247 = vector.broadcast %cst_84 : f32 to vector<2x32xf32>
    %248 = arith.mulf %247, %246 : vector<2x32xf32>
    %cst_85 = arith.constant 5.000000e-01 : f32
    %249 = vector.broadcast %cst_85 : f32 to vector<2x32xf32>
    %250 = arith.addf %248, %249 : vector<2x32xf32>
    %251 = vector.extract_strided_slice %234 {offsets = [0, 256], sizes = [2, 32], strides = [1, 1]} : vector<2x512xf32> to vector<2x32xf32>
    %252 = math.tanh %251 : vector<2x32xf32>
    %253 = vector.extract_strided_slice %234 {offsets = [0, 384], sizes = [2, 32], strides = [1, 1]} : vector<2x512xf32> to vector<2x32xf32>
    %cst_86 = arith.constant 5.000000e-01 : f32
    %254 = vector.broadcast %cst_86 : f32 to vector<2x32xf32>
    %255 = arith.mulf %254, %253 : vector<2x32xf32>
    %256 = math.tanh %255 : vector<2x32xf32>
    %cst_87 = arith.constant 5.000000e-01 : f32
    %257 = vector.broadcast %cst_87 : f32 to vector<2x32xf32>
    %258 = arith.mulf %257, %256 : vector<2x32xf32>
    %cst_88 = arith.constant 5.000000e-01 : f32
    %259 = vector.broadcast %cst_88 : f32 to vector<2x32xf32>
    %260 = arith.addf %258, %259 : vector<2x32xf32>
    %261 = arith.mulf %250, %227 : vector<2x32xf32>
    %262 = arith.mulf %242, %252 : vector<2x32xf32>
    %263 = arith.addf %261, %262 : vector<2x32xf32>
    %264 = math.tanh %263 : vector<2x32xf32>
    %265 = arith.mulf %260, %264 : vector<2x32xf32>
    %266 = arith.truncf %265 : vector<2x32xf32> to vector<2x32xbf16>
    %c12 = arith.constant 12 : index
    %c0_89 = arith.constant 0 : index
    %267 = vector.load %arg5[%c12, %c0_89] : memref<16x32xbf16, #tpu.memory_space<vmem>>, vector<2x32xbf16>
    tpu.vector_store %arg5[%c12, %c0_89], %266 {strides = array<i32>} : memref<16x32xbf16, #tpu.memory_space<vmem>>, vector<2x32xbf16>,
    %268 = vector.extract_strided_slice %12 {offsets = [14, 0], sizes = [2, 512], strides = [1, 1]} : vector<16x512xf32> to vector<2x512xf32>
    %cst_90 = arith.constant dense<0.000000e+00> : vector<2x512xf32>
    %269 = tpu.matmul %266, %13, %cst_90 {dimension_numbers = #tpu.dot_dimension_numbers<[1], [0], [0], [1], [0, 0, 1, 1], [], []>} : vector<2x32xbf16>, vector<32x512xbf16>, vector<2x512xf32> -> vector<2x512xf32>
    %270 = arith.addf %268, %269 : vector<2x512xf32>
    %271 = vector.extract_strided_slice %270 {offsets = [0, 0], sizes = [2, 32], strides = [1, 1]} : vector<2x512xf32> to vector<2x32xf32>
    %cst_91 = arith.constant 5.000000e-01 : f32
    %272 = vector.broadcast %cst_91 : f32 to vector<2x32xf32>
    %273 = arith.mulf %272, %271 : vector<2x32xf32>
    %274 = math.tanh %273 : vector<2x32xf32>
    %cst_92 = arith.constant 5.000000e-01 : f32
    %275 = vector.broadcast %cst_92 : f32 to vector<2x32xf32>
    %276 = arith.mulf %275, %274 : vector<2x32xf32>
    %cst_93 = arith.constant 5.000000e-01 : f32
    %277 = vector.broadcast %cst_93 : f32 to vector<2x32xf32>
    %278 = arith.addf %276, %277 : vector<2x32xf32>
    %279 = vector.extract_strided_slice %270 {offsets = [0, 128], sizes = [2, 32], strides = [1, 1]} : vector<2x512xf32> to vector<2x32xf32>
    %cst_94 = arith.constant 5.000000e-01 : f32
    %280 = vector.broadcast %cst_94 : f32 to vector<2x32xf32>
    %281 = arith.mulf %280, %279 : vector<2x32xf32>
    %282 = math.tanh %281 : vector<2x32xf32>
    %cst_95 = arith.constant 5.000000e-01 : f32
    %283 = vector.broadcast %cst_95 : f32 to vector<2x32xf32>
    %284 = arith.mulf %283, %282 : vector<2x32xf32>
    %cst_96 = arith.constant 5.000000e-01 : f32
    %285 = vector.broadcast %cst_96 : f32 to vector<2x32xf32>
    %286 = arith.addf %284, %285 : vector<2x32xf32>
    %287 = vector.extract_strided_slice %270 {offsets = [0, 256], sizes = [2, 32], strides = [1, 1]} : vector<2x512xf32> to vector<2x32xf32>
    %288 = math.tanh %287 : vector<2x32xf32>
    %289 = vector.extract_strided_slice %270 {offsets = [0, 384], sizes = [2, 32], strides = [1, 1]} : vector<2x512xf32> to vector<2x32xf32>
    %cst_97 = arith.constant 5.000000e-01 : f32
    %290 = vector.broadcast %cst_97 : f32 to vector<2x32xf32>
    %291 = arith.mulf %290, %289 : vector<2x32xf32>
    %292 = math.tanh %291 : vector<2x32xf32>
    %cst_98 = arith.constant 5.000000e-01 : f32
    %293 = vector.broadcast %cst_98 : f32 to vector<2x32xf32>
    %294 = arith.mulf %293, %292 : vector<2x32xf32>
    %cst_99 = arith.constant 5.000000e-01 : f32
    %295 = vector.broadcast %cst_99 : f32 to vector<2x32xf32>
    %296 = arith.addf %294, %295 : vector<2x32xf32>
    %297 = arith.mulf %286, %263 : vector<2x32xf32>
    %298 = arith.mulf %278, %288 : vector<2x32xf32>
    %299 = arith.addf %297, %298 : vector<2x32xf32>
    %300 = math.tanh %299 : vector<2x32xf32>
    %301 = arith.mulf %296, %300 : vector<2x32xf32>
    %302 = arith.truncf %301 : vector<2x32xf32> to vector<2x32xbf16>
    %c14 = arith.constant 14 : index
    %c0_100 = arith.constant 0 : index
    %303 = vector.load %arg5[%c14, %c0_100] : memref<16x32xbf16, #tpu.memory_space<vmem>>, vector<2x32xbf16>
    tpu.vector_store %arg5[%c14, %c0_100], %302 {strides = array<i32>} : memref<16x32xbf16, #tpu.memory_space<vmem>>, vector<2x32xbf16>,
    %c4_101 = arith.constant 4 : index
    %c0_102 = arith.constant 0 : index
    %304 = vector.load %arg3[%c4_101, %c0_102] : memref<8x512xf32, #tpu.memory_space<vmem>>, vector<1x128xf32>
    %c256 = arith.constant 256 : index
    %c0_103 = arith.constant 0 : index
    %305 = vector.load %arg2[%c256, %c0_103] : memref<640x512xbf16, #tpu.memory_space<vmem>>, vector<32x128xbf16>
    %cst_104 = arith.constant dense<0.000000e+00> : vector<2x128xf32>
    %306 = tpu.matmul %302, %305, %cst_104 {dimension_numbers = #tpu.dot_dimension_numbers<[1], [0], [0], [1], [0, 0, 1, 1], [], []>} : vector<2x32xbf16>, vector<32x128xbf16>, vector<2x128xf32> -> vector<2x128xf32>
    %307 = vector.broadcast %304 : vector<1x128xf32> to vector<2x128xf32>
    %308 = arith.addf %307, %306 : vector<2x128xf32>
    %c0_105 = arith.constant 0 : index
    %c0_106 = arith.constant 0 : index
    %309 = vector.load %arg5[%c0_105, %c0_106] : memref<16x32xbf16, #tpu.memory_space<vmem>>, vector<16x32xbf16>
    %c64 = arith.constant 64 : index
    %c0_107 = arith.constant 0 : index
    %310 = vector.load %arg2[%c64, %c0_107] : memref<640x512xbf16, #tpu.memory_space<vmem>>, vector<32x512xbf16>
    %cst_108 = arith.constant dense<0.000000e+00> : vector<16x512xf32>
    %311 = tpu.matmul %309, %310, %cst_108 {dimension_numbers = #tpu.dot_dimension_numbers<[1], [0], [0], [1], [0, 0, 1, 1], [], []>} : vector<16x32xbf16>, vector<32x512xbf16>, vector<16x512xf32> -> vector<16x512xf32>
    %c1 = arith.constant 1 : index
    %c0_109 = arith.constant 0 : index
    %312 = vector.load %arg3[%c1, %c0_109] : memref<8x512xf32, #tpu.memory_space<vmem>>, vector<1x512xf32>
    %313 = vector.broadcast %312 : vector<1x512xf32> to vector<16x512xf32>
    %314 = arith.addf %311, %313 : vector<16x512xf32>
    %c96 = arith.constant 96 : index
    %c0_110 = arith.constant 0 : index
    %315 = vector.load %arg2[%c96, %c0_110] : memref<640x512xbf16, #tpu.memory_space<vmem>>, vector<32x512xbf16>
    %cst_111 = arith.constant 0.000000e+00 : f32
    %316 = vector.broadcast %cst_111 : f32 to vector<2x32xf32>
    %cst_112 = arith.constant 0.000000e+00 : bf16
    %317 = vector.broadcast %cst_112 : bf16 to vector<2x32xbf16>
    %318 = vector.extract_strided_slice %314 {offsets = [0, 0], sizes = [2, 512], strides = [1, 1]} : vector<16x512xf32> to vector<2x512xf32>
    %cst_113 = arith.constant dense<0.000000e+00> : vector<2x512xf32>
    %319 = tpu.matmul %317, %315, %cst_113 {dimension_numbers = #tpu.dot_dimension_numbers<[1], [0], [0], [1], [0, 0, 1, 1], [], []>} : vector<2x32xbf16>, vector<32x512xbf16>, vector<2x512xf32> -> vector<2x512xf32>
    %320 = arith.addf %318, %319 : vector<2x512xf32>
    %321 = vector.extract_strided_slice %320 {offsets = [0, 0], sizes = [2, 32], strides = [1, 1]} : vector<2x512xf32> to vector<2x32xf32>
    %cst_114 = arith.constant 5.000000e-01 : f32
    %322 = vector.broadcast %cst_114 : f32 to vector<2x32xf32>
    %323 = arith.mulf %322, %321 : vector<2x32xf32>
    %324 = math.tanh %323 : vector<2x32xf32>
    %cst_115 = arith.constant 5.000000e-01 : f32
    %325 = vector.broadcast %cst_115 : f32 to vector<2x32xf32>
    %326 = arith.mulf %325, %324 : vector<2x32xf32>
    %cst_116 = arith.constant 5.000000e-01 : f32
    %327 = vector.broadcast %cst_116 : f32 to vector<2x32xf32>
    %328 = arith.addf %326, %327 : vector<2x32xf32>
    %329 = vector.extract_strided_slice %320 {offsets = [0, 128], sizes = [2, 32], strides = [1, 1]} : vector<2x512xf32> to vector<2x32xf32>
    %cst_117 = arith.constant 5.000000e-01 : f32
    %330 = vector.broadcast %cst_117 : f32 to vector<2x32xf32>
    %331 = arith.mulf %330, %329 : vector<2x32xf32>
    %332 = math.tanh %331 : vector<2x32xf32>
    %cst_118 = arith.constant 5.000000e-01 : f32
    %333 = vector.broadcast %cst_118 : f32 to vector<2x32xf32>
    %334 = arith.mulf %333, %332 : vector<2x32xf32>
    %cst_119 = arith.constant 5.000000e-01 : f32
    %335 = vector.broadcast %cst_119 : f32 to vector<2x32xf32>
    %336 = arith.addf %334, %335 : vector<2x32xf32>
    %337 = vector.extract_strided_slice %320 {offsets = [0, 256], sizes = [2, 32], strides = [1, 1]} : vector<2x512xf32> to vector<2x32xf32>
    %338 = math.tanh %337 : vector<2x32xf32>
    %339 = vector.extract_strided_slice %320 {offsets = [0, 384], sizes = [2, 32], strides = [1, 1]} : vector<2x512xf32> to vector<2x32xf32>
    %cst_120 = arith.constant 5.000000e-01 : f32
    %340 = vector.broadcast %cst_120 : f32 to vector<2x32xf32>
    %341 = arith.mulf %340, %339 : vector<2x32xf32>
    %342 = math.tanh %341 : vector<2x32xf32>
    %cst_121 = arith.constant 5.000000e-01 : f32
    %343 = vector.broadcast %cst_121 : f32 to vector<2x32xf32>
    %344 = arith.mulf %343, %342 : vector<2x32xf32>
    %cst_122 = arith.constant 5.000000e-01 : f32
    %345 = vector.broadcast %cst_122 : f32 to vector<2x32xf32>
    %346 = arith.addf %344, %345 : vector<2x32xf32>
    %347 = arith.mulf %336, %316 : vector<2x32xf32>
    %348 = arith.mulf %328, %338 : vector<2x32xf32>
    %349 = arith.addf %347, %348 : vector<2x32xf32>
    %350 = math.tanh %349 : vector<2x32xf32>
    %351 = arith.mulf %346, %350 : vector<2x32xf32>
    %352 = arith.truncf %351 : vector<2x32xf32> to vector<2x32xbf16>
    %c0_123 = arith.constant 0 : index
    %c0_124 = arith.constant 0 : index
    %353 = vector.load %arg5[%c0_123, %c0_124] : memref<16x32xbf16, #tpu.memory_space<vmem>>, vector<2x32xbf16>
    tpu.vector_store %arg5[%c0_123, %c0_124], %352 {strides = array<i32>} : memref<16x32xbf16, #tpu.memory_space<vmem>>, vector<2x32xbf16>,
    %354 = vector.extract_strided_slice %314 {offsets = [2, 0], sizes = [2, 512], strides = [1, 1]} : vector<16x512xf32> to vector<2x512xf32>
    %cst_125 = arith.constant dense<0.000000e+00> : vector<2x512xf32>
    %355 = tpu.matmul %352, %315, %cst_125 {dimension_numbers = #tpu.dot_dimension_numbers<[1], [0], [0], [1], [0, 0, 1, 1], [], []>} : vector<2x32xbf16>, vector<32x512xbf16>, vector<2x512xf32> -> vector<2x512xf32>
    %356 = arith.addf %354, %355 : vector<2x512xf32>
    %357 = vector.extract_strided_slice %356 {offsets = [0, 0], sizes = [2, 32], strides = [1, 1]} : vector<2x512xf32> to vector<2x32xf32>
    %cst_126 = arith.constant 5.000000e-01 : f32
    %358 = vector.broadcast %cst_126 : f32 to vector<2x32xf32>
    %359 = arith.mulf %358, %357 : vector<2x32xf32>
    %360 = math.tanh %359 : vector<2x32xf32>
    %cst_127 = arith.constant 5.000000e-01 : f32
    %361 = vector.broadcast %cst_127 : f32 to vector<2x32xf32>
    %362 = arith.mulf %361, %360 : vector<2x32xf32>
    %cst_128 = arith.constant 5.000000e-01 : f32
    %363 = vector.broadcast %cst_128 : f32 to vector<2x32xf32>
    %364 = arith.addf %362, %363 : vector<2x32xf32>
    %365 = vector.extract_strided_slice %356 {offsets = [0, 128], sizes = [2, 32], strides = [1, 1]} : vector<2x512xf32> to vector<2x32xf32>
    %cst_129 = arith.constant 5.000000e-01 : f32
    %366 = vector.broadcast %cst_129 : f32 to vector<2x32xf32>
    %367 = arith.mulf %366, %365 : vector<2x32xf32>
    %368 = math.tanh %367 : vector<2x32xf32>
    %cst_130 = arith.constant 5.000000e-01 : f32
    %369 = vector.broadcast %cst_130 : f32 to vector<2x32xf32>
    %370 = arith.mulf %369, %368 : vector<2x32xf32>
    %cst_131 = arith.constant 5.000000e-01 : f32
    %371 = vector.broadcast %cst_131 : f32 to vector<2x32xf32>
    %372 = arith.addf %370, %371 : vector<2x32xf32>
    %373 = vector.extract_strided_slice %356 {offsets = [0, 256], sizes = [2, 32], strides = [1, 1]} : vector<2x512xf32> to vector<2x32xf32>
    %374 = math.tanh %373 : vector<2x32xf32>
    %375 = vector.extract_strided_slice %356 {offsets = [0, 384], sizes = [2, 32], strides = [1, 1]} : vector<2x512xf32> to vector<2x32xf32>
    %cst_132 = arith.constant 5.000000e-01 : f32
    %376 = vector.broadcast %cst_132 : f32 to vector<2x32xf32>
    %377 = arith.mulf %376, %375 : vector<2x32xf32>
    %378 = math.tanh %377 : vector<2x32xf32>
    %cst_133 = arith.constant 5.000000e-01 : f32
    %379 = vector.broadcast %cst_133 : f32 to vector<2x32xf32>
    %380 = arith.mulf %379, %378 : vector<2x32xf32>
    %cst_134 = arith.constant 5.000000e-01 : f32
    %381 = vector.broadcast %cst_134 : f32 to vector<2x32xf32>
    %382 = arith.addf %380, %381 : vector<2x32xf32>
    %383 = arith.mulf %372, %349 : vector<2x32xf32>
    %384 = arith.mulf %364, %374 : vector<2x32xf32>
    %385 = arith.addf %383, %384 : vector<2x32xf32>
    %386 = math.tanh %385 : vector<2x32xf32>
    %387 = arith.mulf %382, %386 : vector<2x32xf32>
    %388 = arith.truncf %387 : vector<2x32xf32> to vector<2x32xbf16>
    %c2_135 = arith.constant 2 : index
    %c0_136 = arith.constant 0 : index
    %389 = vector.load %arg5[%c2_135, %c0_136] : memref<16x32xbf16, #tpu.memory_space<vmem>>, vector<2x32xbf16>
    tpu.vector_store %arg5[%c2_135, %c0_136], %388 {strides = array<i32>} : memref<16x32xbf16, #tpu.memory_space<vmem>>, vector<2x32xbf16>,
    %390 = vector.extract_strided_slice %314 {offsets = [4, 0], sizes = [2, 512], strides = [1, 1]} : vector<16x512xf32> to vector<2x512xf32>
    %cst_137 = arith.constant dense<0.000000e+00> : vector<2x512xf32>
    %391 = tpu.matmul %388, %315, %cst_137 {dimension_numbers = #tpu.dot_dimension_numbers<[1], [0], [0], [1], [0, 0, 1, 1], [], []>} : vector<2x32xbf16>, vector<32x512xbf16>, vector<2x512xf32> -> vector<2x512xf32>
    %392 = arith.addf %390, %391 : vector<2x512xf32>
    %393 = vector.extract_strided_slice %392 {offsets = [0, 0], sizes = [2, 32], strides = [1, 1]} : vector<2x512xf32> to vector<2x32xf32>
    %cst_138 = arith.constant 5.000000e-01 : f32
    %394 = vector.broadcast %cst_138 : f32 to vector<2x32xf32>
    %395 = arith.mulf %394, %393 : vector<2x32xf32>
    %396 = math.tanh %395 : vector<2x32xf32>
    %cst_139 = arith.constant 5.000000e-01 : f32
    %397 = vector.broadcast %cst_139 : f32 to vector<2x32xf32>
    %398 = arith.mulf %397, %396 : vector<2x32xf32>
    %cst_140 = arith.constant 5.000000e-01 : f32
    %399 = vector.broadcast %cst_140 : f32 to vector<2x32xf32>
    %400 = arith.addf %398, %399 : vector<2x32xf32>
    %401 = vector.extract_strided_slice %392 {offsets = [0, 128], sizes = [2, 32], strides = [1, 1]} : vector<2x512xf32> to vector<2x32xf32>
    %cst_141 = arith.constant 5.000000e-01 : f32
    %402 = vector.broadcast %cst_141 : f32 to vector<2x32xf32>
    %403 = arith.mulf %402, %401 : vector<2x32xf32>
    %404 = math.tanh %403 : vector<2x32xf32>
    %cst_142 = arith.constant 5.000000e-01 : f32
    %405 = vector.broadcast %cst_142 : f32 to vector<2x32xf32>
    %406 = arith.mulf %405, %404 : vector<2x32xf32>
    %cst_143 = arith.constant 5.000000e-01 : f32
    %407 = vector.broadcast %cst_143 : f32 to vector<2x32xf32>
    %408 = arith.addf %406, %407 : vector<2x32xf32>
    %409 = vector.extract_strided_slice %392 {offsets = [0, 256], sizes = [2, 32], strides = [1, 1]} : vector<2x512xf32> to vector<2x32xf32>
    %410 = math.tanh %409 : vector<2x32xf32>
    %411 = vector.extract_strided_slice %392 {offsets = [0, 384], sizes = [2, 32], strides = [1, 1]} : vector<2x512xf32> to vector<2x32xf32>
    %cst_144 = arith.constant 5.000000e-01 : f32
    %412 = vector.broadcast %cst_144 : f32 to vector<2x32xf32>
    %413 = arith.mulf %412, %411 : vector<2x32xf32>
    %414 = math.tanh %413 : vector<2x32xf32>
    %cst_145 = arith.constant 5.000000e-01 : f32
    %415 = vector.broadcast %cst_145 : f32 to vector<2x32xf32>
    %416 = arith.mulf %415, %414 : vector<2x32xf32>
    %cst_146 = arith.constant 5.000000e-01 : f32
    %417 = vector.broadcast %cst_146 : f32 to vector<2x32xf32>
    %418 = arith.addf %416, %417 : vector<2x32xf32>
    %419 = arith.mulf %408, %385 : vector<2x32xf32>
    %420 = arith.mulf %400, %410 : vector<2x32xf32>
    %421 = arith.addf %419, %420 : vector<2x32xf32>
    %422 = math.tanh %421 : vector<2x32xf32>
    %423 = arith.mulf %418, %422 : vector<2x32xf32>
    %424 = arith.truncf %423 : vector<2x32xf32> to vector<2x32xbf16>
    %c4_147 = arith.constant 4 : index
    %c0_148 = arith.constant 0 : index
    %425 = vector.load %arg5[%c4_147, %c0_148] : memref<16x32xbf16, #tpu.memory_space<vmem>>, vector<2x32xbf16>
    tpu.vector_store %arg5[%c4_147, %c0_148], %424 {strides = array<i32>} : memref<16x32xbf16, #tpu.memory_space<vmem>>, vector<2x32xbf16>,
    %426 = vector.extract_strided_slice %314 {offsets = [6, 0], sizes = [2, 512], strides = [1, 1]} : vector<16x512xf32> to vector<2x512xf32>
    %cst_149 = arith.constant dense<0.000000e+00> : vector<2x512xf32>
    %427 = tpu.matmul %424, %315, %cst_149 {dimension_numbers = #tpu.dot_dimension_numbers<[1], [0], [0], [1], [0, 0, 1, 1], [], []>} : vector<2x32xbf16>, vector<32x512xbf16>, vector<2x512xf32> -> vector<2x512xf32>
    %428 = arith.addf %426, %427 : vector<2x512xf32>
    %429 = vector.extract_strided_slice %428 {offsets = [0, 0], sizes = [2, 32], strides = [1, 1]} : vector<2x512xf32> to vector<2x32xf32>
    %cst_150 = arith.constant 5.000000e-01 : f32
    %430 = vector.broadcast %cst_150 : f32 to vector<2x32xf32>
    %431 = arith.mulf %430, %429 : vector<2x32xf32>
    %432 = math.tanh %431 : vector<2x32xf32>
    %cst_151 = arith.constant 5.000000e-01 : f32
    %433 = vector.broadcast %cst_151 : f32 to vector<2x32xf32>
    %434 = arith.mulf %433, %432 : vector<2x32xf32>
    %cst_152 = arith.constant 5.000000e-01 : f32
    %435 = vector.broadcast %cst_152 : f32 to vector<2x32xf32>
    %436 = arith.addf %434, %435 : vector<2x32xf32>
    %437 = vector.extract_strided_slice %428 {offsets = [0, 128], sizes = [2, 32], strides = [1, 1]} : vector<2x512xf32> to vector<2x32xf32>
    %cst_153 = arith.constant 5.000000e-01 : f32
    %438 = vector.broadcast %cst_153 : f32 to vector<2x32xf32>
    %439 = arith.mulf %438, %437 : vector<2x32xf32>
    %440 = math.tanh %439 : vector<2x32xf32>
    %cst_154 = arith.constant 5.000000e-01 : f32
    %441 = vector.broadcast %cst_154 : f32 to vector<2x32xf32>
    %442 = arith.mulf %441, %440 : vector<2x32xf32>
    %cst_155 = arith.constant 5.000000e-01 : f32
    %443 = vector.broadcast %cst_155 : f32 to vector<2x32xf32>
    %444 = arith.addf %442, %443 : vector<2x32xf32>
    %445 = vector.extract_strided_slice %428 {offsets = [0, 256], sizes = [2, 32], strides = [1, 1]} : vector<2x512xf32> to vector<2x32xf32>
    %446 = math.tanh %445 : vector<2x32xf32>
    %447 = vector.extract_strided_slice %428 {offsets = [0, 384], sizes = [2, 32], strides = [1, 1]} : vector<2x512xf32> to vector<2x32xf32>
    %cst_156 = arith.constant 5.000000e-01 : f32
    %448 = vector.broadcast %cst_156 : f32 to vector<2x32xf32>
    %449 = arith.mulf %448, %447 : vector<2x32xf32>
    %450 = math.tanh %449 : vector<2x32xf32>
    %cst_157 = arith.constant 5.000000e-01 : f32
    %451 = vector.broadcast %cst_157 : f32 to vector<2x32xf32>
    %452 = arith.mulf %451, %450 : vector<2x32xf32>
    %cst_158 = arith.constant 5.000000e-01 : f32
    %453 = vector.broadcast %cst_158 : f32 to vector<2x32xf32>
    %454 = arith.addf %452, %453 : vector<2x32xf32>
    %455 = arith.mulf %444, %421 : vector<2x32xf32>
    %456 = arith.mulf %436, %446 : vector<2x32xf32>
    %457 = arith.addf %455, %456 : vector<2x32xf32>
    %458 = math.tanh %457 : vector<2x32xf32>
    %459 = arith.mulf %454, %458 : vector<2x32xf32>
    %460 = arith.truncf %459 : vector<2x32xf32> to vector<2x32xbf16>
    %c6_159 = arith.constant 6 : index
    %c0_160 = arith.constant 0 : index
    %461 = vector.load %arg5[%c6_159, %c0_160] : memref<16x32xbf16, #tpu.memory_space<vmem>>, vector<2x32xbf16>
    tpu.vector_store %arg5[%c6_159, %c0_160], %460 {strides = array<i32>} : memref<16x32xbf16, #tpu.memory_space<vmem>>, vector<2x32xbf16>,
    %462 = vector.extract_strided_slice %314 {offsets = [8, 0], sizes = [2, 512], strides = [1, 1]} : vector<16x512xf32> to vector<2x512xf32>
    %cst_161 = arith.constant dense<0.000000e+00> : vector<2x512xf32>
    %463 = tpu.matmul %460, %315, %cst_161 {dimension_numbers = #tpu.dot_dimension_numbers<[1], [0], [0], [1], [0, 0, 1, 1], [], []>} : vector<2x32xbf16>, vector<32x512xbf16>, vector<2x512xf32> -> vector<2x512xf32>
    %464 = arith.addf %462, %463 : vector<2x512xf32>
    %465 = vector.extract_strided_slice %464 {offsets = [0, 0], sizes = [2, 32], strides = [1, 1]} : vector<2x512xf32> to vector<2x32xf32>
    %cst_162 = arith.constant 5.000000e-01 : f32
    %466 = vector.broadcast %cst_162 : f32 to vector<2x32xf32>
    %467 = arith.mulf %466, %465 : vector<2x32xf32>
    %468 = math.tanh %467 : vector<2x32xf32>
    %cst_163 = arith.constant 5.000000e-01 : f32
    %469 = vector.broadcast %cst_163 : f32 to vector<2x32xf32>
    %470 = arith.mulf %469, %468 : vector<2x32xf32>
    %cst_164 = arith.constant 5.000000e-01 : f32
    %471 = vector.broadcast %cst_164 : f32 to vector<2x32xf32>
    %472 = arith.addf %470, %471 : vector<2x32xf32>
    %473 = vector.extract_strided_slice %464 {offsets = [0, 128], sizes = [2, 32], strides = [1, 1]} : vector<2x512xf32> to vector<2x32xf32>
    %cst_165 = arith.constant 5.000000e-01 : f32
    %474 = vector.broadcast %cst_165 : f32 to vector<2x32xf32>
    %475 = arith.mulf %474, %473 : vector<2x32xf32>
    %476 = math.tanh %475 : vector<2x32xf32>
    %cst_166 = arith.constant 5.000000e-01 : f32
    %477 = vector.broadcast %cst_166 : f32 to vector<2x32xf32>
    %478 = arith.mulf %477, %476 : vector<2x32xf32>
    %cst_167 = arith.constant 5.000000e-01 : f32
    %479 = vector.broadcast %cst_167 : f32 to vector<2x32xf32>
    %480 = arith.addf %478, %479 : vector<2x32xf32>
    %481 = vector.extract_strided_slice %464 {offsets = [0, 256], sizes = [2, 32], strides = [1, 1]} : vector<2x512xf32> to vector<2x32xf32>
    %482 = math.tanh %481 : vector<2x32xf32>
    %483 = vector.extract_strided_slice %464 {offsets = [0, 384], sizes = [2, 32], strides = [1, 1]} : vector<2x512xf32> to vector<2x32xf32>
    %cst_168 = arith.constant 5.000000e-01 : f32
    %484 = vector.broadcast %cst_168 : f32 to vector<2x32xf32>
    %485 = arith.mulf %484, %483 : vector<2x32xf32>
    %486 = math.tanh %485 : vector<2x32xf32>
    %cst_169 = arith.constant 5.000000e-01 : f32
    %487 = vector.broadcast %cst_169 : f32 to vector<2x32xf32>
    %488 = arith.mulf %487, %486 : vector<2x32xf32>
    %cst_170 = arith.constant 5.000000e-01 : f32
    %489 = vector.broadcast %cst_170 : f32 to vector<2x32xf32>
    %490 = arith.addf %488, %489 : vector<2x32xf32>
    %491 = arith.mulf %480, %457 : vector<2x32xf32>
    %492 = arith.mulf %472, %482 : vector<2x32xf32>
    %493 = arith.addf %491, %492 : vector<2x32xf32>
    %494 = math.tanh %493 : vector<2x32xf32>
    %495 = arith.mulf %490, %494 : vector<2x32xf32>
    %496 = arith.truncf %495 : vector<2x32xf32> to vector<2x32xbf16>
    %c8_171 = arith.constant 8 : index
    %c0_172 = arith.constant 0 : index
    %497 = vector.load %arg5[%c8_171, %c0_172] : memref<16x32xbf16, #tpu.memory_space<vmem>>, vector<2x32xbf16>
    tpu.vector_store %arg5[%c8_171, %c0_172], %496 {strides = array<i32>} : memref<16x32xbf16, #tpu.memory_space<vmem>>, vector<2x32xbf16>,
    %498 = vector.extract_strided_slice %314 {offsets = [10, 0], sizes = [2, 512], strides = [1, 1]} : vector<16x512xf32> to vector<2x512xf32>
    %cst_173 = arith.constant dense<0.000000e+00> : vector<2x512xf32>
    %499 = tpu.matmul %496, %315, %cst_173 {dimension_numbers = #tpu.dot_dimension_numbers<[1], [0], [0], [1], [0, 0, 1, 1], [], []>} : vector<2x32xbf16>, vector<32x512xbf16>, vector<2x512xf32> -> vector<2x512xf32>
    %500 = arith.addf %498, %499 : vector<2x512xf32>
    %501 = vector.extract_strided_slice %500 {offsets = [0, 0], sizes = [2, 32], strides = [1, 1]} : vector<2x512xf32> to vector<2x32xf32>
    %cst_174 = arith.constant 5.000000e-01 : f32
    %502 = vector.broadcast %cst_174 : f32 to vector<2x32xf32>
    %503 = arith.mulf %502, %501 : vector<2x32xf32>
    %504 = math.tanh %503 : vector<2x32xf32>
    %cst_175 = arith.constant 5.000000e-01 : f32
    %505 = vector.broadcast %cst_175 : f32 to vector<2x32xf32>
    %506 = arith.mulf %505, %504 : vector<2x32xf32>
    %cst_176 = arith.constant 5.000000e-01 : f32
    %507 = vector.broadcast %cst_176 : f32 to vector<2x32xf32>
    %508 = arith.addf %506, %507 : vector<2x32xf32>
    %509 = vector.extract_strided_slice %500 {offsets = [0, 128], sizes = [2, 32], strides = [1, 1]} : vector<2x512xf32> to vector<2x32xf32>
    %cst_177 = arith.constant 5.000000e-01 : f32
    %510 = vector.broadcast %cst_177 : f32 to vector<2x32xf32>
    %511 = arith.mulf %510, %509 : vector<2x32xf32>
    %512 = math.tanh %511 : vector<2x32xf32>
    %cst_178 = arith.constant 5.000000e-01 : f32
    %513 = vector.broadcast %cst_178 : f32 to vector<2x32xf32>
    %514 = arith.mulf %513, %512 : vector<2x32xf32>
    %cst_179 = arith.constant 5.000000e-01 : f32
    %515 = vector.broadcast %cst_179 : f32 to vector<2x32xf32>
    %516 = arith.addf %514, %515 : vector<2x32xf32>
    %517 = vector.extract_strided_slice %500 {offsets = [0, 256], sizes = [2, 32], strides = [1, 1]} : vector<2x512xf32> to vector<2x32xf32>
    %518 = math.tanh %517 : vector<2x32xf32>
    %519 = vector.extract_strided_slice %500 {offsets = [0, 384], sizes = [2, 32], strides = [1, 1]} : vector<2x512xf32> to vector<2x32xf32>
    %cst_180 = arith.constant 5.000000e-01 : f32
    %520 = vector.broadcast %cst_180 : f32 to vector<2x32xf32>
    %521 = arith.mulf %520, %519 : vector<2x32xf32>
    %522 = math.tanh %521 : vector<2x32xf32>
    %cst_181 = arith.constant 5.000000e-01 : f32
    %523 = vector.broadcast %cst_181 : f32 to vector<2x32xf32>
    %524 = arith.mulf %523, %522 : vector<2x32xf32>
    %cst_182 = arith.constant 5.000000e-01 : f32
    %525 = vector.broadcast %cst_182 : f32 to vector<2x32xf32>
    %526 = arith.addf %524, %525 : vector<2x32xf32>
    %527 = arith.mulf %516, %493 : vector<2x32xf32>
    %528 = arith.mulf %508, %518 : vector<2x32xf32>
    %529 = arith.addf %527, %528 : vector<2x32xf32>
    %530 = math.tanh %529 : vector<2x32xf32>
    %531 = arith.mulf %526, %530 : vector<2x32xf32>
    %532 = arith.truncf %531 : vector<2x32xf32> to vector<2x32xbf16>
    %c10_183 = arith.constant 10 : index
    %c0_184 = arith.constant 0 : index
    %533 = vector.load %arg5[%c10_183, %c0_184] : memref<16x32xbf16, #tpu.memory_space<vmem>>, vector<2x32xbf16>
    tpu.vector_store %arg5[%c10_183, %c0_184], %532 {strides = array<i32>} : memref<16x32xbf16, #tpu.memory_space<vmem>>, vector<2x32xbf16>,
    %534 = vector.extract_strided_slice %314 {offsets = [12, 0], sizes = [2, 512], strides = [1, 1]} : vector<16x512xf32> to vector<2x512xf32>
    %cst_185 = arith.constant dense<0.000000e+00> : vector<2x512xf32>
    %535 = tpu.matmul %532, %315, %cst_185 {dimension_numbers = #tpu.dot_dimension_numbers<[1], [0], [0], [1], [0, 0, 1, 1], [], []>} : vector<2x32xbf16>, vector<32x512xbf16>, vector<2x512xf32> -> vector<2x512xf32>
    %536 = arith.addf %534, %535 : vector<2x512xf32>
    %537 = vector.extract_strided_slice %536 {offsets = [0, 0], sizes = [2, 32], strides = [1, 1]} : vector<2x512xf32> to vector<2x32xf32>
    %cst_186 = arith.constant 5.000000e-01 : f32
    %538 = vector.broadcast %cst_186 : f32 to vector<2x32xf32>
    %539 = arith.mulf %538, %537 : vector<2x32xf32>
    %540 = math.tanh %539 : vector<2x32xf32>
    %cst_187 = arith.constant 5.000000e-01 : f32
    %541 = vector.broadcast %cst_187 : f32 to vector<2x32xf32>
    %542 = arith.mulf %541, %540 : vector<2x32xf32>
    %cst_188 = arith.constant 5.000000e-01 : f32
    %543 = vector.broadcast %cst_188 : f32 to vector<2x32xf32>
    %544 = arith.addf %542, %543 : vector<2x32xf32>
    %545 = vector.extract_strided_slice %536 {offsets = [0, 128], sizes = [2, 32], strides = [1, 1]} : vector<2x512xf32> to vector<2x32xf32>
    %cst_189 = arith.constant 5.000000e-01 : f32
    %546 = vector.broadcast %cst_189 : f32 to vector<2x32xf32>
    %547 = arith.mulf %546, %545 : vector<2x32xf32>
    %548 = math.tanh %547 : vector<2x32xf32>
    %cst_190 = arith.constant 5.000000e-01 : f32
    %549 = vector.broadcast %cst_190 : f32 to vector<2x32xf32>
    %550 = arith.mulf %549, %548 : vector<2x32xf32>
    %cst_191 = arith.constant 5.000000e-01 : f32
    %551 = vector.broadcast %cst_191 : f32 to vector<2x32xf32>
    %552 = arith.addf %550, %551 : vector<2x32xf32>
    %553 = vector.extract_strided_slice %536 {offsets = [0, 256], sizes = [2, 32], strides = [1, 1]} : vector<2x512xf32> to vector<2x32xf32>
    %554 = math.tanh %553 : vector<2x32xf32>
    %555 = vector.extract_strided_slice %536 {offsets = [0, 384], sizes = [2, 32], strides = [1, 1]} : vector<2x512xf32> to vector<2x32xf32>
    %cst_192 = arith.constant 5.000000e-01 : f32
    %556 = vector.broadcast %cst_192 : f32 to vector<2x32xf32>
    %557 = arith.mulf %556, %555 : vector<2x32xf32>
    %558 = math.tanh %557 : vector<2x32xf32>
    %cst_193 = arith.constant 5.000000e-01 : f32
    %559 = vector.broadcast %cst_193 : f32 to vector<2x32xf32>
    %560 = arith.mulf %559, %558 : vector<2x32xf32>
    %cst_194 = arith.constant 5.000000e-01 : f32
    %561 = vector.broadcast %cst_194 : f32 to vector<2x32xf32>
    %562 = arith.addf %560, %561 : vector<2x32xf32>
    %563 = arith.mulf %552, %529 : vector<2x32xf32>
    %564 = arith.mulf %544, %554 : vector<2x32xf32>
    %565 = arith.addf %563, %564 : vector<2x32xf32>
    %566 = math.tanh %565 : vector<2x32xf32>
    %567 = arith.mulf %562, %566 : vector<2x32xf32>
    %568 = arith.truncf %567 : vector<2x32xf32> to vector<2x32xbf16>
    %c12_195 = arith.constant 12 : index
    %c0_196 = arith.constant 0 : index
    %569 = vector.load %arg5[%c12_195, %c0_196] : memref<16x32xbf16, #tpu.memory_space<vmem>>, vector<2x32xbf16>
    tpu.vector_store %arg5[%c12_195, %c0_196], %568 {strides = array<i32>} : memref<16x32xbf16, #tpu.memory_space<vmem>>, vector<2x32xbf16>,
    %570 = vector.extract_strided_slice %314 {offsets = [14, 0], sizes = [2, 512], strides = [1, 1]} : vector<16x512xf32> to vector<2x512xf32>
    %cst_197 = arith.constant dense<0.000000e+00> : vector<2x512xf32>
    %571 = tpu.matmul %568, %315, %cst_197 {dimension_numbers = #tpu.dot_dimension_numbers<[1], [0], [0], [1], [0, 0, 1, 1], [], []>} : vector<2x32xbf16>, vector<32x512xbf16>, vector<2x512xf32> -> vector<2x512xf32>
    %572 = arith.addf %570, %571 : vector<2x512xf32>
    %573 = vector.extract_strided_slice %572 {offsets = [0, 0], sizes = [2, 32], strides = [1, 1]} : vector<2x512xf32> to vector<2x32xf32>
    %cst_198 = arith.constant 5.000000e-01 : f32
    %574 = vector.broadcast %cst_198 : f32 to vector<2x32xf32>
    %575 = arith.mulf %574, %573 : vector<2x32xf32>
    %576 = math.tanh %575 : vector<2x32xf32>
    %cst_199 = arith.constant 5.000000e-01 : f32
    %577 = vector.broadcast %cst_199 : f32 to vector<2x32xf32>
    %578 = arith.mulf %577, %576 : vector<2x32xf32>
    %cst_200 = arith.constant 5.000000e-01 : f32
    %579 = vector.broadcast %cst_200 : f32 to vector<2x32xf32>
    %580 = arith.addf %578, %579 : vector<2x32xf32>
    %581 = vector.extract_strided_slice %572 {offsets = [0, 128], sizes = [2, 32], strides = [1, 1]} : vector<2x512xf32> to vector<2x32xf32>
    %cst_201 = arith.constant 5.000000e-01 : f32
    %582 = vector.broadcast %cst_201 : f32 to vector<2x32xf32>
    %583 = arith.mulf %582, %581 : vector<2x32xf32>
    %584 = math.tanh %583 : vector<2x32xf32>
    %cst_202 = arith.constant 5.000000e-01 : f32
    %585 = vector.broadcast %cst_202 : f32 to vector<2x32xf32>
    %586 = arith.mulf %585, %584 : vector<2x32xf32>
    %cst_203 = arith.constant 5.000000e-01 : f32
    %587 = vector.broadcast %cst_203 : f32 to vector<2x32xf32>
    %588 = arith.addf %586, %587 : vector<2x32xf32>
    %589 = vector.extract_strided_slice %572 {offsets = [0, 256], sizes = [2, 32], strides = [1, 1]} : vector<2x512xf32> to vector<2x32xf32>
    %590 = math.tanh %589 : vector<2x32xf32>
    %591 = vector.extract_strided_slice %572 {offsets = [0, 384], sizes = [2, 32], strides = [1, 1]} : vector<2x512xf32> to vector<2x32xf32>
    %cst_204 = arith.constant 5.000000e-01 : f32
    %592 = vector.broadcast %cst_204 : f32 to vector<2x32xf32>
    %593 = arith.mulf %592, %591 : vector<2x32xf32>
    %594 = math.tanh %593 : vector<2x32xf32>
    %cst_205 = arith.constant 5.000000e-01 : f32
    %595 = vector.broadcast %cst_205 : f32 to vector<2x32xf32>
    %596 = arith.mulf %595, %594 : vector<2x32xf32>
    %cst_206 = arith.constant 5.000000e-01 : f32
    %597 = vector.broadcast %cst_206 : f32 to vector<2x32xf32>
    %598 = arith.addf %596, %597 : vector<2x32xf32>
    %599 = arith.mulf %588, %565 : vector<2x32xf32>
    %600 = arith.mulf %580, %590 : vector<2x32xf32>
    %601 = arith.addf %599, %600 : vector<2x32xf32>
    %602 = math.tanh %601 : vector<2x32xf32>
    %603 = arith.mulf %598, %602 : vector<2x32xf32>
    %604 = arith.truncf %603 : vector<2x32xf32> to vector<2x32xbf16>
    %c14_207 = arith.constant 14 : index
    %c0_208 = arith.constant 0 : index
    %605 = vector.load %arg5[%c14_207, %c0_208] : memref<16x32xbf16, #tpu.memory_space<vmem>>, vector<2x32xbf16>
    tpu.vector_store %arg5[%c14_207, %c0_208], %604 {strides = array<i32>} : memref<16x32xbf16, #tpu.memory_space<vmem>>, vector<2x32xbf16>,
    %c288 = arith.constant 288 : index
    %c0_209 = arith.constant 0 : index
    %606 = vector.load %arg2[%c288, %c0_209] : memref<640x512xbf16, #tpu.memory_space<vmem>>, vector<32x128xbf16>
    %cst_210 = arith.constant dense<0.000000e+00> : vector<2x128xf32>
    %607 = tpu.matmul %604, %606, %cst_210 {dimension_numbers = #tpu.dot_dimension_numbers<[1], [0], [0], [1], [0, 0, 1, 1], [], []>} : vector<2x32xbf16>, vector<32x128xbf16>, vector<2x128xf32> -> vector<2x128xf32>
    %608 = arith.addf %308, %607 : vector<2x128xf32>
    %c0_211 = arith.constant 0 : index
    %c0_212 = arith.constant 0 : index
    %609 = vector.load %arg5[%c0_211, %c0_212] : memref<16x32xbf16, #tpu.memory_space<vmem>>, vector<16x32xbf16>
    %c128 = arith.constant 128 : index
    %c0_213 = arith.constant 0 : index
    %610 = vector.load %arg2[%c128, %c0_213] : memref<640x512xbf16, #tpu.memory_space<vmem>>, vector<32x512xbf16>
    %cst_214 = arith.constant dense<0.000000e+00> : vector<16x512xf32>
    %611 = tpu.matmul %609, %610, %cst_214 {dimension_numbers = #tpu.dot_dimension_numbers<[1], [0], [0], [1], [0, 0, 1, 1], [], []>} : vector<16x32xbf16>, vector<32x512xbf16>, vector<16x512xf32> -> vector<16x512xf32>
    %c2_215 = arith.constant 2 : index
    %c0_216 = arith.constant 0 : index
    %612 = vector.load %arg3[%c2_215, %c0_216] : memref<8x512xf32, #tpu.memory_space<vmem>>, vector<1x512xf32>
    %613 = vector.broadcast %612 : vector<1x512xf32> to vector<16x512xf32>
    %614 = arith.addf %611, %613 : vector<16x512xf32>
    %c160 = arith.constant 160 : index
    %c0_217 = arith.constant 0 : index
    %615 = vector.load %arg2[%c160, %c0_217] : memref<640x512xbf16, #tpu.memory_space<vmem>>, vector<32x512xbf16>
    %cst_218 = arith.constant 0.000000e+00 : f32
    %616 = vector.broadcast %cst_218 : f32 to vector<2x32xf32>
    %cst_219 = arith.constant 0.000000e+00 : bf16
    %617 = vector.broadcast %cst_219 : bf16 to vector<2x32xbf16>
    %618 = vector.extract_strided_slice %614 {offsets = [0, 0], sizes = [2, 512], strides = [1, 1]} : vector<16x512xf32> to vector<2x512xf32>
    %cst_220 = arith.constant dense<0.000000e+00> : vector<2x512xf32>
    %619 = tpu.matmul %617, %615, %cst_220 {dimension_numbers = #tpu.dot_dimension_numbers<[1], [0], [0], [1], [0, 0, 1, 1], [], []>} : vector<2x32xbf16>, vector<32x512xbf16>, vector<2x512xf32> -> vector<2x512xf32>
    %620 = arith.addf %618, %619 : vector<2x512xf32>
    %621 = vector.extract_strided_slice %620 {offsets = [0, 0], sizes = [2, 32], strides = [1, 1]} : vector<2x512xf32> to vector<2x32xf32>
    %cst_221 = arith.constant 5.000000e-01 : f32
    %622 = vector.broadcast %cst_221 : f32 to vector<2x32xf32>
    %623 = arith.mulf %622, %621 : vector<2x32xf32>
    %624 = math.tanh %623 : vector<2x32xf32>
    %cst_222 = arith.constant 5.000000e-01 : f32
    %625 = vector.broadcast %cst_222 : f32 to vector<2x32xf32>
    %626 = arith.mulf %625, %624 : vector<2x32xf32>
    %cst_223 = arith.constant 5.000000e-01 : f32
    %627 = vector.broadcast %cst_223 : f32 to vector<2x32xf32>
    %628 = arith.addf %626, %627 : vector<2x32xf32>
    %629 = vector.extract_strided_slice %620 {offsets = [0, 128], sizes = [2, 32], strides = [1, 1]} : vector<2x512xf32> to vector<2x32xf32>
    %cst_224 = arith.constant 5.000000e-01 : f32
    %630 = vector.broadcast %cst_224 : f32 to vector<2x32xf32>
    %631 = arith.mulf %630, %629 : vector<2x32xf32>
    %632 = math.tanh %631 : vector<2x32xf32>
    %cst_225 = arith.constant 5.000000e-01 : f32
    %633 = vector.broadcast %cst_225 : f32 to vector<2x32xf32>
    %634 = arith.mulf %633, %632 : vector<2x32xf32>
    %cst_226 = arith.constant 5.000000e-01 : f32
    %635 = vector.broadcast %cst_226 : f32 to vector<2x32xf32>
    %636 = arith.addf %634, %635 : vector<2x32xf32>
    %637 = vector.extract_strided_slice %620 {offsets = [0, 256], sizes = [2, 32], strides = [1, 1]} : vector<2x512xf32> to vector<2x32xf32>
    %638 = math.tanh %637 : vector<2x32xf32>
    %639 = vector.extract_strided_slice %620 {offsets = [0, 384], sizes = [2, 32], strides = [1, 1]} : vector<2x512xf32> to vector<2x32xf32>
    %cst_227 = arith.constant 5.000000e-01 : f32
    %640 = vector.broadcast %cst_227 : f32 to vector<2x32xf32>
    %641 = arith.mulf %640, %639 : vector<2x32xf32>
    %642 = math.tanh %641 : vector<2x32xf32>
    %cst_228 = arith.constant 5.000000e-01 : f32
    %643 = vector.broadcast %cst_228 : f32 to vector<2x32xf32>
    %644 = arith.mulf %643, %642 : vector<2x32xf32>
    %cst_229 = arith.constant 5.000000e-01 : f32
    %645 = vector.broadcast %cst_229 : f32 to vector<2x32xf32>
    %646 = arith.addf %644, %645 : vector<2x32xf32>
    %647 = arith.mulf %636, %616 : vector<2x32xf32>
    %648 = arith.mulf %628, %638 : vector<2x32xf32>
    %649 = arith.addf %647, %648 : vector<2x32xf32>
    %650 = math.tanh %649 : vector<2x32xf32>
    %651 = arith.mulf %646, %650 : vector<2x32xf32>
    %652 = arith.truncf %651 : vector<2x32xf32> to vector<2x32xbf16>
    %c0_230 = arith.constant 0 : index
    %c0_231 = arith.constant 0 : index
    %653 = vector.load %arg5[%c0_230, %c0_231] : memref<16x32xbf16, #tpu.memory_space<vmem>>, vector<2x32xbf16>
    tpu.vector_store %arg5[%c0_230, %c0_231], %652 {strides = array<i32>} : memref<16x32xbf16, #tpu.memory_space<vmem>>, vector<2x32xbf16>,
    %654 = vector.extract_strided_slice %614 {offsets = [2, 0], sizes = [2, 512], strides = [1, 1]} : vector<16x512xf32> to vector<2x512xf32>
    %cst_232 = arith.constant dense<0.000000e+00> : vector<2x512xf32>
    %655 = tpu.matmul %652, %615, %cst_232 {dimension_numbers = #tpu.dot_dimension_numbers<[1], [0], [0], [1], [0, 0, 1, 1], [], []>} : vector<2x32xbf16>, vector<32x512xbf16>, vector<2x512xf32> -> vector<2x512xf32>
    %656 = arith.addf %654, %655 : vector<2x512xf32>
    %657 = vector.extract_strided_slice %656 {offsets = [0, 0], sizes = [2, 32], strides = [1, 1]} : vector<2x512xf32> to vector<2x32xf32>
    %cst_233 = arith.constant 5.000000e-01 : f32
    %658 = vector.broadcast %cst_233 : f32 to vector<2x32xf32>
    %659 = arith.mulf %658, %657 : vector<2x32xf32>
    %660 = math.tanh %659 : vector<2x32xf32>
    %cst_234 = arith.constant 5.000000e-01 : f32
    %661 = vector.broadcast %cst_234 : f32 to vector<2x32xf32>
    %662 = arith.mulf %661, %660 : vector<2x32xf32>
    %cst_235 = arith.constant 5.000000e-01 : f32
    %663 = vector.broadcast %cst_235 : f32 to vector<2x32xf32>
    %664 = arith.addf %662, %663 : vector<2x32xf32>
    %665 = vector.extract_strided_slice %656 {offsets = [0, 128], sizes = [2, 32], strides = [1, 1]} : vector<2x512xf32> to vector<2x32xf32>
    %cst_236 = arith.constant 5.000000e-01 : f32
    %666 = vector.broadcast %cst_236 : f32 to vector<2x32xf32>
    %667 = arith.mulf %666, %665 : vector<2x32xf32>
    %668 = math.tanh %667 : vector<2x32xf32>
    %cst_237 = arith.constant 5.000000e-01 : f32
    %669 = vector.broadcast %cst_237 : f32 to vector<2x32xf32>
    %670 = arith.mulf %669, %668 : vector<2x32xf32>
    %cst_238 = arith.constant 5.000000e-01 : f32
    %671 = vector.broadcast %cst_238 : f32 to vector<2x32xf32>
    %672 = arith.addf %670, %671 : vector<2x32xf32>
    %673 = vector.extract_strided_slice %656 {offsets = [0, 256], sizes = [2, 32], strides = [1, 1]} : vector<2x512xf32> to vector<2x32xf32>
    %674 = math.tanh %673 : vector<2x32xf32>
    %675 = vector.extract_strided_slice %656 {offsets = [0, 384], sizes = [2, 32], strides = [1, 1]} : vector<2x512xf32> to vector<2x32xf32>
    %cst_239 = arith.constant 5.000000e-01 : f32
    %676 = vector.broadcast %cst_239 : f32 to vector<2x32xf32>
    %677 = arith.mulf %676, %675 : vector<2x32xf32>
    %678 = math.tanh %677 : vector<2x32xf32>
    %cst_240 = arith.constant 5.000000e-01 : f32
    %679 = vector.broadcast %cst_240 : f32 to vector<2x32xf32>
    %680 = arith.mulf %679, %678 : vector<2x32xf32>
    %cst_241 = arith.constant 5.000000e-01 : f32
    %681 = vector.broadcast %cst_241 : f32 to vector<2x32xf32>
    %682 = arith.addf %680, %681 : vector<2x32xf32>
    %683 = arith.mulf %672, %649 : vector<2x32xf32>
    %684 = arith.mulf %664, %674 : vector<2x32xf32>
    %685 = arith.addf %683, %684 : vector<2x32xf32>
    %686 = math.tanh %685 : vector<2x32xf32>
    %687 = arith.mulf %682, %686 : vector<2x32xf32>
    %688 = arith.truncf %687 : vector<2x32xf32> to vector<2x32xbf16>
    %c2_242 = arith.constant 2 : index
    %c0_243 = arith.constant 0 : index
    %689 = vector.load %arg5[%c2_242, %c0_243] : memref<16x32xbf16, #tpu.memory_space<vmem>>, vector<2x32xbf16>
    tpu.vector_store %arg5[%c2_242, %c0_243], %688 {strides = array<i32>} : memref<16x32xbf16, #tpu.memory_space<vmem>>, vector<2x32xbf16>,
    %690 = vector.extract_strided_slice %614 {offsets = [4, 0], sizes = [2, 512], strides = [1, 1]} : vector<16x512xf32> to vector<2x512xf32>
    %cst_244 = arith.constant dense<0.000000e+00> : vector<2x512xf32>
    %691 = tpu.matmul %688, %615, %cst_244 {dimension_numbers = #tpu.dot_dimension_numbers<[1], [0], [0], [1], [0, 0, 1, 1], [], []>} : vector<2x32xbf16>, vector<32x512xbf16>, vector<2x512xf32> -> vector<2x512xf32>
    %692 = arith.addf %690, %691 : vector<2x512xf32>
    %693 = vector.extract_strided_slice %692 {offsets = [0, 0], sizes = [2, 32], strides = [1, 1]} : vector<2x512xf32> to vector<2x32xf32>
    %cst_245 = arith.constant 5.000000e-01 : f32
    %694 = vector.broadcast %cst_245 : f32 to vector<2x32xf32>
    %695 = arith.mulf %694, %693 : vector<2x32xf32>
    %696 = math.tanh %695 : vector<2x32xf32>
    %cst_246 = arith.constant 5.000000e-01 : f32
    %697 = vector.broadcast %cst_246 : f32 to vector<2x32xf32>
    %698 = arith.mulf %697, %696 : vector<2x32xf32>
    %cst_247 = arith.constant 5.000000e-01 : f32
    %699 = vector.broadcast %cst_247 : f32 to vector<2x32xf32>
    %700 = arith.addf %698, %699 : vector<2x32xf32>
    %701 = vector.extract_strided_slice %692 {offsets = [0, 128], sizes = [2, 32], strides = [1, 1]} : vector<2x512xf32> to vector<2x32xf32>
    %cst_248 = arith.constant 5.000000e-01 : f32
    %702 = vector.broadcast %cst_248 : f32 to vector<2x32xf32>
    %703 = arith.mulf %702, %701 : vector<2x32xf32>
    %704 = math.tanh %703 : vector<2x32xf32>
    %cst_249 = arith.constant 5.000000e-01 : f32
    %705 = vector.broadcast %cst_249 : f32 to vector<2x32xf32>
    %706 = arith.mulf %705, %704 : vector<2x32xf32>
    %cst_250 = arith.constant 5.000000e-01 : f32
    %707 = vector.broadcast %cst_250 : f32 to vector<2x32xf32>
    %708 = arith.addf %706, %707 : vector<2x32xf32>
    %709 = vector.extract_strided_slice %692 {offsets = [0, 256], sizes = [2, 32], strides = [1, 1]} : vector<2x512xf32> to vector<2x32xf32>
    %710 = math.tanh %709 : vector<2x32xf32>
    %711 = vector.extract_strided_slice %692 {offsets = [0, 384], sizes = [2, 32], strides = [1, 1]} : vector<2x512xf32> to vector<2x32xf32>
    %cst_251 = arith.constant 5.000000e-01 : f32
    %712 = vector.broadcast %cst_251 : f32 to vector<2x32xf32>
    %713 = arith.mulf %712, %711 : vector<2x32xf32>
    %714 = math.tanh %713 : vector<2x32xf32>
    %cst_252 = arith.constant 5.000000e-01 : f32
    %715 = vector.broadcast %cst_252 : f32 to vector<2x32xf32>
    %716 = arith.mulf %715, %714 : vector<2x32xf32>
    %cst_253 = arith.constant 5.000000e-01 : f32
    %717 = vector.broadcast %cst_253 : f32 to vector<2x32xf32>
    %718 = arith.addf %716, %717 : vector<2x32xf32>
    %719 = arith.mulf %708, %685 : vector<2x32xf32>
    %720 = arith.mulf %700, %710 : vector<2x32xf32>
    %721 = arith.addf %719, %720 : vector<2x32xf32>
    %722 = math.tanh %721 : vector<2x32xf32>
    %723 = arith.mulf %718, %722 : vector<2x32xf32>
    %724 = arith.truncf %723 : vector<2x32xf32> to vector<2x32xbf16>
    %c4_254 = arith.constant 4 : index
    %c0_255 = arith.constant 0 : index
    %725 = vector.load %arg5[%c4_254, %c0_255] : memref<16x32xbf16, #tpu.memory_space<vmem>>, vector<2x32xbf16>
    tpu.vector_store %arg5[%c4_254, %c0_255], %724 {strides = array<i32>} : memref<16x32xbf16, #tpu.memory_space<vmem>>, vector<2x32xbf16>,
    %726 = vector.extract_strided_slice %614 {offsets = [6, 0], sizes = [2, 512], strides = [1, 1]} : vector<16x512xf32> to vector<2x512xf32>
    %cst_256 = arith.constant dense<0.000000e+00> : vector<2x512xf32>
    %727 = tpu.matmul %724, %615, %cst_256 {dimension_numbers = #tpu.dot_dimension_numbers<[1], [0], [0], [1], [0, 0, 1, 1], [], []>} : vector<2x32xbf16>, vector<32x512xbf16>, vector<2x512xf32> -> vector<2x512xf32>
    %728 = arith.addf %726, %727 : vector<2x512xf32>
    %729 = vector.extract_strided_slice %728 {offsets = [0, 0], sizes = [2, 32], strides = [1, 1]} : vector<2x512xf32> to vector<2x32xf32>
    %cst_257 = arith.constant 5.000000e-01 : f32
    %730 = vector.broadcast %cst_257 : f32 to vector<2x32xf32>
    %731 = arith.mulf %730, %729 : vector<2x32xf32>
    %732 = math.tanh %731 : vector<2x32xf32>
    %cst_258 = arith.constant 5.000000e-01 : f32
    %733 = vector.broadcast %cst_258 : f32 to vector<2x32xf32>
    %734 = arith.mulf %733, %732 : vector<2x32xf32>
    %cst_259 = arith.constant 5.000000e-01 : f32
    %735 = vector.broadcast %cst_259 : f32 to vector<2x32xf32>
    %736 = arith.addf %734, %735 : vector<2x32xf32>
    %737 = vector.extract_strided_slice %728 {offsets = [0, 128], sizes = [2, 32], strides = [1, 1]} : vector<2x512xf32> to vector<2x32xf32>
    %cst_260 = arith.constant 5.000000e-01 : f32
    %738 = vector.broadcast %cst_260 : f32 to vector<2x32xf32>
    %739 = arith.mulf %738, %737 : vector<2x32xf32>
    %740 = math.tanh %739 : vector<2x32xf32>
    %cst_261 = arith.constant 5.000000e-01 : f32
    %741 = vector.broadcast %cst_261 : f32 to vector<2x32xf32>
    %742 = arith.mulf %741, %740 : vector<2x32xf32>
    %cst_262 = arith.constant 5.000000e-01 : f32
    %743 = vector.broadcast %cst_262 : f32 to vector<2x32xf32>
    %744 = arith.addf %742, %743 : vector<2x32xf32>
    %745 = vector.extract_strided_slice %728 {offsets = [0, 256], sizes = [2, 32], strides = [1, 1]} : vector<2x512xf32> to vector<2x32xf32>
    %746 = math.tanh %745 : vector<2x32xf32>
    %747 = vector.extract_strided_slice %728 {offsets = [0, 384], sizes = [2, 32], strides = [1, 1]} : vector<2x512xf32> to vector<2x32xf32>
    %cst_263 = arith.constant 5.000000e-01 : f32
    %748 = vector.broadcast %cst_263 : f32 to vector<2x32xf32>
    %749 = arith.mulf %748, %747 : vector<2x32xf32>
    %750 = math.tanh %749 : vector<2x32xf32>
    %cst_264 = arith.constant 5.000000e-01 : f32
    %751 = vector.broadcast %cst_264 : f32 to vector<2x32xf32>
    %752 = arith.mulf %751, %750 : vector<2x32xf32>
    %cst_265 = arith.constant 5.000000e-01 : f32
    %753 = vector.broadcast %cst_265 : f32 to vector<2x32xf32>
    %754 = arith.addf %752, %753 : vector<2x32xf32>
    %755 = arith.mulf %744, %721 : vector<2x32xf32>
    %756 = arith.mulf %736, %746 : vector<2x32xf32>
    %757 = arith.addf %755, %756 : vector<2x32xf32>
    %758 = math.tanh %757 : vector<2x32xf32>
    %759 = arith.mulf %754, %758 : vector<2x32xf32>
    %760 = arith.truncf %759 : vector<2x32xf32> to vector<2x32xbf16>
    %c6_266 = arith.constant 6 : index
    %c0_267 = arith.constant 0 : index
    %761 = vector.load %arg5[%c6_266, %c0_267] : memref<16x32xbf16, #tpu.memory_space<vmem>>, vector<2x32xbf16>
    tpu.vector_store %arg5[%c6_266, %c0_267], %760 {strides = array<i32>} : memref<16x32xbf16, #tpu.memory_space<vmem>>, vector<2x32xbf16>,
    %762 = vector.extract_strided_slice %614 {offsets = [8, 0], sizes = [2, 512], strides = [1, 1]} : vector<16x512xf32> to vector<2x512xf32>
    %cst_268 = arith.constant dense<0.000000e+00> : vector<2x512xf32>
    %763 = tpu.matmul %760, %615, %cst_268 {dimension_numbers = #tpu.dot_dimension_numbers<[1], [0], [0], [1], [0, 0, 1, 1], [], []>} : vector<2x32xbf16>, vector<32x512xbf16>, vector<2x512xf32> -> vector<2x512xf32>
    %764 = arith.addf %762, %763 : vector<2x512xf32>
    %765 = vector.extract_strided_slice %764 {offsets = [0, 0], sizes = [2, 32], strides = [1, 1]} : vector<2x512xf32> to vector<2x32xf32>
    %cst_269 = arith.constant 5.000000e-01 : f32
    %766 = vector.broadcast %cst_269 : f32 to vector<2x32xf32>
    %767 = arith.mulf %766, %765 : vector<2x32xf32>
    %768 = math.tanh %767 : vector<2x32xf32>
    %cst_270 = arith.constant 5.000000e-01 : f32
    %769 = vector.broadcast %cst_270 : f32 to vector<2x32xf32>
    %770 = arith.mulf %769, %768 : vector<2x32xf32>
    %cst_271 = arith.constant 5.000000e-01 : f32
    %771 = vector.broadcast %cst_271 : f32 to vector<2x32xf32>
    %772 = arith.addf %770, %771 : vector<2x32xf32>
    %773 = vector.extract_strided_slice %764 {offsets = [0, 128], sizes = [2, 32], strides = [1, 1]} : vector<2x512xf32> to vector<2x32xf32>
    %cst_272 = arith.constant 5.000000e-01 : f32
    %774 = vector.broadcast %cst_272 : f32 to vector<2x32xf32>
    %775 = arith.mulf %774, %773 : vector<2x32xf32>
    %776 = math.tanh %775 : vector<2x32xf32>
    %cst_273 = arith.constant 5.000000e-01 : f32
    %777 = vector.broadcast %cst_273 : f32 to vector<2x32xf32>
    %778 = arith.mulf %777, %776 : vector<2x32xf32>
    %cst_274 = arith.constant 5.000000e-01 : f32
    %779 = vector.broadcast %cst_274 : f32 to vector<2x32xf32>
    %780 = arith.addf %778, %779 : vector<2x32xf32>
    %781 = vector.extract_strided_slice %764 {offsets = [0, 256], sizes = [2, 32], strides = [1, 1]} : vector<2x512xf32> to vector<2x32xf32>
    %782 = math.tanh %781 : vector<2x32xf32>
    %783 = vector.extract_strided_slice %764 {offsets = [0, 384], sizes = [2, 32], strides = [1, 1]} : vector<2x512xf32> to vector<2x32xf32>
    %cst_275 = arith.constant 5.000000e-01 : f32
    %784 = vector.broadcast %cst_275 : f32 to vector<2x32xf32>
    %785 = arith.mulf %784, %783 : vector<2x32xf32>
    %786 = math.tanh %785 : vector<2x32xf32>
    %cst_276 = arith.constant 5.000000e-01 : f32
    %787 = vector.broadcast %cst_276 : f32 to vector<2x32xf32>
    %788 = arith.mulf %787, %786 : vector<2x32xf32>
    %cst_277 = arith.constant 5.000000e-01 : f32
    %789 = vector.broadcast %cst_277 : f32 to vector<2x32xf32>
    %790 = arith.addf %788, %789 : vector<2x32xf32>
    %791 = arith.mulf %780, %757 : vector<2x32xf32>
    %792 = arith.mulf %772, %782 : vector<2x32xf32>
    %793 = arith.addf %791, %792 : vector<2x32xf32>
    %794 = math.tanh %793 : vector<2x32xf32>
    %795 = arith.mulf %790, %794 : vector<2x32xf32>
    %796 = arith.truncf %795 : vector<2x32xf32> to vector<2x32xbf16>
    %c8_278 = arith.constant 8 : index
    %c0_279 = arith.constant 0 : index
    %797 = vector.load %arg5[%c8_278, %c0_279] : memref<16x32xbf16, #tpu.memory_space<vmem>>, vector<2x32xbf16>
    tpu.vector_store %arg5[%c8_278, %c0_279], %796 {strides = array<i32>} : memref<16x32xbf16, #tpu.memory_space<vmem>>, vector<2x32xbf16>,
    %798 = vector.extract_strided_slice %614 {offsets = [10, 0], sizes = [2, 512], strides = [1, 1]} : vector<16x512xf32> to vector<2x512xf32>
    %cst_280 = arith.constant dense<0.000000e+00> : vector<2x512xf32>
    %799 = tpu.matmul %796, %615, %cst_280 {dimension_numbers = #tpu.dot_dimension_numbers<[1], [0], [0], [1], [0, 0, 1, 1], [], []>} : vector<2x32xbf16>, vector<32x512xbf16>, vector<2x512xf32> -> vector<2x512xf32>
    %800 = arith.addf %798, %799 : vector<2x512xf32>
    %801 = vector.extract_strided_slice %800 {offsets = [0, 0], sizes = [2, 32], strides = [1, 1]} : vector<2x512xf32> to vector<2x32xf32>
    %cst_281 = arith.constant 5.000000e-01 : f32
    %802 = vector.broadcast %cst_281 : f32 to vector<2x32xf32>
    %803 = arith.mulf %802, %801 : vector<2x32xf32>
    %804 = math.tanh %803 : vector<2x32xf32>
    %cst_282 = arith.constant 5.000000e-01 : f32
    %805 = vector.broadcast %cst_282 : f32 to vector<2x32xf32>
    %806 = arith.mulf %805, %804 : vector<2x32xf32>
    %cst_283 = arith.constant 5.000000e-01 : f32
    %807 = vector.broadcast %cst_283 : f32 to vector<2x32xf32>
    %808 = arith.addf %806, %807 : vector<2x32xf32>
    %809 = vector.extract_strided_slice %800 {offsets = [0, 128], sizes = [2, 32], strides = [1, 1]} : vector<2x512xf32> to vector<2x32xf32>
    %cst_284 = arith.constant 5.000000e-01 : f32
    %810 = vector.broadcast %cst_284 : f32 to vector<2x32xf32>
    %811 = arith.mulf %810, %809 : vector<2x32xf32>
    %812 = math.tanh %811 : vector<2x32xf32>
    %cst_285 = arith.constant 5.000000e-01 : f32
    %813 = vector.broadcast %cst_285 : f32 to vector<2x32xf32>
    %814 = arith.mulf %813, %812 : vector<2x32xf32>
    %cst_286 = arith.constant 5.000000e-01 : f32
    %815 = vector.broadcast %cst_286 : f32 to vector<2x32xf32>
    %816 = arith.addf %814, %815 : vector<2x32xf32>
    %817 = vector.extract_strided_slice %800 {offsets = [0, 256], sizes = [2, 32], strides = [1, 1]} : vector<2x512xf32> to vector<2x32xf32>
    %818 = math.tanh %817 : vector<2x32xf32>
    %819 = vector.extract_strided_slice %800 {offsets = [0, 384], sizes = [2, 32], strides = [1, 1]} : vector<2x512xf32> to vector<2x32xf32>
    %cst_287 = arith.constant 5.000000e-01 : f32
    %820 = vector.broadcast %cst_287 : f32 to vector<2x32xf32>
    %821 = arith.mulf %820, %819 : vector<2x32xf32>
    %822 = math.tanh %821 : vector<2x32xf32>
    %cst_288 = arith.constant 5.000000e-01 : f32
    %823 = vector.broadcast %cst_288 : f32 to vector<2x32xf32>
    %824 = arith.mulf %823, %822 : vector<2x32xf32>
    %cst_289 = arith.constant 5.000000e-01 : f32
    %825 = vector.broadcast %cst_289 : f32 to vector<2x32xf32>
    %826 = arith.addf %824, %825 : vector<2x32xf32>
    %827 = arith.mulf %816, %793 : vector<2x32xf32>
    %828 = arith.mulf %808, %818 : vector<2x32xf32>
    %829 = arith.addf %827, %828 : vector<2x32xf32>
    %830 = math.tanh %829 : vector<2x32xf32>
    %831 = arith.mulf %826, %830 : vector<2x32xf32>
    %832 = arith.truncf %831 : vector<2x32xf32> to vector<2x32xbf16>
    %c10_290 = arith.constant 10 : index
    %c0_291 = arith.constant 0 : index
    %833 = vector.load %arg5[%c10_290, %c0_291] : memref<16x32xbf16, #tpu.memory_space<vmem>>, vector<2x32xbf16>
    tpu.vector_store %arg5[%c10_290, %c0_291], %832 {strides = array<i32>} : memref<16x32xbf16, #tpu.memory_space<vmem>>, vector<2x32xbf16>,
    %834 = vector.extract_strided_slice %614 {offsets = [12, 0], sizes = [2, 512], strides = [1, 1]} : vector<16x512xf32> to vector<2x512xf32>
    %cst_292 = arith.constant dense<0.000000e+00> : vector<2x512xf32>
    %835 = tpu.matmul %832, %615, %cst_292 {dimension_numbers = #tpu.dot_dimension_numbers<[1], [0], [0], [1], [0, 0, 1, 1], [], []>} : vector<2x32xbf16>, vector<32x512xbf16>, vector<2x512xf32> -> vector<2x512xf32>
    %836 = arith.addf %834, %835 : vector<2x512xf32>
    %837 = vector.extract_strided_slice %836 {offsets = [0, 0], sizes = [2, 32], strides = [1, 1]} : vector<2x512xf32> to vector<2x32xf32>
    %cst_293 = arith.constant 5.000000e-01 : f32
    %838 = vector.broadcast %cst_293 : f32 to vector<2x32xf32>
    %839 = arith.mulf %838, %837 : vector<2x32xf32>
    %840 = math.tanh %839 : vector<2x32xf32>
    %cst_294 = arith.constant 5.000000e-01 : f32
    %841 = vector.broadcast %cst_294 : f32 to vector<2x32xf32>
    %842 = arith.mulf %841, %840 : vector<2x32xf32>
    %cst_295 = arith.constant 5.000000e-01 : f32
    %843 = vector.broadcast %cst_295 : f32 to vector<2x32xf32>
    %844 = arith.addf %842, %843 : vector<2x32xf32>
    %845 = vector.extract_strided_slice %836 {offsets = [0, 128], sizes = [2, 32], strides = [1, 1]} : vector<2x512xf32> to vector<2x32xf32>
    %cst_296 = arith.constant 5.000000e-01 : f32
    %846 = vector.broadcast %cst_296 : f32 to vector<2x32xf32>
    %847 = arith.mulf %846, %845 : vector<2x32xf32>
    %848 = math.tanh %847 : vector<2x32xf32>
    %cst_297 = arith.constant 5.000000e-01 : f32
    %849 = vector.broadcast %cst_297 : f32 to vector<2x32xf32>
    %850 = arith.mulf %849, %848 : vector<2x32xf32>
    %cst_298 = arith.constant 5.000000e-01 : f32
    %851 = vector.broadcast %cst_298 : f32 to vector<2x32xf32>
    %852 = arith.addf %850, %851 : vector<2x32xf32>
    %853 = vector.extract_strided_slice %836 {offsets = [0, 256], sizes = [2, 32], strides = [1, 1]} : vector<2x512xf32> to vector<2x32xf32>
    %854 = math.tanh %853 : vector<2x32xf32>
    %855 = vector.extract_strided_slice %836 {offsets = [0, 384], sizes = [2, 32], strides = [1, 1]} : vector<2x512xf32> to vector<2x32xf32>
    %cst_299 = arith.constant 5.000000e-01 : f32
    %856 = vector.broadcast %cst_299 : f32 to vector<2x32xf32>
    %857 = arith.mulf %856, %855 : vector<2x32xf32>
    %858 = math.tanh %857 : vector<2x32xf32>
    %cst_300 = arith.constant 5.000000e-01 : f32
    %859 = vector.broadcast %cst_300 : f32 to vector<2x32xf32>
    %860 = arith.mulf %859, %858 : vector<2x32xf32>
    %cst_301 = arith.constant 5.000000e-01 : f32
    %861 = vector.broadcast %cst_301 : f32 to vector<2x32xf32>
    %862 = arith.addf %860, %861 : vector<2x32xf32>
    %863 = arith.mulf %852, %829 : vector<2x32xf32>
    %864 = arith.mulf %844, %854 : vector<2x32xf32>
    %865 = arith.addf %863, %864 : vector<2x32xf32>
    %866 = math.tanh %865 : vector<2x32xf32>
    %867 = arith.mulf %862, %866 : vector<2x32xf32>
    %868 = arith.truncf %867 : vector<2x32xf32> to vector<2x32xbf16>
    %c12_302 = arith.constant 12 : index
    %c0_303 = arith.constant 0 : index
    %869 = vector.load %arg5[%c12_302, %c0_303] : memref<16x32xbf16, #tpu.memory_space<vmem>>, vector<2x32xbf16>
    tpu.vector_store %arg5[%c12_302, %c0_303], %868 {strides = array<i32>} : memref<16x32xbf16, #tpu.memory_space<vmem>>, vector<2x32xbf16>,
    %870 = vector.extract_strided_slice %614 {offsets = [14, 0], sizes = [2, 512], strides = [1, 1]} : vector<16x512xf32> to vector<2x512xf32>
    %cst_304 = arith.constant dense<0.000000e+00> : vector<2x512xf32>
    %871 = tpu.matmul %868, %615, %cst_304 {dimension_numbers = #tpu.dot_dimension_numbers<[1], [0], [0], [1], [0, 0, 1, 1], [], []>} : vector<2x32xbf16>, vector<32x512xbf16>, vector<2x512xf32> -> vector<2x512xf32>
    %872 = arith.addf %870, %871 : vector<2x512xf32>
    %873 = vector.extract_strided_slice %872 {offsets = [0, 0], sizes = [2, 32], strides = [1, 1]} : vector<2x512xf32> to vector<2x32xf32>
    %cst_305 = arith.constant 5.000000e-01 : f32
    %874 = vector.broadcast %cst_305 : f32 to vector<2x32xf32>
    %875 = arith.mulf %874, %873 : vector<2x32xf32>
    %876 = math.tanh %875 : vector<2x32xf32>
    %cst_306 = arith.constant 5.000000e-01 : f32
    %877 = vector.broadcast %cst_306 : f32 to vector<2x32xf32>
    %878 = arith.mulf %877, %876 : vector<2x32xf32>
    %cst_307 = arith.constant 5.000000e-01 : f32
    %879 = vector.broadcast %cst_307 : f32 to vector<2x32xf32>
    %880 = arith.addf %878, %879 : vector<2x32xf32>
    %881 = vector.extract_strided_slice %872 {offsets = [0, 128], sizes = [2, 32], strides = [1, 1]} : vector<2x512xf32> to vector<2x32xf32>
    %cst_308 = arith.constant 5.000000e-01 : f32
    %882 = vector.broadcast %cst_308 : f32 to vector<2x32xf32>
    %883 = arith.mulf %882, %881 : vector<2x32xf32>
    %884 = math.tanh %883 : vector<2x32xf32>
    %cst_309 = arith.constant 5.000000e-01 : f32
    %885 = vector.broadcast %cst_309 : f32 to vector<2x32xf32>
    %886 = arith.mulf %885, %884 : vector<2x32xf32>
    %cst_310 = arith.constant 5.000000e-01 : f32
    %887 = vector.broadcast %cst_310 : f32 to vector<2x32xf32>
    %888 = arith.addf %886, %887 : vector<2x32xf32>
    %889 = vector.extract_strided_slice %872 {offsets = [0, 256], sizes = [2, 32], strides = [1, 1]} : vector<2x512xf32> to vector<2x32xf32>
    %890 = math.tanh %889 : vector<2x32xf32>
    %891 = vector.extract_strided_slice %872 {offsets = [0, 384], sizes = [2, 32], strides = [1, 1]} : vector<2x512xf32> to vector<2x32xf32>
    %cst_311 = arith.constant 5.000000e-01 : f32
    %892 = vector.broadcast %cst_311 : f32 to vector<2x32xf32>
    %893 = arith.mulf %892, %891 : vector<2x32xf32>
    %894 = math.tanh %893 : vector<2x32xf32>
    %cst_312 = arith.constant 5.000000e-01 : f32
    %895 = vector.broadcast %cst_312 : f32 to vector<2x32xf32>
    %896 = arith.mulf %895, %894 : vector<2x32xf32>
    %cst_313 = arith.constant 5.000000e-01 : f32
    %897 = vector.broadcast %cst_313 : f32 to vector<2x32xf32>
    %898 = arith.addf %896, %897 : vector<2x32xf32>
    %899 = arith.mulf %888, %865 : vector<2x32xf32>
    %900 = arith.mulf %880, %890 : vector<2x32xf32>
    %901 = arith.addf %899, %900 : vector<2x32xf32>
    %902 = math.tanh %901 : vector<2x32xf32>
    %903 = arith.mulf %898, %902 : vector<2x32xf32>
    %904 = arith.truncf %903 : vector<2x32xf32> to vector<2x32xbf16>
    %c14_314 = arith.constant 14 : index
    %c0_315 = arith.constant 0 : index
    %905 = vector.load %arg5[%c14_314, %c0_315] : memref<16x32xbf16, #tpu.memory_space<vmem>>, vector<2x32xbf16>
    tpu.vector_store %arg5[%c14_314, %c0_315], %904 {strides = array<i32>} : memref<16x32xbf16, #tpu.memory_space<vmem>>, vector<2x32xbf16>,
    %c320 = arith.constant 320 : index
    %c0_316 = arith.constant 0 : index
    %906 = vector.load %arg2[%c320, %c0_316] : memref<640x512xbf16, #tpu.memory_space<vmem>>, vector<32x128xbf16>
    %cst_317 = arith.constant dense<0.000000e+00> : vector<2x128xf32>
    %907 = tpu.matmul %904, %906, %cst_317 {dimension_numbers = #tpu.dot_dimension_numbers<[1], [0], [0], [1], [0, 0, 1, 1], [], []>} : vector<2x32xbf16>, vector<32x128xbf16>, vector<2x128xf32> -> vector<2x128xf32>
    %908 = arith.addf %608, %907 : vector<2x128xf32>
    %c0_318 = arith.constant 0 : index
    %c0_319 = arith.constant 0 : index
    %909 = vector.load %arg5[%c0_318, %c0_319] : memref<16x32xbf16, #tpu.memory_space<vmem>>, vector<16x32xbf16>
    %c192 = arith.constant 192 : index
    %c0_320 = arith.constant 0 : index
    %910 = vector.load %arg2[%c192, %c0_320] : memref<640x512xbf16, #tpu.memory_space<vmem>>, vector<32x512xbf16>
    %cst_321 = arith.constant dense<0.000000e+00> : vector<16x512xf32>
    %911 = tpu.matmul %909, %910, %cst_321 {dimension_numbers = #tpu.dot_dimension_numbers<[1], [0], [0], [1], [0, 0, 1, 1], [], []>} : vector<16x32xbf16>, vector<32x512xbf16>, vector<16x512xf32> -> vector<16x512xf32>
    %c3 = arith.constant 3 : index
    %c0_322 = arith.constant 0 : index
    %912 = vector.load %arg3[%c3, %c0_322] : memref<8x512xf32, #tpu.memory_space<vmem>>, vector<1x512xf32>
    %913 = vector.broadcast %912 : vector<1x512xf32> to vector<16x512xf32>
    %914 = arith.addf %911, %913 : vector<16x512xf32>
    %c224 = arith.constant 224 : index
    %c0_323 = arith.constant 0 : index
    %915 = vector.load %arg2[%c224, %c0_323] : memref<640x512xbf16, #tpu.memory_space<vmem>>, vector<32x512xbf16>
    %cst_324 = arith.constant 0.000000e+00 : f32
    %916 = vector.broadcast %cst_324 : f32 to vector<2x32xf32>
    %cst_325 = arith.constant 0.000000e+00 : bf16
    %917 = vector.broadcast %cst_325 : bf16 to vector<2x32xbf16>
    %918 = vector.extract_strided_slice %914 {offsets = [0, 0], sizes = [2, 512], strides = [1, 1]} : vector<16x512xf32> to vector<2x512xf32>
    %cst_326 = arith.constant dense<0.000000e+00> : vector<2x512xf32>
    %919 = tpu.matmul %917, %915, %cst_326 {dimension_numbers = #tpu.dot_dimension_numbers<[1], [0], [0], [1], [0, 0, 1, 1], [], []>} : vector<2x32xbf16>, vector<32x512xbf16>, vector<2x512xf32> -> vector<2x512xf32>
    %920 = arith.addf %918, %919 : vector<2x512xf32>
    %921 = vector.extract_strided_slice %920 {offsets = [0, 0], sizes = [2, 32], strides = [1, 1]} : vector<2x512xf32> to vector<2x32xf32>
    %cst_327 = arith.constant 5.000000e-01 : f32
    %922 = vector.broadcast %cst_327 : f32 to vector<2x32xf32>
    %923 = arith.mulf %922, %921 : vector<2x32xf32>
    %924 = math.tanh %923 : vector<2x32xf32>
    %cst_328 = arith.constant 5.000000e-01 : f32
    %925 = vector.broadcast %cst_328 : f32 to vector<2x32xf32>
    %926 = arith.mulf %925, %924 : vector<2x32xf32>
    %cst_329 = arith.constant 5.000000e-01 : f32
    %927 = vector.broadcast %cst_329 : f32 to vector<2x32xf32>
    %928 = arith.addf %926, %927 : vector<2x32xf32>
    %929 = vector.extract_strided_slice %920 {offsets = [0, 128], sizes = [2, 32], strides = [1, 1]} : vector<2x512xf32> to vector<2x32xf32>
    %cst_330 = arith.constant 5.000000e-01 : f32
    %930 = vector.broadcast %cst_330 : f32 to vector<2x32xf32>
    %931 = arith.mulf %930, %929 : vector<2x32xf32>
    %932 = math.tanh %931 : vector<2x32xf32>
    %cst_331 = arith.constant 5.000000e-01 : f32
    %933 = vector.broadcast %cst_331 : f32 to vector<2x32xf32>
    %934 = arith.mulf %933, %932 : vector<2x32xf32>
    %cst_332 = arith.constant 5.000000e-01 : f32
    %935 = vector.broadcast %cst_332 : f32 to vector<2x32xf32>
    %936 = arith.addf %934, %935 : vector<2x32xf32>
    %937 = vector.extract_strided_slice %920 {offsets = [0, 256], sizes = [2, 32], strides = [1, 1]} : vector<2x512xf32> to vector<2x32xf32>
    %938 = math.tanh %937 : vector<2x32xf32>
    %939 = vector.extract_strided_slice %920 {offsets = [0, 384], sizes = [2, 32], strides = [1, 1]} : vector<2x512xf32> to vector<2x32xf32>
    %cst_333 = arith.constant 5.000000e-01 : f32
    %940 = vector.broadcast %cst_333 : f32 to vector<2x32xf32>
    %941 = arith.mulf %940, %939 : vector<2x32xf32>
    %942 = math.tanh %941 : vector<2x32xf32>
    %cst_334 = arith.constant 5.000000e-01 : f32
    %943 = vector.broadcast %cst_334 : f32 to vector<2x32xf32>
    %944 = arith.mulf %943, %942 : vector<2x32xf32>
    %cst_335 = arith.constant 5.000000e-01 : f32
    %945 = vector.broadcast %cst_335 : f32 to vector<2x32xf32>
    %946 = arith.addf %944, %945 : vector<2x32xf32>
    %947 = arith.mulf %936, %916 : vector<2x32xf32>
    %948 = arith.mulf %928, %938 : vector<2x32xf32>
    %949 = arith.addf %947, %948 : vector<2x32xf32>
    %950 = math.tanh %949 : vector<2x32xf32>
    %951 = arith.mulf %946, %950 : vector<2x32xf32>
    %952 = arith.truncf %951 : vector<2x32xf32> to vector<2x32xbf16>
    %953 = vector.extract_strided_slice %914 {offsets = [2, 0], sizes = [2, 512], strides = [1, 1]} : vector<16x512xf32> to vector<2x512xf32>
    %cst_336 = arith.constant dense<0.000000e+00> : vector<2x512xf32>
    %954 = tpu.matmul %952, %915, %cst_336 {dimension_numbers = #tpu.dot_dimension_numbers<[1], [0], [0], [1], [0, 0, 1, 1], [], []>} : vector<2x32xbf16>, vector<32x512xbf16>, vector<2x512xf32> -> vector<2x512xf32>
    %955 = arith.addf %953, %954 : vector<2x512xf32>
    %956 = vector.extract_strided_slice %955 {offsets = [0, 0], sizes = [2, 32], strides = [1, 1]} : vector<2x512xf32> to vector<2x32xf32>
    %cst_337 = arith.constant 5.000000e-01 : f32
    %957 = vector.broadcast %cst_337 : f32 to vector<2x32xf32>
    %958 = arith.mulf %957, %956 : vector<2x32xf32>
    %959 = math.tanh %958 : vector<2x32xf32>
    %cst_338 = arith.constant 5.000000e-01 : f32
    %960 = vector.broadcast %cst_338 : f32 to vector<2x32xf32>
    %961 = arith.mulf %960, %959 : vector<2x32xf32>
    %cst_339 = arith.constant 5.000000e-01 : f32
    %962 = vector.broadcast %cst_339 : f32 to vector<2x32xf32>
    %963 = arith.addf %961, %962 : vector<2x32xf32>
    %964 = vector.extract_strided_slice %955 {offsets = [0, 128], sizes = [2, 32], strides = [1, 1]} : vector<2x512xf32> to vector<2x32xf32>
    %cst_340 = arith.constant 5.000000e-01 : f32
    %965 = vector.broadcast %cst_340 : f32 to vector<2x32xf32>
    %966 = arith.mulf %965, %964 : vector<2x32xf32>
    %967 = math.tanh %966 : vector<2x32xf32>
    %cst_341 = arith.constant 5.000000e-01 : f32
    %968 = vector.broadcast %cst_341 : f32 to vector<2x32xf32>
    %969 = arith.mulf %968, %967 : vector<2x32xf32>
    %cst_342 = arith.constant 5.000000e-01 : f32
    %970 = vector.broadcast %cst_342 : f32 to vector<2x32xf32>
    %971 = arith.addf %969, %970 : vector<2x32xf32>
    %972 = vector.extract_strided_slice %955 {offsets = [0, 256], sizes = [2, 32], strides = [1, 1]} : vector<2x512xf32> to vector<2x32xf32>
    %973 = math.tanh %972 : vector<2x32xf32>
    %974 = vector.extract_strided_slice %955 {offsets = [0, 384], sizes = [2, 32], strides = [1, 1]} : vector<2x512xf32> to vector<2x32xf32>
    %cst_343 = arith.constant 5.000000e-01 : f32
    %975 = vector.broadcast %cst_343 : f32 to vector<2x32xf32>
    %976 = arith.mulf %975, %974 : vector<2x32xf32>
    %977 = math.tanh %976 : vector<2x32xf32>
    %cst_344 = arith.constant 5.000000e-01 : f32
    %978 = vector.broadcast %cst_344 : f32 to vector<2x32xf32>
    %979 = arith.mulf %978, %977 : vector<2x32xf32>
    %cst_345 = arith.constant 5.000000e-01 : f32
    %980 = vector.broadcast %cst_345 : f32 to vector<2x32xf32>
    %981 = arith.addf %979, %980 : vector<2x32xf32>
    %982 = arith.mulf %971, %949 : vector<2x32xf32>
    %983 = arith.mulf %963, %973 : vector<2x32xf32>
    %984 = arith.addf %982, %983 : vector<2x32xf32>
    %985 = math.tanh %984 : vector<2x32xf32>
    %986 = arith.mulf %981, %985 : vector<2x32xf32>
    %987 = arith.truncf %986 : vector<2x32xf32> to vector<2x32xbf16>
    %988 = vector.extract_strided_slice %914 {offsets = [4, 0], sizes = [2, 512], strides = [1, 1]} : vector<16x512xf32> to vector<2x512xf32>
    %cst_346 = arith.constant dense<0.000000e+00> : vector<2x512xf32>
    %989 = tpu.matmul %987, %915, %cst_346 {dimension_numbers = #tpu.dot_dimension_numbers<[1], [0], [0], [1], [0, 0, 1, 1], [], []>} : vector<2x32xbf16>, vector<32x512xbf16>, vector<2x512xf32> -> vector<2x512xf32>
    %990 = arith.addf %988, %989 : vector<2x512xf32>
    %991 = vector.extract_strided_slice %990 {offsets = [0, 0], sizes = [2, 32], strides = [1, 1]} : vector<2x512xf32> to vector<2x32xf32>
    %cst_347 = arith.constant 5.000000e-01 : f32
    %992 = vector.broadcast %cst_347 : f32 to vector<2x32xf32>
    %993 = arith.mulf %992, %991 : vector<2x32xf32>
    %994 = math.tanh %993 : vector<2x32xf32>
    %cst_348 = arith.constant 5.000000e-01 : f32
    %995 = vector.broadcast %cst_348 : f32 to vector<2x32xf32>
    %996 = arith.mulf %995, %994 : vector<2x32xf32>
    %cst_349 = arith.constant 5.000000e-01 : f32
    %997 = vector.broadcast %cst_349 : f32 to vector<2x32xf32>
    %998 = arith.addf %996, %997 : vector<2x32xf32>
    %999 = vector.extract_strided_slice %990 {offsets = [0, 128], sizes = [2, 32], strides = [1, 1]} : vector<2x512xf32> to vector<2x32xf32>
    %cst_350 = arith.constant 5.000000e-01 : f32
    %1000 = vector.broadcast %cst_350 : f32 to vector<2x32xf32>
    %1001 = arith.mulf %1000, %999 : vector<2x32xf32>
    %1002 = math.tanh %1001 : vector<2x32xf32>
    %cst_351 = arith.constant 5.000000e-01 : f32
    %1003 = vector.broadcast %cst_351 : f32 to vector<2x32xf32>
    %1004 = arith.mulf %1003, %1002 : vector<2x32xf32>
    %cst_352 = arith.constant 5.000000e-01 : f32
    %1005 = vector.broadcast %cst_352 : f32 to vector<2x32xf32>
    %1006 = arith.addf %1004, %1005 : vector<2x32xf32>
    %1007 = vector.extract_strided_slice %990 {offsets = [0, 256], sizes = [2, 32], strides = [1, 1]} : vector<2x512xf32> to vector<2x32xf32>
    %1008 = math.tanh %1007 : vector<2x32xf32>
    %1009 = vector.extract_strided_slice %990 {offsets = [0, 384], sizes = [2, 32], strides = [1, 1]} : vector<2x512xf32> to vector<2x32xf32>
    %cst_353 = arith.constant 5.000000e-01 : f32
    %1010 = vector.broadcast %cst_353 : f32 to vector<2x32xf32>
    %1011 = arith.mulf %1010, %1009 : vector<2x32xf32>
    %1012 = math.tanh %1011 : vector<2x32xf32>
    %cst_354 = arith.constant 5.000000e-01 : f32
    %1013 = vector.broadcast %cst_354 : f32 to vector<2x32xf32>
    %1014 = arith.mulf %1013, %1012 : vector<2x32xf32>
    %cst_355 = arith.constant 5.000000e-01 : f32
    %1015 = vector.broadcast %cst_355 : f32 to vector<2x32xf32>
    %1016 = arith.addf %1014, %1015 : vector<2x32xf32>
    %1017 = arith.mulf %1006, %984 : vector<2x32xf32>
    %1018 = arith.mulf %998, %1008 : vector<2x32xf32>
    %1019 = arith.addf %1017, %1018 : vector<2x32xf32>
    %1020 = math.tanh %1019 : vector<2x32xf32>
    %1021 = arith.mulf %1016, %1020 : vector<2x32xf32>
    %1022 = arith.truncf %1021 : vector<2x32xf32> to vector<2x32xbf16>
    %1023 = vector.extract_strided_slice %914 {offsets = [6, 0], sizes = [2, 512], strides = [1, 1]} : vector<16x512xf32> to vector<2x512xf32>
    %cst_356 = arith.constant dense<0.000000e+00> : vector<2x512xf32>
    %1024 = tpu.matmul %1022, %915, %cst_356 {dimension_numbers = #tpu.dot_dimension_numbers<[1], [0], [0], [1], [0, 0, 1, 1], [], []>} : vector<2x32xbf16>, vector<32x512xbf16>, vector<2x512xf32> -> vector<2x512xf32>
    %1025 = arith.addf %1023, %1024 : vector<2x512xf32>
    %1026 = vector.extract_strided_slice %1025 {offsets = [0, 0], sizes = [2, 32], strides = [1, 1]} : vector<2x512xf32> to vector<2x32xf32>
    %cst_357 = arith.constant 5.000000e-01 : f32
    %1027 = vector.broadcast %cst_357 : f32 to vector<2x32xf32>
    %1028 = arith.mulf %1027, %1026 : vector<2x32xf32>
    %1029 = math.tanh %1028 : vector<2x32xf32>
    %cst_358 = arith.constant 5.000000e-01 : f32
    %1030 = vector.broadcast %cst_358 : f32 to vector<2x32xf32>
    %1031 = arith.mulf %1030, %1029 : vector<2x32xf32>
    %cst_359 = arith.constant 5.000000e-01 : f32
    %1032 = vector.broadcast %cst_359 : f32 to vector<2x32xf32>
    %1033 = arith.addf %1031, %1032 : vector<2x32xf32>
    %1034 = vector.extract_strided_slice %1025 {offsets = [0, 128], sizes = [2, 32], strides = [1, 1]} : vector<2x512xf32> to vector<2x32xf32>
    %cst_360 = arith.constant 5.000000e-01 : f32
    %1035 = vector.broadcast %cst_360 : f32 to vector<2x32xf32>
    %1036 = arith.mulf %1035, %1034 : vector<2x32xf32>
    %1037 = math.tanh %1036 : vector<2x32xf32>
    %cst_361 = arith.constant 5.000000e-01 : f32
    %1038 = vector.broadcast %cst_361 : f32 to vector<2x32xf32>
    %1039 = arith.mulf %1038, %1037 : vector<2x32xf32>
    %cst_362 = arith.constant 5.000000e-01 : f32
    %1040 = vector.broadcast %cst_362 : f32 to vector<2x32xf32>
    %1041 = arith.addf %1039, %1040 : vector<2x32xf32>
    %1042 = vector.extract_strided_slice %1025 {offsets = [0, 256], sizes = [2, 32], strides = [1, 1]} : vector<2x512xf32> to vector<2x32xf32>
    %1043 = math.tanh %1042 : vector<2x32xf32>
    %1044 = vector.extract_strided_slice %1025 {offsets = [0, 384], sizes = [2, 32], strides = [1, 1]} : vector<2x512xf32> to vector<2x32xf32>
    %cst_363 = arith.constant 5.000000e-01 : f32
    %1045 = vector.broadcast %cst_363 : f32 to vector<2x32xf32>
    %1046 = arith.mulf %1045, %1044 : vector<2x32xf32>
    %1047 = math.tanh %1046 : vector<2x32xf32>
    %cst_364 = arith.constant 5.000000e-01 : f32
    %1048 = vector.broadcast %cst_364 : f32 to vector<2x32xf32>
    %1049 = arith.mulf %1048, %1047 : vector<2x32xf32>
    %cst_365 = arith.constant 5.000000e-01 : f32
    %1050 = vector.broadcast %cst_365 : f32 to vector<2x32xf32>
    %1051 = arith.addf %1049, %1050 : vector<2x32xf32>
    %1052 = arith.mulf %1041, %1019 : vector<2x32xf32>
    %1053 = arith.mulf %1033, %1043 : vector<2x32xf32>
    %1054 = arith.addf %1052, %1053 : vector<2x32xf32>
    %1055 = math.tanh %1054 : vector<2x32xf32>
    %1056 = arith.mulf %1051, %1055 : vector<2x32xf32>
    %1057 = arith.truncf %1056 : vector<2x32xf32> to vector<2x32xbf16>
    %1058 = vector.extract_strided_slice %914 {offsets = [8, 0], sizes = [2, 512], strides = [1, 1]} : vector<16x512xf32> to vector<2x512xf32>
    %cst_366 = arith.constant dense<0.000000e+00> : vector<2x512xf32>
    %1059 = tpu.matmul %1057, %915, %cst_366 {dimension_numbers = #tpu.dot_dimension_numbers<[1], [0], [0], [1], [0, 0, 1, 1], [], []>} : vector<2x32xbf16>, vector<32x512xbf16>, vector<2x512xf32> -> vector<2x512xf32>
    %1060 = arith.addf %1058, %1059 : vector<2x512xf32>
    %1061 = vector.extract_strided_slice %1060 {offsets = [0, 0], sizes = [2, 32], strides = [1, 1]} : vector<2x512xf32> to vector<2x32xf32>
    %cst_367 = arith.constant 5.000000e-01 : f32
    %1062 = vector.broadcast %cst_367 : f32 to vector<2x32xf32>
    %1063 = arith.mulf %1062, %1061 : vector<2x32xf32>
    %1064 = math.tanh %1063 : vector<2x32xf32>
    %cst_368 = arith.constant 5.000000e-01 : f32
    %1065 = vector.broadcast %cst_368 : f32 to vector<2x32xf32>
    %1066 = arith.mulf %1065, %1064 : vector<2x32xf32>
    %cst_369 = arith.constant 5.000000e-01 : f32
    %1067 = vector.broadcast %cst_369 : f32 to vector<2x32xf32>
    %1068 = arith.addf %1066, %1067 : vector<2x32xf32>
    %1069 = vector.extract_strided_slice %1060 {offsets = [0, 128], sizes = [2, 32], strides = [1, 1]} : vector<2x512xf32> to vector<2x32xf32>
    %cst_370 = arith.constant 5.000000e-01 : f32
    %1070 = vector.broadcast %cst_370 : f32 to vector<2x32xf32>
    %1071 = arith.mulf %1070, %1069 : vector<2x32xf32>
    %1072 = math.tanh %1071 : vector<2x32xf32>
    %cst_371 = arith.constant 5.000000e-01 : f32
    %1073 = vector.broadcast %cst_371 : f32 to vector<2x32xf32>
    %1074 = arith.mulf %1073, %1072 : vector<2x32xf32>
    %cst_372 = arith.constant 5.000000e-01 : f32
    %1075 = vector.broadcast %cst_372 : f32 to vector<2x32xf32>
    %1076 = arith.addf %1074, %1075 : vector<2x32xf32>
    %1077 = vector.extract_strided_slice %1060 {offsets = [0, 256], sizes = [2, 32], strides = [1, 1]} : vector<2x512xf32> to vector<2x32xf32>
    %1078 = math.tanh %1077 : vector<2x32xf32>
    %1079 = vector.extract_strided_slice %1060 {offsets = [0, 384], sizes = [2, 32], strides = [1, 1]} : vector<2x512xf32> to vector<2x32xf32>
    %cst_373 = arith.constant 5.000000e-01 : f32
    %1080 = vector.broadcast %cst_373 : f32 to vector<2x32xf32>
    %1081 = arith.mulf %1080, %1079 : vector<2x32xf32>
    %1082 = math.tanh %1081 : vector<2x32xf32>
    %cst_374 = arith.constant 5.000000e-01 : f32
    %1083 = vector.broadcast %cst_374 : f32 to vector<2x32xf32>
    %1084 = arith.mulf %1083, %1082 : vector<2x32xf32>
    %cst_375 = arith.constant 5.000000e-01 : f32
    %1085 = vector.broadcast %cst_375 : f32 to vector<2x32xf32>
    %1086 = arith.addf %1084, %1085 : vector<2x32xf32>
    %1087 = arith.mulf %1076, %1054 : vector<2x32xf32>
    %1088 = arith.mulf %1068, %1078 : vector<2x32xf32>
    %1089 = arith.addf %1087, %1088 : vector<2x32xf32>
    %1090 = math.tanh %1089 : vector<2x32xf32>
    %1091 = arith.mulf %1086, %1090 : vector<2x32xf32>
    %1092 = arith.truncf %1091 : vector<2x32xf32> to vector<2x32xbf16>
    %1093 = vector.extract_strided_slice %914 {offsets = [10, 0], sizes = [2, 512], strides = [1, 1]} : vector<16x512xf32> to vector<2x512xf32>
    %cst_376 = arith.constant dense<0.000000e+00> : vector<2x512xf32>
    %1094 = tpu.matmul %1092, %915, %cst_376 {dimension_numbers = #tpu.dot_dimension_numbers<[1], [0], [0], [1], [0, 0, 1, 1], [], []>} : vector<2x32xbf16>, vector<32x512xbf16>, vector<2x512xf32> -> vector<2x512xf32>
    %1095 = arith.addf %1093, %1094 : vector<2x512xf32>
    %1096 = vector.extract_strided_slice %1095 {offsets = [0, 0], sizes = [2, 32], strides = [1, 1]} : vector<2x512xf32> to vector<2x32xf32>
    %cst_377 = arith.constant 5.000000e-01 : f32
    %1097 = vector.broadcast %cst_377 : f32 to vector<2x32xf32>
    %1098 = arith.mulf %1097, %1096 : vector<2x32xf32>
    %1099 = math.tanh %1098 : vector<2x32xf32>
    %cst_378 = arith.constant 5.000000e-01 : f32
    %1100 = vector.broadcast %cst_378 : f32 to vector<2x32xf32>
    %1101 = arith.mulf %1100, %1099 : vector<2x32xf32>
    %cst_379 = arith.constant 5.000000e-01 : f32
    %1102 = vector.broadcast %cst_379 : f32 to vector<2x32xf32>
    %1103 = arith.addf %1101, %1102 : vector<2x32xf32>
    %1104 = vector.extract_strided_slice %1095 {offsets = [0, 128], sizes = [2, 32], strides = [1, 1]} : vector<2x512xf32> to vector<2x32xf32>
    %cst_380 = arith.constant 5.000000e-01 : f32
    %1105 = vector.broadcast %cst_380 : f32 to vector<2x32xf32>
    %1106 = arith.mulf %1105, %1104 : vector<2x32xf32>
    %1107 = math.tanh %1106 : vector<2x32xf32>
    %cst_381 = arith.constant 5.000000e-01 : f32
    %1108 = vector.broadcast %cst_381 : f32 to vector<2x32xf32>
    %1109 = arith.mulf %1108, %1107 : vector<2x32xf32>
    %cst_382 = arith.constant 5.000000e-01 : f32
    %1110 = vector.broadcast %cst_382 : f32 to vector<2x32xf32>
    %1111 = arith.addf %1109, %1110 : vector<2x32xf32>
    %1112 = vector.extract_strided_slice %1095 {offsets = [0, 256], sizes = [2, 32], strides = [1, 1]} : vector<2x512xf32> to vector<2x32xf32>
    %1113 = math.tanh %1112 : vector<2x32xf32>
    %1114 = vector.extract_strided_slice %1095 {offsets = [0, 384], sizes = [2, 32], strides = [1, 1]} : vector<2x512xf32> to vector<2x32xf32>
    %cst_383 = arith.constant 5.000000e-01 : f32
    %1115 = vector.broadcast %cst_383 : f32 to vector<2x32xf32>
    %1116 = arith.mulf %1115, %1114 : vector<2x32xf32>
    %1117 = math.tanh %1116 : vector<2x32xf32>
    %cst_384 = arith.constant 5.000000e-01 : f32
    %1118 = vector.broadcast %cst_384 : f32 to vector<2x32xf32>
    %1119 = arith.mulf %1118, %1117 : vector<2x32xf32>
    %cst_385 = arith.constant 5.000000e-01 : f32
    %1120 = vector.broadcast %cst_385 : f32 to vector<2x32xf32>
    %1121 = arith.addf %1119, %1120 : vector<2x32xf32>
    %1122 = arith.mulf %1111, %1089 : vector<2x32xf32>
    %1123 = arith.mulf %1103, %1113 : vector<2x32xf32>
    %1124 = arith.addf %1122, %1123 : vector<2x32xf32>
    %1125 = math.tanh %1124 : vector<2x32xf32>
    %1126 = arith.mulf %1121, %1125 : vector<2x32xf32>
    %1127 = arith.truncf %1126 : vector<2x32xf32> to vector<2x32xbf16>
    %1128 = vector.extract_strided_slice %914 {offsets = [12, 0], sizes = [2, 512], strides = [1, 1]} : vector<16x512xf32> to vector<2x512xf32>
    %cst_386 = arith.constant dense<0.000000e+00> : vector<2x512xf32>
    %1129 = tpu.matmul %1127, %915, %cst_386 {dimension_numbers = #tpu.dot_dimension_numbers<[1], [0], [0], [1], [0, 0, 1, 1], [], []>} : vector<2x32xbf16>, vector<32x512xbf16>, vector<2x512xf32> -> vector<2x512xf32>
    %1130 = arith.addf %1128, %1129 : vector<2x512xf32>
    %1131 = vector.extract_strided_slice %1130 {offsets = [0, 0], sizes = [2, 32], strides = [1, 1]} : vector<2x512xf32> to vector<2x32xf32>
    %cst_387 = arith.constant 5.000000e-01 : f32
    %1132 = vector.broadcast %cst_387 : f32 to vector<2x32xf32>
    %1133 = arith.mulf %1132, %1131 : vector<2x32xf32>
    %1134 = math.tanh %1133 : vector<2x32xf32>
    %cst_388 = arith.constant 5.000000e-01 : f32
    %1135 = vector.broadcast %cst_388 : f32 to vector<2x32xf32>
    %1136 = arith.mulf %1135, %1134 : vector<2x32xf32>
    %cst_389 = arith.constant 5.000000e-01 : f32
    %1137 = vector.broadcast %cst_389 : f32 to vector<2x32xf32>
    %1138 = arith.addf %1136, %1137 : vector<2x32xf32>
    %1139 = vector.extract_strided_slice %1130 {offsets = [0, 128], sizes = [2, 32], strides = [1, 1]} : vector<2x512xf32> to vector<2x32xf32>
    %cst_390 = arith.constant 5.000000e-01 : f32
    %1140 = vector.broadcast %cst_390 : f32 to vector<2x32xf32>
    %1141 = arith.mulf %1140, %1139 : vector<2x32xf32>
    %1142 = math.tanh %1141 : vector<2x32xf32>
    %cst_391 = arith.constant 5.000000e-01 : f32
    %1143 = vector.broadcast %cst_391 : f32 to vector<2x32xf32>
    %1144 = arith.mulf %1143, %1142 : vector<2x32xf32>
    %cst_392 = arith.constant 5.000000e-01 : f32
    %1145 = vector.broadcast %cst_392 : f32 to vector<2x32xf32>
    %1146 = arith.addf %1144, %1145 : vector<2x32xf32>
    %1147 = vector.extract_strided_slice %1130 {offsets = [0, 256], sizes = [2, 32], strides = [1, 1]} : vector<2x512xf32> to vector<2x32xf32>
    %1148 = math.tanh %1147 : vector<2x32xf32>
    %1149 = vector.extract_strided_slice %1130 {offsets = [0, 384], sizes = [2, 32], strides = [1, 1]} : vector<2x512xf32> to vector<2x32xf32>
    %cst_393 = arith.constant 5.000000e-01 : f32
    %1150 = vector.broadcast %cst_393 : f32 to vector<2x32xf32>
    %1151 = arith.mulf %1150, %1149 : vector<2x32xf32>
    %1152 = math.tanh %1151 : vector<2x32xf32>
    %cst_394 = arith.constant 5.000000e-01 : f32
    %1153 = vector.broadcast %cst_394 : f32 to vector<2x32xf32>
    %1154 = arith.mulf %1153, %1152 : vector<2x32xf32>
    %cst_395 = arith.constant 5.000000e-01 : f32
    %1155 = vector.broadcast %cst_395 : f32 to vector<2x32xf32>
    %1156 = arith.addf %1154, %1155 : vector<2x32xf32>
    %1157 = arith.mulf %1146, %1124 : vector<2x32xf32>
    %1158 = arith.mulf %1138, %1148 : vector<2x32xf32>
    %1159 = arith.addf %1157, %1158 : vector<2x32xf32>
    %1160 = math.tanh %1159 : vector<2x32xf32>
    %1161 = arith.mulf %1156, %1160 : vector<2x32xf32>
    %1162 = arith.truncf %1161 : vector<2x32xf32> to vector<2x32xbf16>
    %1163 = vector.extract_strided_slice %914 {offsets = [14, 0], sizes = [2, 512], strides = [1, 1]} : vector<16x512xf32> to vector<2x512xf32>
    %cst_396 = arith.constant dense<0.000000e+00> : vector<2x512xf32>
    %1164 = tpu.matmul %1162, %915, %cst_396 {dimension_numbers = #tpu.dot_dimension_numbers<[1], [0], [0], [1], [0, 0, 1, 1], [], []>} : vector<2x32xbf16>, vector<32x512xbf16>, vector<2x512xf32> -> vector<2x512xf32>
    %1165 = arith.addf %1163, %1164 : vector<2x512xf32>
    %1166 = vector.extract_strided_slice %1165 {offsets = [0, 0], sizes = [2, 32], strides = [1, 1]} : vector<2x512xf32> to vector<2x32xf32>
    %cst_397 = arith.constant 5.000000e-01 : f32
    %1167 = vector.broadcast %cst_397 : f32 to vector<2x32xf32>
    %1168 = arith.mulf %1167, %1166 : vector<2x32xf32>
    %1169 = math.tanh %1168 : vector<2x32xf32>
    %cst_398 = arith.constant 5.000000e-01 : f32
    %1170 = vector.broadcast %cst_398 : f32 to vector<2x32xf32>
    %1171 = arith.mulf %1170, %1169 : vector<2x32xf32>
    %cst_399 = arith.constant 5.000000e-01 : f32
    %1172 = vector.broadcast %cst_399 : f32 to vector<2x32xf32>
    %1173 = arith.addf %1171, %1172 : vector<2x32xf32>
    %1174 = vector.extract_strided_slice %1165 {offsets = [0, 128], sizes = [2, 32], strides = [1, 1]} : vector<2x512xf32> to vector<2x32xf32>
    %cst_400 = arith.constant 5.000000e-01 : f32
    %1175 = vector.broadcast %cst_400 : f32 to vector<2x32xf32>
    %1176 = arith.mulf %1175, %1174 : vector<2x32xf32>
    %1177 = math.tanh %1176 : vector<2x32xf32>
    %cst_401 = arith.constant 5.000000e-01 : f32
    %1178 = vector.broadcast %cst_401 : f32 to vector<2x32xf32>
    %1179 = arith.mulf %1178, %1177 : vector<2x32xf32>
    %cst_402 = arith.constant 5.000000e-01 : f32
    %1180 = vector.broadcast %cst_402 : f32 to vector<2x32xf32>
    %1181 = arith.addf %1179, %1180 : vector<2x32xf32>
    %1182 = vector.extract_strided_slice %1165 {offsets = [0, 256], sizes = [2, 32], strides = [1, 1]} : vector<2x512xf32> to vector<2x32xf32>
    %1183 = math.tanh %1182 : vector<2x32xf32>
    %1184 = vector.extract_strided_slice %1165 {offsets = [0, 384], sizes = [2, 32], strides = [1, 1]} : vector<2x512xf32> to vector<2x32xf32>
    %cst_403 = arith.constant 5.000000e-01 : f32
    %1185 = vector.broadcast %cst_403 : f32 to vector<2x32xf32>
    %1186 = arith.mulf %1185, %1184 : vector<2x32xf32>
    %1187 = math.tanh %1186 : vector<2x32xf32>
    %cst_404 = arith.constant 5.000000e-01 : f32
    %1188 = vector.broadcast %cst_404 : f32 to vector<2x32xf32>
    %1189 = arith.mulf %1188, %1187 : vector<2x32xf32>
    %cst_405 = arith.constant 5.000000e-01 : f32
    %1190 = vector.broadcast %cst_405 : f32 to vector<2x32xf32>
    %1191 = arith.addf %1189, %1190 : vector<2x32xf32>
    %1192 = arith.mulf %1181, %1159 : vector<2x32xf32>
    %1193 = arith.mulf %1173, %1183 : vector<2x32xf32>
    %1194 = arith.addf %1192, %1193 : vector<2x32xf32>
    %1195 = math.tanh %1194 : vector<2x32xf32>
    %1196 = arith.mulf %1191, %1195 : vector<2x32xf32>
    %1197 = arith.truncf %1196 : vector<2x32xf32> to vector<2x32xbf16>
    %c352 = arith.constant 352 : index
    %c0_406 = arith.constant 0 : index
    %1198 = vector.load %arg2[%c352, %c0_406] : memref<640x512xbf16, #tpu.memory_space<vmem>>, vector<32x128xbf16>
    %cst_407 = arith.constant dense<0.000000e+00> : vector<2x128xf32>
    %1199 = tpu.matmul %1197, %1198, %cst_407 {dimension_numbers = #tpu.dot_dimension_numbers<[1], [0], [0], [1], [0, 0, 1, 1], [], []>} : vector<2x32xbf16>, vector<32x128xbf16>, vector<2x128xf32> -> vector<2x128xf32>
    %1200 = arith.addf %908, %1199 : vector<2x128xf32>
    %cst_408 = arith.constant 0.000000e+00 : f32
    %1201 = vector.broadcast %cst_408 : f32 to vector<2x128xf32>
    %1202 = arith.maximumf %1200, %1201 : vector<2x128xf32>
    %c384 = arith.constant 384 : index
    %c0_409 = arith.constant 0 : index
    %1203 = vector.load %arg2[%c384, %c0_409] : memref<640x512xbf16, #tpu.memory_space<vmem>>, vector<128x128xbf16>
    %1204 = arith.truncf %1202 : vector<2x128xf32> to vector<2x128xbf16>
    %cst_410 = arith.constant dense<0.000000e+00> : vector<2x128xf32>
    %1205 = tpu.matmul %1204, %1203, %cst_410 {dimension_numbers = #tpu.dot_dimension_numbers<[1], [0], [0], [1], [0, 0, 1, 1], [], []>} : vector<2x128xbf16>, vector<128x128xbf16>, vector<2x128xf32> -> vector<2x128xf32>
    %c5 = arith.constant 5 : index
    %c0_411 = arith.constant 0 : index
    %1206 = vector.load %arg3[%c5, %c0_411] : memref<8x512xf32, #tpu.memory_space<vmem>>, vector<1x128xf32>
    %1207 = vector.broadcast %1206 : vector<1x128xf32> to vector<2x128xf32>
    %1208 = arith.addf %1205, %1207 : vector<2x128xf32>
    %cst_412 = arith.constant 0.000000e+00 : f32
    %1209 = vector.broadcast %cst_412 : f32 to vector<2x128xf32>
    %1210 = arith.maximumf %1208, %1209 : vector<2x128xf32>
    %c512 = arith.constant 512 : index
    %c0_413 = arith.constant 0 : index
    %1211 = vector.load %arg2[%c512, %c0_413] : memref<640x512xbf16, #tpu.memory_space<vmem>>, vector<128x128xbf16>
    %1212 = arith.truncf %1210 : vector<2x128xf32> to vector<2x128xbf16>
    %cst_414 = arith.constant dense<0.000000e+00> : vector<2x128xf32>
    %1213 = tpu.matmul %1212, %1211, %cst_414 {dimension_numbers = #tpu.dot_dimension_numbers<[1], [0], [0], [1], [0, 0, 1, 1], [], []>} : vector<2x128xbf16>, vector<128x128xbf16>, vector<2x128xf32> -> vector<2x128xf32>
    %c6_415 = arith.constant 6 : index
    %c0_416 = arith.constant 0 : index
    %1214 = vector.load %arg3[%c6_415, %c0_416] : memref<8x512xf32, #tpu.memory_space<vmem>>, vector<1x128xf32>
    %1215 = vector.broadcast %1214 : vector<1x128xf32> to vector<2x128xf32>
    %1216 = arith.addf %1213, %1215 : vector<2x128xf32>
    %cst_417 = arith.constant dense<0xFF800000> : vector<2xf32>
    %1217 = vector.multi_reduction <maximumf>, %1216, %cst_417 [1] : vector<2x128xf32> to vector<2xf32>
    %1218 = vector.shape_cast %1217 : vector<2xf32> to vector<2x1xf32>
    %1219 = vector.broadcast %1218 : vector<2x1xf32> to vector<2x128xf32>
    %1220 = arith.subf %1216, %1219 : vector<2x128xf32>
    %1221 = math.exp %1220 : vector<2x128xf32>
    %cst_418 = arith.constant dense<0.000000e+00> : vector<2xf32>
    %1222 = vector.multi_reduction <add>, %1221, %cst_418 [1] : vector<2x128xf32> to vector<2xf32>
    %1223 = vector.shape_cast %1222 : vector<2xf32> to vector<2x1xf32>
    %1224 = vector.broadcast %1223 : vector<2x1xf32> to vector<2x128xf32>
    %1225 = arith.divf %1221, %1224 : vector<2x128xf32>
    %c0_419 = arith.constant 0 : index
    %c0_420 = arith.constant 0 : index
    %1226 = vector.load %arg4[%c0_419, %c0_420] : memref<2x128xf32, #tpu.memory_space<vmem>>, vector<2x128xf32>
    tpu.vector_store %arg4[%c0_419, %c0_420], %1225 {strides = array<i32>} : memref<2x128xf32, #tpu.memory_space<vmem>>, vector<2x128xf32>,
    return
  }
}

</mosaic_0001>

<llo_original>
// kernel: forward.1
$region0: #{forward.1}
  #allocation0 [shape = 'u32[]', space=smem, size = 0x4, offset = 0x4, fixed_abs, tag = 'smem constant byte address 0x4 - core index']
  #allocation1 [shape = 'u32[72,128]{1,0:T(1,128)}', space=vmem, size = 0x9000, scoped, tag = 'internal scratch']
  #allocation2 [shape = 'bf16[16,32]{1,0:T(8,128)(2,1)}', space=vmem, size = 0x1000, scoped, tag = 'scratch operand']
  %s0 = inlined_call_operand.vmem [shape: f32[16,16], index: 0, kind: input, shape index: {}]
  %s1 = inlined_call_operand.vmem [shape: f32[2,16], index: 1, kind: input, shape index: {}]
  %s2 = inlined_call_operand.hbm [shape: bf16[640,512], index: 2, kind: input, shape index: {}]
  %s3 = inlined_call_operand.vmem [shape: f32[8,512], index: 3, kind: input, shape index: {}]
  %s4 = inlined_call_operand.hbm [shape: f32[2,128], index: 4, kind: output, shape index: {}]
  %s5 = sld [smem:[#allocation0]]
  $region30: #{forward.1} parent=0
    _
  %s7 = ssub.s32 1, %s5
  %s8 = scalar_select 0, %s7, %s5
  $region1: #{forward.1} parent=0
    #allocation3 [shape = 'u8[655360]{0}', space=vmem, size = 0xa0000, scoped, tag = 'input window, operand 2, single buffered']
    #allocation4 [shape = 's32[1]{0}', space=sflag, size = 0x4, scoped, tag = 'scoped memory for forward.1']
    #allocation5 [shape = 's32[1]{0}', space=sflag, size = 0x4, scoped, tag = 'scoped memory for forward.1']
    #allocation6 [shape = 'u8[1024]{0}', space=vmem, size = 0x400, scoped, tag = 'output window, operand 0, single buffered']
    %9 = vsyncpa [#allocation4], 0
    %10 = vsyncpa [#allocation5], 0
    // Predicated region
    $region2: #{forward.1} parent=1 // pred_check
      _
    $region3: #{forward.1} parent=1 // pred_check_branch
      %12 = sbr.rel (0) target = $region5
    $region4: #{forward.1} parent=1 // pred_region
      _
    $region5: #{forward.1} parent=1 // pred_fallthru
      _
    // Predicated region
    $region6: #{forward.1} parent=1 // pred_check
      _
    $region7: #{forward.1} parent=1 // pred_check_branch
      %14 = sbr.rel (0) target = $region9
    $region8: #{forward.1} parent=1 // pred_region
      _
    $region9: #{forward.1} parent=1 // pred_fallthru
      _
    // Predicated region
    $region10: #{forward.1} parent=1 // pred_check
      _
    $region11: #{forward.1} parent=1 // pred_check_branch
      %16 = sbr.rel (0) target = $region13
    $region12: #{forward.1} parent=1 // pred_region
      %18 = vsyncadd [#allocation4], 0
      %s19 = sshll.u32 %s2, 4
      %s20 = int_to_ptr.hbm [resolvable:$true] %s19
      %s21 = sshll.u32 [#allocation3], 4
      %s22 = int_to_ptr.vmem [resolvable:$true] %s21
      %27 = dma.hbm_to_vmem [thread:$0]  %s20, 20480, %s22, [#allocation4], 256, 256, 16
    $region13: #{forward.1} parent=1 // pred_fallthru
      _
    // Predicated region
    $region14: #{forward.1} parent=1 // pred_check
      _
    $region15: #{forward.1} parent=1 // pred_check_branch
      %29 = sbr.rel (0) target = $region17
    $region16: #{forward.1} parent=1 // pred_region
      _
    $region17: #{forward.1} parent=1 // pred_fallthru
      _
    // Predicated region
    $region18: #{forward.1} parent=1 // pred_check
      _
    $region19: #{forward.1} parent=1 // pred_check_branch
      %31 = sbr.rel (0) target = $region21
    $region20: #{forward.1} parent=1 // pred_region
      %33 = dma.done [#allocation4], 20480
    $region21: #{forward.1} parent=1 // pred_fallthru
      _
    %v35 = vld [vmem:[%s0] sm:$0xff]
    %v36 = vld [vmem:[%s0 + $0x8] sm:$0xff]
    %v37 = vld [vmem:[#allocation3] sm:$0xff]
    %v38 = vld [vmem:[#allocation3 + $0x8] sm:$0xff]
    %v39 = vld [vmem:[#allocation3 + $0x10] sm:$0xff]
    %v40 = vld [vmem:[#allocation3 + $0x18] sm:$0xff]
    %v41 = vpack.c.bf16 %v36, %v35
    %v42 = vld [vmem:[%s1] sm:$0x3]
    %v43 = vld [vmem:[#allocation3 + $0x20] sm:$0xff]
    %v44 = vld [vmem:[#allocation3 + $0x28] sm:$0xff]
    %v45 = vld [vmem:[#allocation3 + $0x30] sm:$0xff]
    %v46 = vld [vmem:[#allocation3 + $0x38] sm:$0xff]
    %v47 = vpack.c.bf16 %v42, %v42
    %v48 = vld [vmem:[%s3] ss:$8 sm:$0xf]
    %v50 = vperm.slane %v48, 0
    %v51 = vperm.slane %v48, 1
    %v52 = vperm.slane %v48, 2
    %v53 = vperm.slane %v48, 3
    %v62 = vunpack.c.l.b16 %v43
    %v63 = vunpack.c.h.b16 %v43
    %v64 = vunpack.c.l.b16 %v44
    %v65 = vunpack.c.h.b16 %v44
    %v66 = vunpack.c.l.b16 %v45
    %v67 = vunpack.c.h.b16 %v45
    %v68 = vunpack.c.l.b16 %v46
    %v69 = vunpack.c.h.b16 %v46
    %v70 = vpack.c.b16 %v66, %v62
    %v71 = vpack.c.b16 %v67, %v63
    %v72 = vpack.c.b16 %v68, %v64
    %v73 = vpack.c.b16 %v69, %v65
    %vm78 = vcmask 130048
    %v80 = vsel %vm78, %v47, 0
    %82 = vmatpush.bf16.msra.mxu0 0
    %83 = vmatpush.bf16.msra.mxu0 0
    %84 = vmatpush.bf16.msra.mxu0 0
    %85 = vmatpush.bf16.msra.mxu0 0
    %86 = vmatpush.bf16.msra.mxu0 0
    %87 = vmatpush.bf16.msra.mxu0 0
    %88 = vmatpush.bf16.msra.mxu0 0
    %89 = vmatpush.bf16.msra.mxu0 %v70
    %90 = vmatmul.bf16.gmra.mxu0 %v80
    %v91 = vpop.f32.mrf.mxu0
    %v92 = vadd.f32 %v50, %v91
    %v93 = vpop.f32.mrf.mxu0
    %94 = vdwg.mxu0
    %95 = vmatpush.bf16.msra.mxu0 0
    %96 = vmatpush.bf16.msra.mxu0 0
    %97 = vmatpush.bf16.msra.mxu0 0
    %98 = vmatpush.bf16.msra.mxu0 0
    %99 = vmatpush.bf16.msra.mxu0 0
    %100 = vmatpush.bf16.msra.mxu0 0
    %101 = vmatpush.bf16.msra.mxu0 0
    %102 = vmatpush.bf16.msra.mxu0 %v71
    %103 = vmatmul.bf16.gmra.mxu0 %v80
    %v104 = vpop.f32.mrf.mxu0
    %v105 = vadd.f32 %v51, %v104
    %v106 = vpop.f32.mrf.mxu0
    %107 = vdwg.mxu0
    %108 = vmatpush.bf16.msra.mxu0 0
    %109 = vmatpush.bf16.msra.mxu0 0
    %110 = vmatpush.bf16.msra.mxu0 0
    %111 = vmatpush.bf16.msra.mxu0 0
    %112 = vmatpush.bf16.msra.mxu0 0
    %113 = vmatpush.bf16.msra.mxu0 0
    %114 = vmatpush.bf16.msra.mxu0 0
    %115 = vmatpush.bf16.msra.mxu0 %v72
    %116 = vmatmul.bf16.gmra.mxu0 %v80
    %v117 = vpop.f32.mrf.mxu0
    %v118 = vadd.f32 %v52, %v117
    %v119 = vpop.f32.mrf.mxu0
    %120 = vdwg.mxu0
    %121 = vmatpush.bf16.msra.mxu0 0
    %122 = vmatpush.bf16.msra.mxu0 0
    %123 = vmatpush.bf16.msra.mxu0 0
    %124 = vmatpush.bf16.msra.mxu0 0
    %125 = vmatpush.bf16.msra.mxu0 0
    %126 = vmatpush.bf16.msra.mxu0 0
    %127 = vmatpush.bf16.msra.mxu0 0
    %128 = vmatpush.bf16.msra.mxu0 %v73
    %129 = vmatmul.bf16.gmra.mxu0 %v80
    %v130 = vpop.f32.mrf.mxu0
    %v131 = vadd.f32 %v53, %v130
    %v132 = vpop.f32.mrf.mxu0
    %133 = vdwg.mxu0
    %v138 = vrot.slane %v92, 6
    %v139 = vrot.slane %v105, 6
    %v140 = vrot.slane %v118, 6
    %v141 = vrot.slane %v131, 6
    %v146 = vrot.slane %v92, 4
    %v147 = vrot.slane %v105, 4
    %v148 = vrot.slane %v118, 4
    %v149 = vrot.slane %v131, 4
    %v154 = vrot.slane %v92, 2
    %v155 = vrot.slane %v105, 2
    %v156 = vrot.slane %v118, 2
    %v157 = vrot.slane %v131, 2
    %vm162 = vcmask 1041408
    %v163 = vsel %vm162, %v92, %v138
    %v164 = vsel %vm162, %v105, %v139
    %v165 = vsel %vm162, %v118, %v140
    %v166 = vsel %vm162, %v131, %v141
    %vm167 = vcmask 1043456
    %v168 = vsel %vm167, %v163, %v146
    %v169 = vsel %vm167, %v164, %v147
    %v170 = vsel %vm167, %v165, %v148
    %v171 = vsel %vm167, %v166, %v149
    %vm172 = vcmask 1045504
    %v173 = vsel %vm172, %v168, %v154
    %v174 = vsel %vm172, %v169, %v155
    %v175 = vsel %vm172, %v170, %v156
    %v176 = vsel %vm172, %v171, %v157
    %v181 = vunpack.c.l.b16 %v37
    %v182 = vunpack.c.h.b16 %v37
    %v183 = vunpack.c.l.b16 %v38
    %v184 = vunpack.c.h.b16 %v38
    %v185 = vunpack.c.l.b16 %v39
    %v186 = vunpack.c.h.b16 %v39
    %v187 = vunpack.c.l.b16 %v40
    %v188 = vunpack.c.h.b16 %v40
    %v189 = vpack.c.b16 %v185, %v181
    %v190 = vpack.c.b16 %v186, %v182
    %v191 = vpack.c.b16 %v187, %v183
    %v192 = vpack.c.b16 %v188, %v184
    %v198 = vsel %vm78, %v41, 0
    %200 = vmatpush.bf16.msra.mxu0 0
    %201 = vmatpush.bf16.msra.mxu0 0
    %202 = vmatpush.bf16.msra.mxu0 0
    %203 = vmatpush.bf16.msra.mxu0 0
    %204 = vmatpush.bf16.msra.mxu0 0
    %205 = vmatpush.bf16.msra.mxu0 0
    %206 = vmatpush.bf16.msra.mxu0 0
    %207 = vmatpush.bf16.msra.mxu0 %v189
    %208 = vmatmul.bf16.gmra.mxu0 %v198
    %v209 = vpop.f32.mrf.mxu0
    %v210 = vadd.f32 %v173, %v209
    %v211 = vpop.f32.mrf.mxu0
    %v212 = vadd.f32 %v173, %v211
    %213 = vdwg.mxu0
    %214 = vmatpush.bf16.msra.mxu0 0
    %215 = vmatpush.bf16.msra.mxu0 0
    %216 = vmatpush.bf16.msra.mxu0 0
    %217 = vmatpush.bf16.msra.mxu0 0
    %218 = vmatpush.bf16.msra.mxu0 0
    %219 = vmatpush.bf16.msra.mxu0 0
    %220 = vmatpush.bf16.msra.mxu0 0
    %221 = vmatpush.bf16.msra.mxu0 %v190
    %222 = vmatmul.bf16.gmra.mxu0 %v198
    %v223 = vpop.f32.mrf.mxu0
    %v224 = vadd.f32 %v174, %v223
    %v225 = vpop.f32.mrf.mxu0
    %v226 = vadd.f32 %v174, %v225
    %227 = vdwg.mxu0
    %228 = vmatpush.bf16.msra.mxu0 0
    %229 = vmatpush.bf16.msra.mxu0 0
    %230 = vmatpush.bf16.msra.mxu0 0
    %231 = vmatpush.bf16.msra.mxu0 0
    %232 = vmatpush.bf16.msra.mxu0 0
    %233 = vmatpush.bf16.msra.mxu0 0
    %234 = vmatpush.bf16.msra.mxu0 0
    %235 = vmatpush.bf16.msra.mxu0 %v191
    %236 = vmatmul.bf16.gmra.mxu0 %v198
    %v237 = vpop.f32.mrf.mxu0
    %v238 = vadd.f32 %v175, %v237
    %v239 = vpop.f32.mrf.mxu0
    %v240 = vadd.f32 %v175, %v239
    %241 = vdwg.mxu0
    %242 = vmatpush.bf16.msra.mxu0 0
    %243 = vmatpush.bf16.msra.mxu0 0
    %244 = vmatpush.bf16.msra.mxu0 0
    %245 = vmatpush.bf16.msra.mxu0 0
    %246 = vmatpush.bf16.msra.mxu0 0
    %247 = vmatpush.bf16.msra.mxu0 0
    %248 = vmatpush.bf16.msra.mxu0 0
    %249 = vmatpush.bf16.msra.mxu0 %v192
    %250 = vmatmul.bf16.gmra.mxu0 %v198
    %v251 = vpop.f32.mrf.mxu0
    %v252 = vadd.f32 %v176, %v251
    %v253 = vpop.f32.mrf.mxu0
    %v254 = vadd.f32 %v176, %v253
    %255 = vdwg.mxu0
    %v256 = vld [vmem:[#allocation3 + $0x40] sm:$0xff]
    %v257 = vld [vmem:[#allocation3 + $0x48] sm:$0xff]
    %v258 = vld [vmem:[#allocation3 + $0x50] sm:$0xff]
    %v259 = vld [vmem:[#allocation3 + $0x58] sm:$0xff]
    %v260 = vld [vmem:[#allocation3 + $0x60] sm:$0xff]
    %v261 = vld [vmem:[#allocation3 + $0x68] sm:$0xff]
    %v262 = vld [vmem:[#allocation3 + $0x70] sm:$0xff]
    %v263 = vld [vmem:[#allocation3 + $0x78] sm:$0xff]
    %v272 = vunpack.c.l.b16 %v256
    %v273 = vunpack.c.h.b16 %v256
    %v274 = vunpack.c.l.b16 %v257
    %v275 = vunpack.c.h.b16 %v257
    %v276 = vunpack.c.l.b16 %v258
    %v277 = vunpack.c.h.b16 %v258
    %v278 = vunpack.c.l.b16 %v259
    %v279 = vunpack.c.h.b16 %v259
    %v280 = vunpack.c.l.b16 %v260
    %v281 = vunpack.c.h.b16 %v260
    %v282 = vunpack.c.l.b16 %v261
    %v283 = vunpack.c.h.b16 %v261
    %v284 = vunpack.c.l.b16 %v262
    %v285 = vunpack.c.h.b16 %v262
    %v286 = vunpack.c.l.b16 %v263
    %v287 = vunpack.c.h.b16 %v263
    %v288 = vpack.c.b16 %v276, %v272
    %v289 = vpack.c.b16 %v277, %v273
    %v290 = vpack.c.b16 %v278, %v274
    %v291 = vpack.c.b16 %v279, %v275
    %v292 = vpack.c.b16 %v284, %v280
    %v293 = vpack.c.b16 %v285, %v281
    %v294 = vpack.c.b16 %v286, %v282
    %v295 = vpack.c.b16 %v287, %v283
    %vm304 = vcmask 261120
    %v306 = vsel %vm304, 0, 0
    %308 = vmatpush.bf16.msra.mxu0 0
    %309 = vmatpush.bf16.msra.mxu0 0
    %310 = vmatpush.bf16.msra.mxu0 0
    %311 = vmatpush.bf16.msra.mxu0 0
    %312 = vmatpush.bf16.msra.mxu0 0
    %313 = vmatpush.bf16.msra.mxu0 0
    %314 = vmatpush.bf16.msra.mxu0 %v292
    %315 = vmatpush.bf16.msra.mxu0 %v288
    %316 = vmatmul.bf16.gmra.mxu0 %v306
    %v317 = vpop.f32.mrf.mxu0
    %v318 = vadd.f32 0.0, %v317
    %v319 = vpop.f32.mrf.mxu0
    %320 = vdwg.mxu0
    %321 = vmatpush.bf16.msra.mxu0 0
    %322 = vmatpush.bf16.msra.mxu0 0
    %323 = vmatpush.bf16.msra.mxu0 0
    %324 = vmatpush.bf16.msra.mxu0 0
    %325 = vmatpush.bf16.msra.mxu0 0
    %326 = vmatpush.bf16.msra.mxu0 0
    %327 = vmatpush.bf16.msra.mxu0 %v293
    %328 = vmatpush.bf16.msra.mxu0 %v289
    %329 = vmatmul.bf16.gmra.mxu0 %v306
    %v330 = vpop.f32.mrf.mxu0
    %v331 = vadd.f32 0.0, %v330
    %v332 = vpop.f32.mrf.mxu0
    %333 = vdwg.mxu0
    %334 = vmatpush.bf16.msra.mxu0 0
    %335 = vmatpush.bf16.msra.mxu0 0
    %336 = vmatpush.bf16.msra.mxu0 0
    %337 = vmatpush.bf16.msra.mxu0 0
    %338 = vmatpush.bf16.msra.mxu0 0
    %339 = vmatpush.bf16.msra.mxu0 0
    %340 = vmatpush.bf16.msra.mxu0 %v294
    %341 = vmatpush.bf16.msra.mxu0 %v290
    %342 = vmatmul.bf16.gmra.mxu0 %v306
    %v343 = vpop.f32.mrf.mxu0
    %v344 = vadd.f32 0.0, %v343
    %v345 = vpop.f32.mrf.mxu0
    %346 = vdwg.mxu0
    %347 = vmatpush.bf16.msra.mxu0 0
    %348 = vmatpush.bf16.msra.mxu0 0
    %349 = vmatpush.bf16.msra.mxu0 0
    %350 = vmatpush.bf16.msra.mxu0 0
    %351 = vmatpush.bf16.msra.mxu0 0
    %352 = vmatpush.bf16.msra.mxu0 0
    %353 = vmatpush.bf16.msra.mxu0 %v295
    %354 = vmatpush.bf16.msra.mxu0 %v291
    %355 = vmatmul.bf16.gmra.mxu0 %v306
    %v356 = vpop.f32.mrf.mxu0
    %v357 = vadd.f32 0.0, %v356
    %v358 = vpop.f32.mrf.mxu0
    %359 = vdwg.mxu0
    %v360 = vadd.f32 %v210, %v318
    %v361 = vadd.f32 %v224, %v331
    %v362 = vadd.f32 %v238, %v344
    %v363 = vadd.f32 %v252, %v357
    %v364 = vmul.f32 %v360, 0.5
    %v365 = vtanh.pop %v364
    %v366 = vmul.f32 %v365, 0.5
    %v367 = vadd.f32 %v366, 0.5
    %v368 = vmul.f32 %v361, 0.5
    %v369 = vtanh.pop %v368
    %v370 = vmul.f32 %v369, 0.5
    %v371 = vadd.f32 %v370, 0.5
    %v372 = vtanh.pop %v362
    %v373 = vmul.f32 %v363, 0.5
    %v374 = vtanh.pop %v373
    %v375 = vmul.f32 %v374, 0.5
    %v376 = vadd.f32 %v375, 0.5
    %v377 = vmul.f32 %v371, 0.0
    %v378 = vmul.f32 %v367, %v372
    %v379 = vadd.f32 %v377, %v378
    %v380 = vtanh.pop %v379
    %v381 = vmul.f32 %v376, %v380
    %v382 = vpack.c.bf16 %v381, %v381
    %vm383 = vcmask 253952
    %384 = vst.msk [vmem:[#allocation2] sm:$0x1] %vm383, %v382
    %v386 = vsel %vm304, %v382, 0
    %388 = vmatpush.bf16.msra.mxu0 0
    %389 = vmatpush.bf16.msra.mxu0 0
    %390 = vmatpush.bf16.msra.mxu0 0
    %391 = vmatpush.bf16.msra.mxu0 0
    %392 = vmatpush.bf16.msra.mxu0 0
    %393 = vmatpush.bf16.msra.mxu0 0
    %394 = vmatpush.bf16.msra.mxu0 %v292
    %395 = vmatpush.bf16.msra.mxu0 %v288
    %396 = vmatmul.bf16.gmra.mxu0 %v386
    %v397 = vpop.f32.mrf.mxu0
    %v398 = vadd.f32 0.0, %v397
    %v399 = vpop.f32.mrf.mxu0
    %400 = vdwg.mxu0
    %401 = vmatpush.bf16.msra.mxu0 0
    %402 = vmatpush.bf16.msra.mxu0 0
    %403 = vmatpush.bf16.msra.mxu0 0
    %404 = vmatpush.bf16.msra.mxu0 0
    %405 = vmatpush.bf16.msra.mxu0 0
    %406 = vmatpush.bf16.msra.mxu0 0
    %407 = vmatpush.bf16.msra.mxu0 %v293
    %408 = vmatpush.bf16.msra.mxu0 %v289
    %409 = vmatmul.bf16.gmra.mxu0 %v386
    %v410 = vpop.f32.mrf.mxu0
    %v411 = vadd.f32 0.0, %v410
    %v412 = vpop.f32.mrf.mxu0
    %413 = vdwg.mxu0
    %414 = vmatpush.bf16.msra.mxu0 0
    %415 = vmatpush.bf16.msra.mxu0 0
    %416 = vmatpush.bf16.msra.mxu0 0
    %417 = vmatpush.bf16.msra.mxu0 0
    %418 = vmatpush.bf16.msra.mxu0 0
    %419 = vmatpush.bf16.msra.mxu0 0
    %420 = vmatpush.bf16.msra.mxu0 %v294
    %421 = vmatpush.bf16.msra.mxu0 %v290
    %422 = vmatmul.bf16.gmra.mxu0 %v386
    %v423 = vpop.f32.mrf.mxu0
    %v424 = vadd.f32 0.0, %v423
    %v425 = vpop.f32.mrf.mxu0
    %426 = vdwg.mxu0
    %427 = vmatpush.bf16.msra.mxu0 0
    %428 = vmatpush.bf16.msra.mxu0 0
    %429 = vmatpush.bf16.msra.mxu0 0
    %430 = vmatpush.bf16.msra.mxu0 0
    %431 = vmatpush.bf16.msra.mxu0 0
    %432 = vmatpush.bf16.msra.mxu0 0
    %433 = vmatpush.bf16.msra.mxu0 %v295
    %434 = vmatpush.bf16.msra.mxu0 %v291
    %435 = vmatmul.bf16.gmra.mxu0 %v386
    %v436 = vpop.f32.mrf.mxu0
    %v437 = vadd.f32 0.0, %v436
    %v438 = vpop.f32.mrf.mxu0
    %439 = vdwg.mxu0
    %v444 = vrot.slane %v398, 6
    %v445 = vrot.slane %v411, 6
    %v446 = vrot.slane %v424, 6
    %v447 = vrot.slane %v437, 6
    %v452 = vadd.f32 %v210, %v444
    %v453 = vadd.f32 %v224, %v445
    %v454 = vadd.f32 %v238, %v446
    %v455 = vadd.f32 %v252, %v447
    %v456 = vmul.f32 %v452, 0.5
    %v457 = vtanh.pop %v456
    %v458 = vmul.f32 %v457, 0.5
    %v459 = vadd.f32 %v458, 0.5
    %v460 = vmul.f32 %v453, 0.5
    %v461 = vtanh.pop %v460
    %v462 = vmul.f32 %v461, 0.5
    %v463 = vadd.f32 %v462, 0.5
    %v464 = vtanh.pop %v454
    %v465 = vmul.f32 %v455, 0.5
    %v466 = vtanh.pop %v465
    %v467 = vmul.f32 %v466, 0.5
    %v468 = vadd.f32 %v467, 0.5
    %v470 = vrot.slane %v379, 6
    %v472 = vmul.f32 %v463, %v470
    %v473 = vmul.f32 %v459, %v464
    %v474 = vadd.f32 %v472, %v473
    %v475 = vtanh.pop %v474
    %v476 = vmul.f32 %v468, %v475
    %v477 = vpack.c.bf16 %v476, %v476
    %vm478 = vcmask 254977
    %479 = vst.msk [vmem:[#allocation2] sm:$0x2] %vm478, %v477
    %v481 = vunpack.c.l.b16 %v477
    %v482 = vpack.c.b16 %v481, %v481
    %v483 = vrot.slane %v482, 1
    %v485 = vsel %vm304, %v483, 0
    %487 = vmatpush.bf16.msra.mxu0 0
    %488 = vmatpush.bf16.msra.mxu0 0
    %489 = vmatpush.bf16.msra.mxu0 0
    %490 = vmatpush.bf16.msra.mxu0 0
    %491 = vmatpush.bf16.msra.mxu0 0
    %492 = vmatpush.bf16.msra.mxu0 0
    %493 = vmatpush.bf16.msra.mxu0 %v292
    %494 = vmatpush.bf16.msra.mxu0 %v288
    %495 = vmatmul.bf16.gmra.mxu0 %v485
    %v496 = vpop.f32.mrf.mxu0
    %v497 = vadd.f32 0.0, %v496
    %v498 = vpop.f32.mrf.mxu0
    %499 = vdwg.mxu0
    %500 = vmatpush.bf16.msra.mxu0 0
    %501 = vmatpush.bf16.msra.mxu0 0
    %502 = vmatpush.bf16.msra.mxu0 0
    %503 = vmatpush.bf16.msra.mxu0 0
    %504 = vmatpush.bf16.msra.mxu0 0
    %505 = vmatpush.bf16.msra.mxu0 0
    %506 = vmatpush.bf16.msra.mxu0 %v293
    %507 = vmatpush.bf16.msra.mxu0 %v289
    %508 = vmatmul.bf16.gmra.mxu0 %v485
    %v509 = vpop.f32.mrf.mxu0
    %v510 = vadd.f32 0.0, %v509
    %v511 = vpop.f32.mrf.mxu0
    %512 = vdwg.mxu0
    %513 = vmatpush.bf16.msra.mxu0 0
    %514 = vmatpush.bf16.msra.mxu0 0
    %515 = vmatpush.bf16.msra.mxu0 0
    %516 = vmatpush.bf16.msra.mxu0 0
    %517 = vmatpush.bf16.msra.mxu0 0
    %518 = vmatpush.bf16.msra.mxu0 0
    %519 = vmatpush.bf16.msra.mxu0 %v294
    %520 = vmatpush.bf16.msra.mxu0 %v290
    %521 = vmatmul.bf16.gmra.mxu0 %v485
    %v522 = vpop.f32.mrf.mxu0
    %v523 = vadd.f32 0.0, %v522
    %v524 = vpop.f32.mrf.mxu0
    %525 = vdwg.mxu0
    %526 = vmatpush.bf16.msra.mxu0 0
    %527 = vmatpush.bf16.msra.mxu0 0
    %528 = vmatpush.bf16.msra.mxu0 0
    %529 = vmatpush.bf16.msra.mxu0 0
    %530 = vmatpush.bf16.msra.mxu0 0
    %531 = vmatpush.bf16.msra.mxu0 0
    %532 = vmatpush.bf16.msra.mxu0 %v295
    %533 = vmatpush.bf16.msra.mxu0 %v291
    %534 = vmatmul.bf16.gmra.mxu0 %v485
    %v535 = vpop.f32.mrf.mxu0
    %v536 = vadd.f32 0.0, %v535
    %v537 = vpop.f32.mrf.mxu0
    %538 = vdwg.mxu0
    %v543 = vrot.slane %v497, 4
    %v544 = vrot.slane %v510, 4
    %v545 = vrot.slane %v523, 4
    %v546 = vrot.slane %v536, 4
    %v551 = vadd.f32 %v210, %v543
    %v552 = vadd.f32 %v224, %v544
    %v553 = vadd.f32 %v238, %v545
    %v554 = vadd.f32 %v252, %v546
    %v555 = vmul.f32 %v551, 0.5
    %v556 = vtanh.pop %v555
    %v557 = vmul.f32 %v556, 0.5
    %v558 = vadd.f32 %v557, 0.5
    %v559 = vmul.f32 %v552, 0.5
    %v560 = vtanh.pop %v559
    %v561 = vmul.f32 %v560, 0.5
    %v562 = vadd.f32 %v561, 0.5
    %v563 = vtanh.pop %v553
    %v564 = vmul.f32 %v554, 0.5
    %v565 = vtanh.pop %v564
    %v566 = vmul.f32 %v565, 0.5
    %v567 = vadd.f32 %v566, 0.5
    %v569 = vrot.slane %v474, 6
    %v571 = vmul.f32 %v562, %v569
    %v572 = vmul.f32 %v558, %v563
    %v573 = vadd.f32 %v571, %v572
    %v574 = vtanh.pop %v573
    %v575 = vmul.f32 %v567, %v574
    %v576 = vpack.c.bf16 %v575, %v575
    %vm577 = vcmask 256002
    %578 = vst.msk [vmem:[#allocation2] sm:$0x4] %vm577, %v576
    %v580 = vunpack.c.l.b16 %v576
    %v581 = vpack.c.b16 %v580, %v580
    %v582 = vrot.slane %v581, 2
    %v584 = vsel %vm304, %v582, 0
    %586 = vmatpush.bf16.msra.mxu0 0
    %587 = vmatpush.bf16.msra.mxu0 0
    %588 = vmatpush.bf16.msra.mxu0 0
    %589 = vmatpush.bf16.msra.mxu0 0
    %590 = vmatpush.bf16.msra.mxu0 0
    %591 = vmatpush.bf16.msra.mxu0 0
    %592 = vmatpush.bf16.msra.mxu0 %v292
    %593 = vmatpush.bf16.msra.mxu0 %v288
    %594 = vmatmul.bf16.gmra.mxu0 %v584
    %v595 = vpop.f32.mrf.mxu0
    %v596 = vadd.f32 0.0, %v595
    %v597 = vpop.f32.mrf.mxu0
    %598 = vdwg.mxu0
    %599 = vmatpush.bf16.msra.mxu0 0
    %600 = vmatpush.bf16.msra.mxu0 0
    %601 = vmatpush.bf16.msra.mxu0 0
    %602 = vmatpush.bf16.msra.mxu0 0
    %603 = vmatpush.bf16.msra.mxu0 0
    %604 = vmatpush.bf16.msra.mxu0 0
    %605 = vmatpush.bf16.msra.mxu0 %v293
    %606 = vmatpush.bf16.msra.mxu0 %v289
    %607 = vmatmul.bf16.gmra.mxu0 %v584
    %v608 = vpop.f32.mrf.mxu0
    %v609 = vadd.f32 0.0, %v608
    %v610 = vpop.f32.mrf.mxu0
    %611 = vdwg.mxu0
    %612 = vmatpush.bf16.msra.mxu0 0
    %613 = vmatpush.bf16.msra.mxu0 0
    %614 = vmatpush.bf16.msra.mxu0 0
    %615 = vmatpush.bf16.msra.mxu0 0
    %616 = vmatpush.bf16.msra.mxu0 0
    %617 = vmatpush.bf16.msra.mxu0 0
    %618 = vmatpush.bf16.msra.mxu0 %v294
    %619 = vmatpush.bf16.msra.mxu0 %v290
    %620 = vmatmul.bf16.gmra.mxu0 %v584
    %v621 = vpop.f32.mrf.mxu0
    %v622 = vadd.f32 0.0, %v621
    %v623 = vpop.f32.mrf.mxu0
    %624 = vdwg.mxu0
    %625 = vmatpush.bf16.msra.mxu0 0
    %626 = vmatpush.bf16.msra.mxu0 0
    %627 = vmatpush.bf16.msra.mxu0 0
    %628 = vmatpush.bf16.msra.mxu0 0
    %629 = vmatpush.bf16.msra.mxu0 0
    %630 = vmatpush.bf16.msra.mxu0 0
    %631 = vmatpush.bf16.msra.mxu0 %v295
    %632 = vmatpush.bf16.msra.mxu0 %v291
    %633 = vmatmul.bf16.gmra.mxu0 %v584
    %v634 = vpop.f32.mrf.mxu0
    %v635 = vadd.f32 0.0, %v634
    %v636 = vpop.f32.mrf.mxu0
    %637 = vdwg.mxu0
    %v642 = vrot.slane %v596, 2
    %v643 = vrot.slane %v609, 2
    %v644 = vrot.slane %v622, 2
    %v645 = vrot.slane %v635, 2
    %v650 = vadd.f32 %v210, %v642
    %v651 = vadd.f32 %v224, %v643
    %v652 = vadd.f32 %v238, %v644
    %v653 = vadd.f32 %v252, %v645
    %v654 = vmul.f32 %v650, 0.5
    %v655 = vtanh.pop %v654
    %v656 = vmul.f32 %v655, 0.5
    %v657 = vadd.f32 %v656, 0.5
    %v658 = vmul.f32 %v651, 0.5
    %v659 = vtanh.pop %v658
    %v660 = vmul.f32 %v659, 0.5
    %v661 = vadd.f32 %v660, 0.5
    %v662 = vtanh.pop %v652
    %v663 = vmul.f32 %v653, 0.5
    %v664 = vtanh.pop %v663
    %v665 = vmul.f32 %v664, 0.5
    %v666 = vadd.f32 %v665, 0.5
    %v668 = vrot.slane %v573, 6
    %v670 = vmul.f32 %v661, %v668
    %v671 = vmul.f32 %v657, %v662
    %v672 = vadd.f32 %v670, %v671
    %v673 = vtanh.pop %v672
    %v674 = vmul.f32 %v666, %v673
    %v675 = vpack.c.bf16 %v674, %v674
    %vm676 = vcmask 257027
    %677 = vst.msk [vmem:[#allocation2] sm:$0x8] %vm676, %v675
    %v679 = vunpack.c.l.b16 %v675
    %v680 = vpack.c.b16 %v679, %v679
    %v681 = vrot.slane %v680, 3
    %v683 = vsel %vm304, %v681, 0
    %685 = vmatpush.bf16.msra.mxu0 0
    %686 = vmatpush.bf16.msra.mxu0 0
    %687 = vmatpush.bf16.msra.mxu0 0
    %688 = vmatpush.bf16.msra.mxu0 0
    %689 = vmatpush.bf16.msra.mxu0 0
    %690 = vmatpush.bf16.msra.mxu0 0
    %691 = vmatpush.bf16.msra.mxu0 %v292
    %692 = vmatpush.bf16.msra.mxu0 %v288
    %693 = vmatmul.bf16.gmra.mxu0 %v683
    %v694 = vpop.f32.mrf.mxu0
    %v695 = vadd.f32 0.0, %v694
    %v696 = vpop.f32.mrf.mxu0
    %697 = vdwg.mxu0
    %698 = vmatpush.bf16.msra.mxu0 0
    %699 = vmatpush.bf16.msra.mxu0 0
    %700 = vmatpush.bf16.msra.mxu0 0
    %701 = vmatpush.bf16.msra.mxu0 0
    %702 = vmatpush.bf16.msra.mxu0 0
    %703 = vmatpush.bf16.msra.mxu0 0
    %704 = vmatpush.bf16.msra.mxu0 %v293
    %705 = vmatpush.bf16.msra.mxu0 %v289
    %706 = vmatmul.bf16.gmra.mxu0 %v683
    %v707 = vpop.f32.mrf.mxu0
    %v708 = vadd.f32 0.0, %v707
    %v709 = vpop.f32.mrf.mxu0
    %710 = vdwg.mxu0
    %711 = vmatpush.bf16.msra.mxu0 0
    %712 = vmatpush.bf16.msra.mxu0 0
    %713 = vmatpush.bf16.msra.mxu0 0
    %714 = vmatpush.bf16.msra.mxu0 0
    %715 = vmatpush.bf16.msra.mxu0 0
    %716 = vmatpush.bf16.msra.mxu0 0
    %717 = vmatpush.bf16.msra.mxu0 %v294
    %718 = vmatpush.bf16.msra.mxu0 %v290
    %719 = vmatmul.bf16.gmra.mxu0 %v683
    %v720 = vpop.f32.mrf.mxu0
    %v721 = vadd.f32 0.0, %v720
    %v722 = vpop.f32.mrf.mxu0
    %723 = vdwg.mxu0
    %724 = vmatpush.bf16.msra.mxu0 0
    %725 = vmatpush.bf16.msra.mxu0 0
    %726 = vmatpush.bf16.msra.mxu0 0
    %727 = vmatpush.bf16.msra.mxu0 0
    %728 = vmatpush.bf16.msra.mxu0 0
    %729 = vmatpush.bf16.msra.mxu0 0
    %730 = vmatpush.bf16.msra.mxu0 %v295
    %731 = vmatpush.bf16.msra.mxu0 %v291
    %732 = vmatmul.bf16.gmra.mxu0 %v683
    %v733 = vpop.f32.mrf.mxu0
    %v734 = vadd.f32 0.0, %v733
    %v735 = vpop.f32.mrf.mxu0
    %736 = vdwg.mxu0
    %v737 = vadd.f32 %v212, %v695
    %v738 = vadd.f32 %v226, %v708
    %v739 = vadd.f32 %v240, %v721
    %v740 = vadd.f32 %v254, %v734
    %v741 = vmul.f32 %v737, 0.5
    %v742 = vtanh.pop %v741
    %v743 = vmul.f32 %v742, 0.5
    %v744 = vadd.f32 %v743, 0.5
    %v745 = vmul.f32 %v738, 0.5
    %v746 = vtanh.pop %v745
    %v747 = vmul.f32 %v746, 0.5
    %v748 = vadd.f32 %v747, 0.5
    %v749 = vtanh.pop %v739
    %v750 = vmul.f32 %v740, 0.5
    %v751 = vtanh.pop %v750
    %v752 = vmul.f32 %v751, 0.5
    %v753 = vadd.f32 %v752, 0.5
    %v755 = vrot.slane %v672, 6
    %v757 = vmul.f32 %v748, %v755
    %v758 = vmul.f32 %v744, %v749
    %v759 = vadd.f32 %v757, %v758
    %v760 = vtanh.pop %v759
    %v761 = vmul.f32 %v753, %v760
    %v762 = vpack.c.bf16 %v761, %v761
    %763 = vst.msk [vmem:[#allocation2 + $0x4] sm:$0x1] %vm383, %v762
    %v765 = vsel %vm304, %v762, 0
    %767 = vmatpush.bf16.msra.mxu0 0
    %768 = vmatpush.bf16.msra.mxu0 0
    %769 = vmatpush.bf16.msra.mxu0 0
    %770 = vmatpush.bf16.msra.mxu0 0
    %771 = vmatpush.bf16.msra.mxu0 0
    %772 = vmatpush.bf16.msra.mxu0 0
    %773 = vmatpush.bf16.msra.mxu0 %v292
    %774 = vmatpush.bf16.msra.mxu0 %v288
    %775 = vmatmul.bf16.gmra.mxu0 %v765
    %v776 = vpop.f32.mrf.mxu0
    %v777 = vadd.f32 0.0, %v776
    %v778 = vpop.f32.mrf.mxu0
    %779 = vdwg.mxu0
    %780 = vmatpush.bf16.msra.mxu0 0
    %781 = vmatpush.bf16.msra.mxu0 0
    %782 = vmatpush.bf16.msra.mxu0 0
    %783 = vmatpush.bf16.msra.mxu0 0
    %784 = vmatpush.bf16.msra.mxu0 0
    %785 = vmatpush.bf16.msra.mxu0 0
    %786 = vmatpush.bf16.msra.mxu0 %v293
    %787 = vmatpush.bf16.msra.mxu0 %v289
    %788 = vmatmul.bf16.gmra.mxu0 %v765
    %v789 = vpop.f32.mrf.mxu0
    %v790 = vadd.f32 0.0, %v789
    %v791 = vpop.f32.mrf.mxu0
    %792 = vdwg.mxu0
    %793 = vmatpush.bf16.msra.mxu0 0
    %794 = vmatpush.bf16.msra.mxu0 0
    %795 = vmatpush.bf16.msra.mxu0 0
    %796 = vmatpush.bf16.msra.mxu0 0
    %797 = vmatpush.bf16.msra.mxu0 0
    %798 = vmatpush.bf16.msra.mxu0 0
    %799 = vmatpush.bf16.msra.mxu0 %v294
    %800 = vmatpush.bf16.msra.mxu0 %v290
    %801 = vmatmul.bf16.gmra.mxu0 %v765
    %v802 = vpop.f32.mrf.mxu0
    %v803 = vadd.f32 0.0, %v802
    %v804 = vpop.f32.mrf.mxu0
    %805 = vdwg.mxu0
    %806 = vmatpush.bf16.msra.mxu0 0
    %807 = vmatpush.bf16.msra.mxu0 0
    %808 = vmatpush.bf16.msra.mxu0 0
    %809 = vmatpush.bf16.msra.mxu0 0
    %810 = vmatpush.bf16.msra.mxu0 0
    %811 = vmatpush.bf16.msra.mxu0 0
    %812 = vmatpush.bf16.msra.mxu0 %v295
    %813 = vmatpush.bf16.msra.mxu0 %v291
    %814 = vmatmul.bf16.gmra.mxu0 %v765
    %v815 = vpop.f32.mrf.mxu0
    %v816 = vadd.f32 0.0, %v815
    %v817 = vpop.f32.mrf.mxu0
    %818 = vdwg.mxu0
    %v823 = vrot.slane %v777, 6
    %v824 = vrot.slane %v790, 6
    %v825 = vrot.slane %v803, 6
    %v826 = vrot.slane %v816, 6
    %v831 = vadd.f32 %v212, %v823
    %v832 = vadd.f32 %v226, %v824
    %v833 = vadd.f32 %v240, %v825
    %v834 = vadd.f32 %v254, %v826
    %v835 = vmul.f32 %v831, 0.5
    %v836 = vtanh.pop %v835
    %v837 = vmul.f32 %v836, 0.5
    %v838 = vadd.f32 %v837, 0.5
    %v839 = vmul.f32 %v832, 0.5
    %v840 = vtanh.pop %v839
    %v841 = vmul.f32 %v840, 0.5
    %v842 = vadd.f32 %v841, 0.5
    %v843 = vtanh.pop %v833
    %v844 = vmul.f32 %v834, 0.5
    %v845 = vtanh.pop %v844
    %v846 = vmul.f32 %v845, 0.5
    %v847 = vadd.f32 %v846, 0.5
    %v849 = vrot.slane %v759, 6
    %v851 = vmul.f32 %v842, %v849
    %v852 = vmul.f32 %v838, %v843
    %v853 = vadd.f32 %v851, %v852
    %v854 = vtanh.pop %v853
    %v855 = vmul.f32 %v847, %v854
    %v856 = vpack.c.bf16 %v855, %v855
    %857 = vst.msk [vmem:[#allocation2 + $0x4] sm:$0x2] %vm478, %v856
    %v859 = vunpack.c.l.b16 %v856
    %v860 = vpack.c.b16 %v859, %v859
    %v861 = vrot.slane %v860, 1
    %v863 = vsel %vm304, %v861, 0
    %865 = vmatpush.bf16.msra.mxu0 0
    %866 = vmatpush.bf16.msra.mxu0 0
    %867 = vmatpush.bf16.msra.mxu0 0
    %868 = vmatpush.bf16.msra.mxu0 0
    %869 = vmatpush.bf16.msra.mxu0 0
    %870 = vmatpush.bf16.msra.mxu0 0
    %871 = vmatpush.bf16.msra.mxu0 %v292
    %872 = vmatpush.bf16.msra.mxu0 %v288
    %873 = vmatmul.bf16.gmra.mxu0 %v863
    %v874 = vpop.f32.mrf.mxu0
    %v875 = vadd.f32 0.0, %v874
    %v876 = vpop.f32.mrf.mxu0
    %877 = vdwg.mxu0
    %878 = vmatpush.bf16.msra.mxu0 0
    %879 = vmatpush.bf16.msra.mxu0 0
    %880 = vmatpush.bf16.msra.mxu0 0
    %881 = vmatpush.bf16.msra.mxu0 0
    %882 = vmatpush.bf16.msra.mxu0 0
    %883 = vmatpush.bf16.msra.mxu0 0
    %884 = vmatpush.bf16.msra.mxu0 %v293
    %885 = vmatpush.bf16.msra.mxu0 %v289
    %886 = vmatmul.bf16.gmra.mxu0 %v863
    %v887 = vpop.f32.mrf.mxu0
    %v888 = vadd.f32 0.0, %v887
    %v889 = vpop.f32.mrf.mxu0
    %890 = vdwg.mxu0
    %891 = vmatpush.bf16.msra.mxu0 0
    %892 = vmatpush.bf16.msra.mxu0 0
    %893 = vmatpush.bf16.msra.mxu0 0
    %894 = vmatpush.bf16.msra.mxu0 0
    %895 = vmatpush.bf16.msra.mxu0 0
    %896 = vmatpush.bf16.msra.mxu0 0
    %897 = vmatpush.bf16.msra.mxu0 %v294
    %898 = vmatpush.bf16.msra.mxu0 %v290
    %899 = vmatmul.bf16.gmra.mxu0 %v863
    %v900 = vpop.f32.mrf.mxu0
    %v901 = vadd.f32 0.0, %v900
    %v902 = vpop.f32.mrf.mxu0
    %903 = vdwg.mxu0
    %904 = vmatpush.bf16.msra.mxu0 0
    %905 = vmatpush.bf16.msra.mxu0 0
    %906 = vmatpush.bf16.msra.mxu0 0
    %907 = vmatpush.bf16.msra.mxu0 0
    %908 = vmatpush.bf16.msra.mxu0 0
    %909 = vmatpush.bf16.msra.mxu0 0
    %910 = vmatpush.bf16.msra.mxu0 %v295
    %911 = vmatpush.bf16.msra.mxu0 %v291
    %912 = vmatmul.bf16.gmra.mxu0 %v863
    %v913 = vpop.f32.mrf.mxu0
    %v914 = vadd.f32 0.0, %v913
    %v915 = vpop.f32.mrf.mxu0
    %916 = vdwg.mxu0
    %v921 = vrot.slane %v875, 4
    %v922 = vrot.slane %v888, 4
    %v923 = vrot.slane %v901, 4
    %v924 = vrot.slane %v914, 4
    %v929 = vadd.f32 %v212, %v921
    %v930 = vadd.f32 %v226, %v922
    %v931 = vadd.f32 %v240, %v923
    %v932 = vadd.f32 %v254, %v924
    %v933 = vmul.f32 %v929, 0.5
    %v934 = vtanh.pop %v933
    %v935 = vmul.f32 %v934, 0.5
    %v936 = vadd.f32 %v935, 0.5
    %v937 = vmul.f32 %v930, 0.5
    %v938 = vtanh.pop %v937
    %v939 = vmul.f32 %v938, 0.5
    %v940 = vadd.f32 %v939, 0.5
    %v941 = vtanh.pop %v931
    %v942 = vmul.f32 %v932, 0.5
    %v943 = vtanh.pop %v942
    %v944 = vmul.f32 %v943, 0.5
    %v945 = vadd.f32 %v944, 0.5
    %v947 = vrot.slane %v853, 6
    %v949 = vmul.f32 %v940, %v947
    %v950 = vmul.f32 %v936, %v941
    %v951 = vadd.f32 %v949, %v950
    %v952 = vtanh.pop %v951
    %v953 = vmul.f32 %v945, %v952
    %v954 = vpack.c.bf16 %v953, %v953
    %955 = vst.msk [vmem:[#allocation2 + $0x4] sm:$0x4] %vm577, %v954
    %v957 = vunpack.c.l.b16 %v954
    %v958 = vpack.c.b16 %v957, %v957
    %v959 = vrot.slane %v958, 2
    %v961 = vsel %vm304, %v959, 0
    %963 = vmatpush.bf16.msra.mxu0 0
    %964 = vmatpush.bf16.msra.mxu0 0
    %965 = vmatpush.bf16.msra.mxu0 0
    %966 = vmatpush.bf16.msra.mxu0 0
    %967 = vmatpush.bf16.msra.mxu0 0
    %968 = vmatpush.bf16.msra.mxu0 0
    %969 = vmatpush.bf16.msra.mxu0 %v292
    %970 = vmatpush.bf16.msra.mxu0 %v288
    %971 = vmatmul.bf16.gmra.mxu0 %v961
    %v972 = vpop.f32.mrf.mxu0
    %v973 = vadd.f32 0.0, %v972
    %v974 = vpop.f32.mrf.mxu0
    %975 = vdwg.mxu0
    %976 = vmatpush.bf16.msra.mxu0 0
    %977 = vmatpush.bf16.msra.mxu0 0
    %978 = vmatpush.bf16.msra.mxu0 0
    %979 = vmatpush.bf16.msra.mxu0 0
    %980 = vmatpush.bf16.msra.mxu0 0
    %981 = vmatpush.bf16.msra.mxu0 0
    %982 = vmatpush.bf16.msra.mxu0 %v293
    %983 = vmatpush.bf16.msra.mxu0 %v289
    %984 = vmatmul.bf16.gmra.mxu0 %v961
    %v985 = vpop.f32.mrf.mxu0
    %v986 = vadd.f32 0.0, %v985
    %v987 = vpop.f32.mrf.mxu0
    %988 = vdwg.mxu0
    %989 = vmatpush.bf16.msra.mxu0 0
    %990 = vmatpush.bf16.msra.mxu0 0
    %991 = vmatpush.bf16.msra.mxu0 0
    %992 = vmatpush.bf16.msra.mxu0 0
    %993 = vmatpush.bf16.msra.mxu0 0
    %994 = vmatpush.bf16.msra.mxu0 0
    %995 = vmatpush.bf16.msra.mxu0 %v294
    %996 = vmatpush.bf16.msra.mxu0 %v290
    %997 = vmatmul.bf16.gmra.mxu0 %v961
    %v998 = vpop.f32.mrf.mxu0
    %v999 = vadd.f32 0.0, %v998
    %v1000 = vpop.f32.mrf.mxu0
    %1001 = vdwg.mxu0
    %1002 = vmatpush.bf16.msra.mxu0 0
    %1003 = vmatpush.bf16.msra.mxu0 0
    %1004 = vmatpush.bf16.msra.mxu0 0
    %1005 = vmatpush.bf16.msra.mxu0 0
    %1006 = vmatpush.bf16.msra.mxu0 0
    %1007 = vmatpush.bf16.msra.mxu0 0
    %1008 = vmatpush.bf16.msra.mxu0 %v295
    %1009 = vmatpush.bf16.msra.mxu0 %v291
    %1010 = vmatmul.bf16.gmra.mxu0 %v961
    %v1011 = vpop.f32.mrf.mxu0
    %v1012 = vadd.f32 0.0, %v1011
    %v1013 = vpop.f32.mrf.mxu0
    %1014 = vdwg.mxu0
    %v1019 = vrot.slane %v973, 2
    %v1020 = vrot.slane %v986, 2
    %v1021 = vrot.slane %v999, 2
    %v1022 = vrot.slane %v1012, 2
    %v1027 = vadd.f32 %v212, %v1019
    %v1028 = vadd.f32 %v226, %v1020
    %v1029 = vadd.f32 %v240, %v1021
    %v1030 = vadd.f32 %v254, %v1022
    %v1031 = vmul.f32 %v1027, 0.5
    %v1032 = vtanh.pop %v1031
    %v1033 = vmul.f32 %v1032, 0.5
    %v1034 = vadd.f32 %v1033, 0.5
    %v1035 = vmul.f32 %v1028, 0.5
    %v1036 = vtanh.pop %v1035
    %v1037 = vmul.f32 %v1036, 0.5
    %v1038 = vadd.f32 %v1037, 0.5
    %v1039 = vtanh.pop %v1029
    %v1040 = vmul.f32 %v1030, 0.5
    %v1041 = vtanh.pop %v1040
    %v1042 = vmul.f32 %v1041, 0.5
    %v1043 = vadd.f32 %v1042, 0.5
    %v1045 = vrot.slane %v951, 6
    %v1047 = vmul.f32 %v1038, %v1045
    %v1048 = vmul.f32 %v1034, %v1039
    %v1049 = vadd.f32 %v1047, %v1048
    %v1050 = vtanh.pop %v1049
    %v1051 = vmul.f32 %v1043, %v1050
    %v1052 = vpack.c.bf16 %v1051, %v1051
    %1053 = vst.msk [vmem:[#allocation2 + $0x4] sm:$0x8] %vm676, %v1052
    %v1054 = vld [vmem:[%s3 + $0x4] ss:$0 sm:$0xff]
    %v1055 = vld [vmem:[#allocation3 + $0x200] sm:$0xf]
    %v1056 = vld [vmem:[#allocation3 + $0x210] sm:$0xf]
    %v1057 = vld [vmem:[#allocation3 + $0x220] sm:$0xf]
    %v1058 = vld [vmem:[#allocation3 + $0x230] sm:$0xf]
    %v1060 = vunpack.c.l.b16 %v1052
    %v1061 = vpack.c.b16 %v1060, %v1060
    %v1062 = vrot.slane %v1061, 3
    %v1067 = vunpack.c.l.b16 %v1055
    %v1068 = vunpack.c.l.b16 %v1056
    %v1069 = vunpack.c.l.b16 %v1057
    %v1070 = vunpack.c.l.b16 %v1058
    %v1071 = vpack.c.b16 %v1068, %v1067
    %v1072 = vpack.c.b16 %v1070, %v1069
    %v1076 = vsel %vm304, %v1062, 0
    %1078 = vmatpush.bf16.msra.mxu0 0
    %1079 = vmatpush.bf16.msra.mxu0 0
    %1080 = vmatpush.bf16.msra.mxu0 0
    %1081 = vmatpush.bf16.msra.mxu0 0
    %1082 = vmatpush.bf16.msra.mxu0 0
    %1083 = vmatpush.bf16.msra.mxu0 0
    %1084 = vmatpush.bf16.msra.mxu0 %v1072
    %1085 = vmatpush.bf16.msra.mxu0 %v1071
    %1086 = vmatmul.bf16.gmra.mxu0 %v1076
    %v1087 = vpop.f32.mrf.mxu0
    %v1088 = vadd.f32 0.0, %v1087
    %v1089 = vpop.f32.mrf.mxu0
    %1090 = vdwg.mxu0
    %v1091 = vadd.f32 %v1054, %v1088
    %v1092 = vld [vmem:[#allocation2] sm:$0xf]
    %v1093 = vld [vmem:[#allocation2 + $0x4] sm:$0xf]
    %v1094 = vld [vmem:[#allocation3 + $0x80] sm:$0xff]
    %v1095 = vld [vmem:[#allocation3 + $0x88] sm:$0xff]
    %v1096 = vld [vmem:[#allocation3 + $0x90] sm:$0xff]
    %v1097 = vld [vmem:[#allocation3 + $0x98] sm:$0xff]
    %v1098 = vld [vmem:[#allocation3 + $0xa0] sm:$0xff]
    %v1099 = vld [vmem:[#allocation3 + $0xa8] sm:$0xff]
    %v1100 = vld [vmem:[#allocation3 + $0xb0] sm:$0xff]
    %v1101 = vld [vmem:[#allocation3 + $0xb8] sm:$0xff]
    %s1102 = scalar_lea.vmem %s3, 1
    %v1103 = vld [vmem:[%s1102] ss:$8 sm:$0xf]
    %v1105 = vperm.slane %v1103, 0
    %v1106 = vperm.slane %v1103, 1
    %v1107 = vperm.slane %v1103, 2
    %v1108 = vperm.slane %v1103, 3
    %v1115 = vunpack.c.l.b16 %v1092
    %v1116 = vunpack.c.l.b16 %v1093
    %v1117 = vpack.c.b16 %v1116, %v1115
    %v1126 = vunpack.c.l.b16 %v1094
    %v1127 = vunpack.c.h.b16 %v1094
    %v1128 = vunpack.c.l.b16 %v1095
    %v1129 = vunpack.c.h.b16 %v1095
    %v1130 = vunpack.c.l.b16 %v1096
    %v1131 = vunpack.c.h.b16 %v1096
    %v1132 = vunpack.c.l.b16 %v1097
    %v1133 = vunpack.c.h.b16 %v1097
    %v1134 = vunpack.c.l.b16 %v1098
    %v1135 = vunpack.c.h.b16 %v1098
    %v1136 = vunpack.c.l.b16 %v1099
    %v1137 = vunpack.c.h.b16 %v1099
    %v1138 = vunpack.c.l.b16 %v1100
    %v1139 = vunpack.c.h.b16 %v1100
    %v1140 = vunpack.c.l.b16 %v1101
    %v1141 = vunpack.c.h.b16 %v1101
    %v1142 = vpack.c.b16 %v1130, %v1126
    %v1143 = vpack.c.b16 %v1131, %v1127
    %v1144 = vpack.c.b16 %v1132, %v1128
    %v1145 = vpack.c.b16 %v1133, %v1129
    %v1146 = vpack.c.b16 %v1138, %v1134
    %v1147 = vpack.c.b16 %v1139, %v1135
    %v1148 = vpack.c.b16 %v1140, %v1136
    %v1149 = vpack.c.b16 %v1141, %v1137
    %v1159 = vsel %vm304, %v1117, 0
    %1161 = vmatpush.bf16.msra.mxu0 0
    %1162 = vmatpush.bf16.msra.mxu0 0
    %1163 = vmatpush.bf16.msra.mxu0 0
    %1164 = vmatpush.bf16.msra.mxu0 0
    %1165 = vmatpush.bf16.msra.mxu0 0
    %1166 = vmatpush.bf16.msra.mxu0 0
    %1167 = vmatpush.bf16.msra.mxu0 %v1146
    %1168 = vmatpush.bf16.msra.mxu0 %v1142
    %1169 = vmatmul.bf16.gmra.mxu0 %v1159
    %v1170 = vpop.f32.mrf.mxu0
    %v1171 = vadd.f32 %v1105, %v1170
    %v1172 = vpop.f32.mrf.mxu0
    %v1173 = vadd.f32 %v1105, %v1172
    %1174 = vdwg.mxu0
    %1175 = vmatpush.bf16.msra.mxu0 0
    %1176 = vmatpush.bf16.msra.mxu0 0
    %1177 = vmatpush.bf16.msra.mxu0 0
    %1178 = vmatpush.bf16.msra.mxu0 0
    %1179 = vmatpush.bf16.msra.mxu0 0
    %1180 = vmatpush.bf16.msra.mxu0 0
    %1181 = vmatpush.bf16.msra.mxu0 %v1147
    %1182 = vmatpush.bf16.msra.mxu0 %v1143
    %1183 = vmatmul.bf16.gmra.mxu0 %v1159
    %v1184 = vpop.f32.mrf.mxu0
    %v1185 = vadd.f32 %v1106, %v1184
    %v1186 = vpop.f32.mrf.mxu0
    %v1187 = vadd.f32 %v1106, %v1186
    %1188 = vdwg.mxu0
    %1189 = vmatpush.bf16.msra.mxu0 0
    %1190 = vmatpush.bf16.msra.mxu0 0
    %1191 = vmatpush.bf16.msra.mxu0 0
    %1192 = vmatpush.bf16.msra.mxu0 0
    %1193 = vmatpush.bf16.msra.mxu0 0
    %1194 = vmatpush.bf16.msra.mxu0 0
    %1195 = vmatpush.bf16.msra.mxu0 %v1148
    %1196 = vmatpush.bf16.msra.mxu0 %v1144
    %1197 = vmatmul.bf16.gmra.mxu0 %v1159
    %v1198 = vpop.f32.mrf.mxu0
    %v1199 = vadd.f32 %v1107, %v1198
    %v1200 = vpop.f32.mrf.mxu0
    %v1201 = vadd.f32 %v1107, %v1200
    %1202 = vdwg.mxu0
    %1203 = vmatpush.bf16.msra.mxu0 0
    %1204 = vmatpush.bf16.msra.mxu0 0
    %1205 = vmatpush.bf16.msra.mxu0 0
    %1206 = vmatpush.bf16.msra.mxu0 0
    %1207 = vmatpush.bf16.msra.mxu0 0
    %1208 = vmatpush.bf16.msra.mxu0 0
    %1209 = vmatpush.bf16.msra.mxu0 %v1149
    %1210 = vmatpush.bf16.msra.mxu0 %v1145
    %1211 = vmatmul.bf16.gmra.mxu0 %v1159
    %v1212 = vpop.f32.mrf.mxu0
    %v1213 = vadd.f32 %v1108, %v1212
    %v1214 = vpop.f32.mrf.mxu0
    %v1215 = vadd.f32 %v1108, %v1214
    %1216 = vdwg.mxu0
    %v1217 = vld [vmem:[#allocation3 + $0xc0] sm:$0xff]
    %v1218 = vld [vmem:[#allocation3 + $0xc8] sm:$0xff]
    %v1219 = vld [vmem:[#allocation3 + $0xd0] sm:$0xff]
    %v1220 = vld [vmem:[#allocation3 + $0xd8] sm:$0xff]
    %v1221 = vld [vmem:[#allocation3 + $0xe0] sm:$0xff]
    %v1222 = vld [vmem:[#allocation3 + $0xe8] sm:$0xff]
    %v1223 = vld [vmem:[#allocation3 + $0xf0] sm:$0xff]
    %v1224 = vld [vmem:[#allocation3 + $0xf8] sm:$0xff]
    %v1233 = vunpack.c.l.b16 %v1217
    %v1234 = vunpack.c.h.b16 %v1217
    %v1235 = vunpack.c.l.b16 %v1218
    %v1236 = vunpack.c.h.b16 %v1218
    %v1237 = vunpack.c.l.b16 %v1219
    %v1238 = vunpack.c.h.b16 %v1219
    %v1239 = vunpack.c.l.b16 %v1220
    %v1240 = vunpack.c.h.b16 %v1220
    %v1241 = vunpack.c.l.b16 %v1221
    %v1242 = vunpack.c.h.b16 %v1221
    %v1243 = vunpack.c.l.b16 %v1222
    %v1244 = vunpack.c.h.b16 %v1222
    %v1245 = vunpack.c.l.b16 %v1223
    %v1246 = vunpack.c.h.b16 %v1223
    %v1247 = vunpack.c.l.b16 %v1224
    %v1248 = vunpack.c.h.b16 %v1224
    %v1249 = vpack.c.b16 %v1237, %v1233
    %v1250 = vpack.c.b16 %v1238, %v1234
    %v1251 = vpack.c.b16 %v1239, %v1235
    %v1252 = vpack.c.b16 %v1240, %v1236
    %v1253 = vpack.c.b16 %v1245, %v1241
    %v1254 = vpack.c.b16 %v1246, %v1242
    %v1255 = vpack.c.b16 %v1247, %v1243
    %v1256 = vpack.c.b16 %v1248, %v1244
    %1265 = vmatpush.bf16.msra.mxu0 0
    %1266 = vmatpush.bf16.msra.mxu0 0
    %1267 = vmatpush.bf16.msra.mxu0 0
    %1268 = vmatpush.bf16.msra.mxu0 0
    %1269 = vmatpush.bf16.msra.mxu0 0
    %1270 = vmatpush.bf16.msra.mxu0 0
    %1271 = vmatpush.bf16.msra.mxu0 %v1253
    %1272 = vmatpush.bf16.msra.mxu0 %v1249
    %1273 = vmatmul.bf16.gmra.mxu0 %v306
    %v1274 = vpop.f32.mrf.mxu0
    %v1275 = vadd.f32 0.0, %v1274
    %v1276 = vpop.f32.mrf.mxu0
    %1277 = vdwg.mxu0
    %1278 = vmatpush.bf16.msra.mxu0 0
    %1279 = vmatpush.bf16.msra.mxu0 0
    %1280 = vmatpush.bf16.msra.mxu0 0
    %1281 = vmatpush.bf16.msra.mxu0 0
    %1282 = vmatpush.bf16.msra.mxu0 0
    %1283 = vmatpush.bf16.msra.mxu0 0
    %1284 = vmatpush.bf16.msra.mxu0 %v1254
    %1285 = vmatpush.bf16.msra.mxu0 %v1250
    %1286 = vmatmul.bf16.gmra.mxu0 %v306
    %v1287 = vpop.f32.mrf.mxu0
    %v1288 = vadd.f32 0.0, %v1287
    %v1289 = vpop.f32.mrf.mxu0
    %1290 = vdwg.mxu0
    %1291 = vmatpush.bf16.msra.mxu0 0
    %1292 = vmatpush.bf16.msra.mxu0 0
    %1293 = vmatpush.bf16.msra.mxu0 0
    %1294 = vmatpush.bf16.msra.mxu0 0
    %1295 = vmatpush.bf16.msra.mxu0 0
    %1296 = vmatpush.bf16.msra.mxu0 0
    %1297 = vmatpush.bf16.msra.mxu0 %v1255
    %1298 = vmatpush.bf16.msra.mxu0 %v1251
    %1299 = vmatmul.bf16.gmra.mxu0 %v306
    %v1300 = vpop.f32.mrf.mxu0
    %v1301 = vadd.f32 0.0, %v1300
    %v1302 = vpop.f32.mrf.mxu0
    %1303 = vdwg.mxu0
    %1304 = vmatpush.bf16.msra.mxu0 0
    %1305 = vmatpush.bf16.msra.mxu0 0
    %1306 = vmatpush.bf16.msra.mxu0 0
    %1307 = vmatpush.bf16.msra.mxu0 0
    %1308 = vmatpush.bf16.msra.mxu0 0
    %1309 = vmatpush.bf16.msra.mxu0 0
    %1310 = vmatpush.bf16.msra.mxu0 %v1256
    %1311 = vmatpush.bf16.msra.mxu0 %v1252
    %1312 = vmatmul.bf16.gmra.mxu0 %v306
    %v1313 = vpop.f32.mrf.mxu0
    %v1314 = vadd.f32 0.0, %v1313
    %v1315 = vpop.f32.mrf.mxu0
    %1316 = vdwg.mxu0
    %v1317 = vadd.f32 %v1171, %v1275
    %v1318 = vadd.f32 %v1185, %v1288
    %v1319 = vadd.f32 %v1199, %v1301
    %v1320 = vadd.f32 %v1213, %v1314
    %v1321 = vmul.f32 %v1317, 0.5
    %v1322 = vtanh.pop %v1321
    %v1323 = vmul.f32 %v1322, 0.5
    %v1324 = vadd.f32 %v1323, 0.5
    %v1325 = vmul.f32 %v1318, 0.5
    %v1326 = vtanh.pop %v1325
    %v1327 = vmul.f32 %v1326, 0.5
    %v1328 = vadd.f32 %v1327, 0.5
    %v1329 = vtanh.pop %v1319
    %v1330 = vmul.f32 %v1320, 0.5
    %v1331 = vtanh.pop %v1330
    %v1332 = vmul.f32 %v1331, 0.5
    %v1333 = vadd.f32 %v1332, 0.5
    %v1334 = vmul.f32 %v1328, 0.0
    %v1335 = vmul.f32 %v1324, %v1329
    %v1336 = vadd.f32 %v1334, %v1335
    %v1337 = vtanh.pop %v1336
    %v1338 = vmul.f32 %v1333, %v1337
    %v1339 = vpack.c.bf16 %v1338, %v1338
    %1340 = vst.msk [vmem:[#allocation2] sm:$0x1] %vm383, %v1339
    %v1342 = vsel %vm304, %v1339, 0
    %1344 = vmatpush.bf16.msra.mxu0 0
    %1345 = vmatpush.bf16.msra.mxu0 0
    %1346 = vmatpush.bf16.msra.mxu0 0
    %1347 = vmatpush.bf16.msra.mxu0 0
    %1348 = vmatpush.bf16.msra.mxu0 0
    %1349 = vmatpush.bf16.msra.mxu0 0
    %1350 = vmatpush.bf16.msra.mxu0 %v1253
    %1351 = vmatpush.bf16.msra.mxu0 %v1249
    %1352 = vmatmul.bf16.gmra.mxu0 %v1342
    %v1353 = vpop.f32.mrf.mxu0
    %v1354 = vadd.f32 0.0, %v1353
    %v1355 = vpop.f32.mrf.mxu0
    %1356 = vdwg.mxu0
    %1357 = vmatpush.bf16.msra.mxu0 0
    %1358 = vmatpush.bf16.msra.mxu0 0
    %1359 = vmatpush.bf16.msra.mxu0 0
    %1360 = vmatpush.bf16.msra.mxu0 0
    %1361 = vmatpush.bf16.msra.mxu0 0
    %1362 = vmatpush.bf16.msra.mxu0 0
    %1363 = vmatpush.bf16.msra.mxu0 %v1254
    %1364 = vmatpush.bf16.msra.mxu0 %v1250
    %1365 = vmatmul.bf16.gmra.mxu0 %v1342
    %v1366 = vpop.f32.mrf.mxu0
    %v1367 = vadd.f32 0.0, %v1366
    %v1368 = vpop.f32.mrf.mxu0
    %1369 = vdwg.mxu0
    %1370 = vmatpush.bf16.msra.mxu0 0
    %1371 = vmatpush.bf16.msra.mxu0 0
    %1372 = vmatpush.bf16.msra.mxu0 0
    %1373 = vmatpush.bf16.msra.mxu0 0
    %1374 = vmatpush.bf16.msra.mxu0 0
    %1375 = vmatpush.bf16.msra.mxu0 0
    %1376 = vmatpush.bf16.msra.mxu0 %v1255
    %1377 = vmatpush.bf16.msra.mxu0 %v1251
    %1378 = vmatmul.bf16.gmra.mxu0 %v1342
    %v1379 = vpop.f32.mrf.mxu0
    %v1380 = vadd.f32 0.0, %v1379
    %v1381 = vpop.f32.mrf.mxu0
    %1382 = vdwg.mxu0
    %1383 = vmatpush.bf16.msra.mxu0 0
    %1384 = vmatpush.bf16.msra.mxu0 0
    %1385 = vmatpush.bf16.msra.mxu0 0
    %1386 = vmatpush.bf16.msra.mxu0 0
    %1387 = vmatpush.bf16.msra.mxu0 0
    %1388 = vmatpush.bf16.msra.mxu0 0
    %1389 = vmatpush.bf16.msra.mxu0 %v1256
    %1390 = vmatpush.bf16.msra.mxu0 %v1252
    %1391 = vmatmul.bf16.gmra.mxu0 %v1342
    %v1392 = vpop.f32.mrf.mxu0
    %v1393 = vadd.f32 0.0, %v1392
    %v1394 = vpop.f32.mrf.mxu0
    %1395 = vdwg.mxu0
    %v1400 = vrot.slane %v1354, 6
    %v1401 = vrot.slane %v1367, 6
    %v1402 = vrot.slane %v1380, 6
    %v1403 = vrot.slane %v1393, 6
    %v1408 = vadd.f32 %v1171, %v1400
    %v1409 = vadd.f32 %v1185, %v1401
    %v1410 = vadd.f32 %v1199, %v1402
    %v1411 = vadd.f32 %v1213, %v1403
    %v1412 = vmul.f32 %v1408, 0.5
    %v1413 = vtanh.pop %v1412
    %v1414 = vmul.f32 %v1413, 0.5
    %v1415 = vadd.f32 %v1414, 0.5
    %v1416 = vmul.f32 %v1409, 0.5
    %v1417 = vtanh.pop %v1416
    %v1418 = vmul.f32 %v1417, 0.5
    %v1419 = vadd.f32 %v1418, 0.5
    %v1420 = vtanh.pop %v1410
    %v1421 = vmul.f32 %v1411, 0.5
    %v1422 = vtanh.pop %v1421
    %v1423 = vmul.f32 %v1422, 0.5
    %v1424 = vadd.f32 %v1423, 0.5
    %v1426 = vrot.slane %v1336, 6
    %v1428 = vmul.f32 %v1419, %v1426
    %v1429 = vmul.f32 %v1415, %v1420
    %v1430 = vadd.f32 %v1428, %v1429
    %v1431 = vtanh.pop %v1430
    %v1432 = vmul.f32 %v1424, %v1431
    %v1433 = vpack.c.bf16 %v1432, %v1432
    %1434 = vst.msk [vmem:[#allocation2] sm:$0x2] %vm478, %v1433
    %v1436 = vunpack.c.l.b16 %v1433
    %v1437 = vpack.c.b16 %v1436, %v1436
    %v1438 = vrot.slane %v1437, 1
    %v1440 = vsel %vm304, %v1438, 0
    %1442 = vmatpush.bf16.msra.mxu0 0
    %1443 = vmatpush.bf16.msra.mxu0 0
    %1444 = vmatpush.bf16.msra.mxu0 0
    %1445 = vmatpush.bf16.msra.mxu0 0
    %1446 = vmatpush.bf16.msra.mxu0 0
    %1447 = vmatpush.bf16.msra.mxu0 0
    %1448 = vmatpush.bf16.msra.mxu0 %v1253
    %1449 = vmatpush.bf16.msra.mxu0 %v1249
    %1450 = vmatmul.bf16.gmra.mxu0 %v1440
    %v1451 = vpop.f32.mrf.mxu0
    %v1452 = vadd.f32 0.0, %v1451
    %v1453 = vpop.f32.mrf.mxu0
    %1454 = vdwg.mxu0
    %1455 = vmatpush.bf16.msra.mxu0 0
    %1456 = vmatpush.bf16.msra.mxu0 0
    %1457 = vmatpush.bf16.msra.mxu0 0
    %1458 = vmatpush.bf16.msra.mxu0 0
    %1459 = vmatpush.bf16.msra.mxu0 0
    %1460 = vmatpush.bf16.msra.mxu0 0
    %1461 = vmatpush.bf16.msra.mxu0 %v1254
    %1462 = vmatpush.bf16.msra.mxu0 %v1250
    %1463 = vmatmul.bf16.gmra.mxu0 %v1440
    %v1464 = vpop.f32.mrf.mxu0
    %v1465 = vadd.f32 0.0, %v1464
    %v1466 = vpop.f32.mrf.mxu0
    %1467 = vdwg.mxu0
    %1468 = vmatpush.bf16.msra.mxu0 0
    %1469 = vmatpush.bf16.msra.mxu0 0
    %1470 = vmatpush.bf16.msra.mxu0 0
    %1471 = vmatpush.bf16.msra.mxu0 0
    %1472 = vmatpush.bf16.msra.mxu0 0
    %1473 = vmatpush.bf16.msra.mxu0 0
    %1474 = vmatpush.bf16.msra.mxu0 %v1255
    %1475 = vmatpush.bf16.msra.mxu0 %v1251
    %1476 = vmatmul.bf16.gmra.mxu0 %v1440
    %v1477 = vpop.f32.mrf.mxu0
    %v1478 = vadd.f32 0.0, %v1477
    %v1479 = vpop.f32.mrf.mxu0
    %1480 = vdwg.mxu0
    %1481 = vmatpush.bf16.msra.mxu0 0
    %1482 = vmatpush.bf16.msra.mxu0 0
    %1483 = vmatpush.bf16.msra.mxu0 0
    %1484 = vmatpush.bf16.msra.mxu0 0
    %1485 = vmatpush.bf16.msra.mxu0 0
    %1486 = vmatpush.bf16.msra.mxu0 0
    %1487 = vmatpush.bf16.msra.mxu0 %v1256
    %1488 = vmatpush.bf16.msra.mxu0 %v1252
    %1489 = vmatmul.bf16.gmra.mxu0 %v1440
    %v1490 = vpop.f32.mrf.mxu0
    %v1491 = vadd.f32 0.0, %v1490
    %v1492 = vpop.f32.mrf.mxu0
    %1493 = vdwg.mxu0
    %v1498 = vrot.slane %v1452, 4
    %v1499 = vrot.slane %v1465, 4
    %v1500 = vrot.slane %v1478, 4
    %v1501 = vrot.slane %v1491, 4
    %v1506 = vadd.f32 %v1171, %v1498
    %v1507 = vadd.f32 %v1185, %v1499
    %v1508 = vadd.f32 %v1199, %v1500
    %v1509 = vadd.f32 %v1213, %v1501
    %v1510 = vmul.f32 %v1506, 0.5
    %v1511 = vtanh.pop %v1510
    %v1512 = vmul.f32 %v1511, 0.5
    %v1513 = vadd.f32 %v1512, 0.5
    %v1514 = vmul.f32 %v1507, 0.5
    %v1515 = vtanh.pop %v1514
    %v1516 = vmul.f32 %v1515, 0.5
    %v1517 = vadd.f32 %v1516, 0.5
    %v1518 = vtanh.pop %v1508
    %v1519 = vmul.f32 %v1509, 0.5
    %v1520 = vtanh.pop %v1519
    %v1521 = vmul.f32 %v1520, 0.5
    %v1522 = vadd.f32 %v1521, 0.5
    %v1524 = vrot.slane %v1430, 6
    %v1526 = vmul.f32 %v1517, %v1524
    %v1527 = vmul.f32 %v1513, %v1518
    %v1528 = vadd.f32 %v1526, %v1527
    %v1529 = vtanh.pop %v1528
    %v1530 = vmul.f32 %v1522, %v1529
    %v1531 = vpack.c.bf16 %v1530, %v1530
    %1532 = vst.msk [vmem:[#allocation2] sm:$0x4] %vm577, %v1531
    %v1534 = vunpack.c.l.b16 %v1531
    %v1535 = vpack.c.b16 %v1534, %v1534
    %v1536 = vrot.slane %v1535, 2
    %v1538 = vsel %vm304, %v1536, 0
    %1540 = vmatpush.bf16.msra.mxu0 0
    %1541 = vmatpush.bf16.msra.mxu0 0
    %1542 = vmatpush.bf16.msra.mxu0 0
    %1543 = vmatpush.bf16.msra.mxu0 0
    %1544 = vmatpush.bf16.msra.mxu0 0
    %1545 = vmatpush.bf16.msra.mxu0 0
    %1546 = vmatpush.bf16.msra.mxu0 %v1253
    %1547 = vmatpush.bf16.msra.mxu0 %v1249
    %1548 = vmatmul.bf16.gmra.mxu0 %v1538
    %v1549 = vpop.f32.mrf.mxu0
    %v1550 = vadd.f32 0.0, %v1549
    %v1551 = vpop.f32.mrf.mxu0
    %1552 = vdwg.mxu0
    %1553 = vmatpush.bf16.msra.mxu0 0
    %1554 = vmatpush.bf16.msra.mxu0 0
    %1555 = vmatpush.bf16.msra.mxu0 0
    %1556 = vmatpush.bf16.msra.mxu0 0
    %1557 = vmatpush.bf16.msra.mxu0 0
    %1558 = vmatpush.bf16.msra.mxu0 0
    %1559 = vmatpush.bf16.msra.mxu0 %v1254
    %1560 = vmatpush.bf16.msra.mxu0 %v1250
    %1561 = vmatmul.bf16.gmra.mxu0 %v1538
    %v1562 = vpop.f32.mrf.mxu0
    %v1563 = vadd.f32 0.0, %v1562
    %v1564 = vpop.f32.mrf.mxu0
    %1565 = vdwg.mxu0
    %1566 = vmatpush.bf16.msra.mxu0 0
    %1567 = vmatpush.bf16.msra.mxu0 0
    %1568 = vmatpush.bf16.msra.mxu0 0
    %1569 = vmatpush.bf16.msra.mxu0 0
    %1570 = vmatpush.bf16.msra.mxu0 0
    %1571 = vmatpush.bf16.msra.mxu0 0
    %1572 = vmatpush.bf16.msra.mxu0 %v1255
    %1573 = vmatpush.bf16.msra.mxu0 %v1251
    %1574 = vmatmul.bf16.gmra.mxu0 %v1538
    %v1575 = vpop.f32.mrf.mxu0
    %v1576 = vadd.f32 0.0, %v1575
    %v1577 = vpop.f32.mrf.mxu0
    %1578 = vdwg.mxu0
    %1579 = vmatpush.bf16.msra.mxu0 0
    %1580 = vmatpush.bf16.msra.mxu0 0
    %1581 = vmatpush.bf16.msra.mxu0 0
    %1582 = vmatpush.bf16.msra.mxu0 0
    %1583 = vmatpush.bf16.msra.mxu0 0
    %1584 = vmatpush.bf16.msra.mxu0 0
    %1585 = vmatpush.bf16.msra.mxu0 %v1256
    %1586 = vmatpush.bf16.msra.mxu0 %v1252
    %1587 = vmatmul.bf16.gmra.mxu0 %v1538
    %v1588 = vpop.f32.mrf.mxu0
    %v1589 = vadd.f32 0.0, %v1588
    %v1590 = vpop.f32.mrf.mxu0
    %1591 = vdwg.mxu0
    %v1596 = vrot.slane %v1550, 2
    %v1597 = vrot.slane %v1563, 2
    %v1598 = vrot.slane %v1576, 2
    %v1599 = vrot.slane %v1589, 2
    %v1604 = vadd.f32 %v1171, %v1596
    %v1605 = vadd.f32 %v1185, %v1597
    %v1606 = vadd.f32 %v1199, %v1598
    %v1607 = vadd.f32 %v1213, %v1599
    %v1608 = vmul.f32 %v1604, 0.5
    %v1609 = vtanh.pop %v1608
    %v1610 = vmul.f32 %v1609, 0.5
    %v1611 = vadd.f32 %v1610, 0.5
    %v1612 = vmul.f32 %v1605, 0.5
    %v1613 = vtanh.pop %v1612
    %v1614 = vmul.f32 %v1613, 0.5
    %v1615 = vadd.f32 %v1614, 0.5
    %v1616 = vtanh.pop %v1606
    %v1617 = vmul.f32 %v1607, 0.5
    %v1618 = vtanh.pop %v1617
    %v1619 = vmul.f32 %v1618, 0.5
    %v1620 = vadd.f32 %v1619, 0.5
    %v1622 = vrot.slane %v1528, 6
    %v1624 = vmul.f32 %v1615, %v1622
    %v1625 = vmul.f32 %v1611, %v1616
    %v1626 = vadd.f32 %v1624, %v1625
    %v1627 = vtanh.pop %v1626
    %v1628 = vmul.f32 %v1620, %v1627
    %v1629 = vpack.c.bf16 %v1628, %v1628
    %1630 = vst.msk [vmem:[#allocation2] sm:$0x8] %vm676, %v1629
    %v1632 = vunpack.c.l.b16 %v1629
    %v1633 = vpack.c.b16 %v1632, %v1632
    %v1634 = vrot.slane %v1633, 3
    %v1636 = vsel %vm304, %v1634, 0
    %1638 = vmatpush.bf16.msra.mxu0 0
    %1639 = vmatpush.bf16.msra.mxu0 0
    %1640 = vmatpush.bf16.msra.mxu0 0
    %1641 = vmatpush.bf16.msra.mxu0 0
    %1642 = vmatpush.bf16.msra.mxu0 0
    %1643 = vmatpush.bf16.msra.mxu0 0
    %1644 = vmatpush.bf16.msra.mxu0 %v1253
    %1645 = vmatpush.bf16.msra.mxu0 %v1249
    %1646 = vmatmul.bf16.gmra.mxu0 %v1636
    %v1647 = vpop.f32.mrf.mxu0
    %v1648 = vadd.f32 0.0, %v1647
    %v1649 = vpop.f32.mrf.mxu0
    %1650 = vdwg.mxu0
    %1651 = vmatpush.bf16.msra.mxu0 0
    %1652 = vmatpush.bf16.msra.mxu0 0
    %1653 = vmatpush.bf16.msra.mxu0 0
    %1654 = vmatpush.bf16.msra.mxu0 0
    %1655 = vmatpush.bf16.msra.mxu0 0
    %1656 = vmatpush.bf16.msra.mxu0 0
    %1657 = vmatpush.bf16.msra.mxu0 %v1254
    %1658 = vmatpush.bf16.msra.mxu0 %v1250
    %1659 = vmatmul.bf16.gmra.mxu0 %v1636
    %v1660 = vpop.f32.mrf.mxu0
    %v1661 = vadd.f32 0.0, %v1660
    %v1662 = vpop.f32.mrf.mxu0
    %1663 = vdwg.mxu0
    %1664 = vmatpush.bf16.msra.mxu0 0
    %1665 = vmatpush.bf16.msra.mxu0 0
    %1666 = vmatpush.bf16.msra.mxu0 0
    %1667 = vmatpush.bf16.msra.mxu0 0
    %1668 = vmatpush.bf16.msra.mxu0 0
    %1669 = vmatpush.bf16.msra.mxu0 0
    %1670 = vmatpush.bf16.msra.mxu0 %v1255
    %1671 = vmatpush.bf16.msra.mxu0 %v1251
    %1672 = vmatmul.bf16.gmra.mxu0 %v1636
    %v1673 = vpop.f32.mrf.mxu0
    %v1674 = vadd.f32 0.0, %v1673
    %v1675 = vpop.f32.mrf.mxu0
    %1676 = vdwg.mxu0
    %1677 = vmatpush.bf16.msra.mxu0 0
    %1678 = vmatpush.bf16.msra.mxu0 0
    %1679 = vmatpush.bf16.msra.mxu0 0
    %1680 = vmatpush.bf16.msra.mxu0 0
    %1681 = vmatpush.bf16.msra.mxu0 0
    %1682 = vmatpush.bf16.msra.mxu0 0
    %1683 = vmatpush.bf16.msra.mxu0 %v1256
    %1684 = vmatpush.bf16.msra.mxu0 %v1252
    %1685 = vmatmul.bf16.gmra.mxu0 %v1636
    %v1686 = vpop.f32.mrf.mxu0
    %v1687 = vadd.f32 0.0, %v1686
    %v1688 = vpop.f32.mrf.mxu0
    %1689 = vdwg.mxu0
    %v1690 = vadd.f32 %v1173, %v1648
    %v1691 = vadd.f32 %v1187, %v1661
    %v1692 = vadd.f32 %v1201, %v1674
    %v1693 = vadd.f32 %v1215, %v1687
    %v1694 = vmul.f32 %v1690, 0.5
    %v1695 = vtanh.pop %v1694
    %v1696 = vmul.f32 %v1695, 0.5
    %v1697 = vadd.f32 %v1696, 0.5
    %v1698 = vmul.f32 %v1691, 0.5
    %v1699 = vtanh.pop %v1698
    %v1700 = vmul.f32 %v1699, 0.5
    %v1701 = vadd.f32 %v1700, 0.5
    %v1702 = vtanh.pop %v1692
    %v1703 = vmul.f32 %v1693, 0.5
    %v1704 = vtanh.pop %v1703
    %v1705 = vmul.f32 %v1704, 0.5
    %v1706 = vadd.f32 %v1705, 0.5
    %v1708 = vrot.slane %v1626, 6
    %v1710 = vmul.f32 %v1701, %v1708
    %v1711 = vmul.f32 %v1697, %v1702
    %v1712 = vadd.f32 %v1710, %v1711
    %v1713 = vtanh.pop %v1712
    %v1714 = vmul.f32 %v1706, %v1713
    %v1715 = vpack.c.bf16 %v1714, %v1714
    %1716 = vst.msk [vmem:[#allocation2 + $0x4] sm:$0x1] %vm383, %v1715
    %v1718 = vsel %vm304, %v1715, 0
    %1720 = vmatpush.bf16.msra.mxu0 0
    %1721 = vmatpush.bf16.msra.mxu0 0
    %1722 = vmatpush.bf16.msra.mxu0 0
    %1723 = vmatpush.bf16.msra.mxu0 0
    %1724 = vmatpush.bf16.msra.mxu0 0
    %1725 = vmatpush.bf16.msra.mxu0 0
    %1726 = vmatpush.bf16.msra.mxu0 %v1253
    %1727 = vmatpush.bf16.msra.mxu0 %v1249
    %1728 = vmatmul.bf16.gmra.mxu0 %v1718
    %v1729 = vpop.f32.mrf.mxu0
    %v1730 = vadd.f32 0.0, %v1729
    %v1731 = vpop.f32.mrf.mxu0
    %1732 = vdwg.mxu0
    %1733 = vmatpush.bf16.msra.mxu0 0
    %1734 = vmatpush.bf16.msra.mxu0 0
    %1735 = vmatpush.bf16.msra.mxu0 0
    %1736 = vmatpush.bf16.msra.mxu0 0
    %1737 = vmatpush.bf16.msra.mxu0 0
    %1738 = vmatpush.bf16.msra.mxu0 0
    %1739 = vmatpush.bf16.msra.mxu0 %v1254
    %1740 = vmatpush.bf16.msra.mxu0 %v1250
    %1741 = vmatmul.bf16.gmra.mxu0 %v1718
    %v1742 = vpop.f32.mrf.mxu0
    %v1743 = vadd.f32 0.0, %v1742
    %v1744 = vpop.f32.mrf.mxu0
    %1745 = vdwg.mxu0
    %1746 = vmatpush.bf16.msra.mxu0 0
    %1747 = vmatpush.bf16.msra.mxu0 0
    %1748 = vmatpush.bf16.msra.mxu0 0
    %1749 = vmatpush.bf16.msra.mxu0 0
    %1750 = vmatpush.bf16.msra.mxu0 0
    %1751 = vmatpush.bf16.msra.mxu0 0
    %1752 = vmatpush.bf16.msra.mxu0 %v1255
    %1753 = vmatpush.bf16.msra.mxu0 %v1251
    %1754 = vmatmul.bf16.gmra.mxu0 %v1718
    %v1755 = vpop.f32.mrf.mxu0
    %v1756 = vadd.f32 0.0, %v1755
    %v1757 = vpop.f32.mrf.mxu0
    %1758 = vdwg.mxu0
    %1759 = vmatpush.bf16.msra.mxu0 0
    %1760 = vmatpush.bf16.msra.mxu0 0
    %1761 = vmatpush.bf16.msra.mxu0 0
    %1762 = vmatpush.bf16.msra.mxu0 0
    %1763 = vmatpush.bf16.msra.mxu0 0
    %1764 = vmatpush.bf16.msra.mxu0 0
    %1765 = vmatpush.bf16.msra.mxu0 %v1256
    %1766 = vmatpush.bf16.msra.mxu0 %v1252
    %1767 = vmatmul.bf16.gmra.mxu0 %v1718
    %v1768 = vpop.f32.mrf.mxu0
    %v1769 = vadd.f32 0.0, %v1768
    %v1770 = vpop.f32.mrf.mxu0
    %1771 = vdwg.mxu0
    %v1776 = vrot.slane %v1730, 6
    %v1777 = vrot.slane %v1743, 6
    %v1778 = vrot.slane %v1756, 6
    %v1779 = vrot.slane %v1769, 6
    %v1784 = vadd.f32 %v1173, %v1776
    %v1785 = vadd.f32 %v1187, %v1777
    %v1786 = vadd.f32 %v1201, %v1778
    %v1787 = vadd.f32 %v1215, %v1779
    %v1788 = vmul.f32 %v1784, 0.5
    %v1789 = vtanh.pop %v1788
    %v1790 = vmul.f32 %v1789, 0.5
    %v1791 = vadd.f32 %v1790, 0.5
    %v1792 = vmul.f32 %v1785, 0.5
    %v1793 = vtanh.pop %v1792
    %v1794 = vmul.f32 %v1793, 0.5
    %v1795 = vadd.f32 %v1794, 0.5
    %v1796 = vtanh.pop %v1786
    %v1797 = vmul.f32 %v1787, 0.5
    %v1798 = vtanh.pop %v1797
    %v1799 = vmul.f32 %v1798, 0.5
    %v1800 = vadd.f32 %v1799, 0.5
    %v1802 = vrot.slane %v1712, 6
    %v1804 = vmul.f32 %v1795, %v1802
    %v1805 = vmul.f32 %v1791, %v1796
    %v1806 = vadd.f32 %v1804, %v1805
    %v1807 = vtanh.pop %v1806
    %v1808 = vmul.f32 %v1800, %v1807
    %v1809 = vpack.c.bf16 %v1808, %v1808
    %1810 = vst.msk [vmem:[#allocation2 + $0x4] sm:$0x2] %vm478, %v1809
    %v1812 = vunpack.c.l.b16 %v1809
    %v1813 = vpack.c.b16 %v1812, %v1812
    %v1814 = vrot.slane %v1813, 1
    %v1816 = vsel %vm304, %v1814, 0
    %1818 = vmatpush.bf16.msra.mxu0 0
    %1819 = vmatpush.bf16.msra.mxu0 0
    %1820 = vmatpush.bf16.msra.mxu0 0
    %1821 = vmatpush.bf16.msra.mxu0 0
    %1822 = vmatpush.bf16.msra.mxu0 0
    %1823 = vmatpush.bf16.msra.mxu0 0
    %1824 = vmatpush.bf16.msra.mxu0 %v1253
    %1825 = vmatpush.bf16.msra.mxu0 %v1249
    %1826 = vmatmul.bf16.gmra.mxu0 %v1816
    %v1827 = vpop.f32.mrf.mxu0
    %v1828 = vadd.f32 0.0, %v1827
    %v1829 = vpop.f32.mrf.mxu0
    %1830 = vdwg.mxu0
    %1831 = vmatpush.bf16.msra.mxu0 0
    %1832 = vmatpush.bf16.msra.mxu0 0
    %1833 = vmatpush.bf16.msra.mxu0 0
    %1834 = vmatpush.bf16.msra.mxu0 0
    %1835 = vmatpush.bf16.msra.mxu0 0
    %1836 = vmatpush.bf16.msra.mxu0 0
    %1837 = vmatpush.bf16.msra.mxu0 %v1254
    %1838 = vmatpush.bf16.msra.mxu0 %v1250
    %1839 = vmatmul.bf16.gmra.mxu0 %v1816
    %v1840 = vpop.f32.mrf.mxu0
    %v1841 = vadd.f32 0.0, %v1840
    %v1842 = vpop.f32.mrf.mxu0
    %1843 = vdwg.mxu0
    %1844 = vmatpush.bf16.msra.mxu0 0
    %1845 = vmatpush.bf16.msra.mxu0 0
    %1846 = vmatpush.bf16.msra.mxu0 0
    %1847 = vmatpush.bf16.msra.mxu0 0
    %1848 = vmatpush.bf16.msra.mxu0 0
    %1849 = vmatpush.bf16.msra.mxu0 0
    %1850 = vmatpush.bf16.msra.mxu0 %v1255
    %1851 = vmatpush.bf16.msra.mxu0 %v1251
    %1852 = vmatmul.bf16.gmra.mxu0 %v1816
    %v1853 = vpop.f32.mrf.mxu0
    %v1854 = vadd.f32 0.0, %v1853
    %v1855 = vpop.f32.mrf.mxu0
    %1856 = vdwg.mxu0
    %1857 = vmatpush.bf16.msra.mxu0 0
    %1858 = vmatpush.bf16.msra.mxu0 0
    %1859 = vmatpush.bf16.msra.mxu0 0
    %1860 = vmatpush.bf16.msra.mxu0 0
    %1861 = vmatpush.bf16.msra.mxu0 0
    %1862 = vmatpush.bf16.msra.mxu0 0
    %1863 = vmatpush.bf16.msra.mxu0 %v1256
    %1864 = vmatpush.bf16.msra.mxu0 %v1252
    %1865 = vmatmul.bf16.gmra.mxu0 %v1816
    %v1866 = vpop.f32.mrf.mxu0
    %v1867 = vadd.f32 0.0, %v1866
    %v1868 = vpop.f32.mrf.mxu0
    %1869 = vdwg.mxu0
    %v1874 = vrot.slane %v1828, 4
    %v1875 = vrot.slane %v1841, 4
    %v1876 = vrot.slane %v1854, 4
    %v1877 = vrot.slane %v1867, 4
    %v1882 = vadd.f32 %v1173, %v1874
    %v1883 = vadd.f32 %v1187, %v1875
    %v1884 = vadd.f32 %v1201, %v1876
    %v1885 = vadd.f32 %v1215, %v1877
    %v1886 = vmul.f32 %v1882, 0.5
    %v1887 = vtanh.pop %v1886
    %v1888 = vmul.f32 %v1887, 0.5
    %v1889 = vadd.f32 %v1888, 0.5
    %v1890 = vmul.f32 %v1883, 0.5
    %v1891 = vtanh.pop %v1890
    %v1892 = vmul.f32 %v1891, 0.5
    %v1893 = vadd.f32 %v1892, 0.5
    %v1894 = vtanh.pop %v1884
    %v1895 = vmul.f32 %v1885, 0.5
    %v1896 = vtanh.pop %v1895
    %v1897 = vmul.f32 %v1896, 0.5
    %v1898 = vadd.f32 %v1897, 0.5
    %v1900 = vrot.slane %v1806, 6
    %v1902 = vmul.f32 %v1893, %v1900
    %v1903 = vmul.f32 %v1889, %v1894
    %v1904 = vadd.f32 %v1902, %v1903
    %v1905 = vtanh.pop %v1904
    %v1906 = vmul.f32 %v1898, %v1905
    %v1907 = vpack.c.bf16 %v1906, %v1906
    %1908 = vst.msk [vmem:[#allocation2 + $0x4] sm:$0x4] %vm577, %v1907
    %v1910 = vunpack.c.l.b16 %v1907
    %v1911 = vpack.c.b16 %v1910, %v1910
    %v1912 = vrot.slane %v1911, 2
    %v1914 = vsel %vm304, %v1912, 0
    %1916 = vmatpush.bf16.msra.mxu0 0
    %1917 = vmatpush.bf16.msra.mxu0 0
    %1918 = vmatpush.bf16.msra.mxu0 0
    %1919 = vmatpush.bf16.msra.mxu0 0
    %1920 = vmatpush.bf16.msra.mxu0 0
    %1921 = vmatpush.bf16.msra.mxu0 0
    %1922 = vmatpush.bf16.msra.mxu0 %v1253
    %1923 = vmatpush.bf16.msra.mxu0 %v1249
    %1924 = vmatmul.bf16.gmra.mxu0 %v1914
    %v1925 = vpop.f32.mrf.mxu0
    %v1926 = vadd.f32 0.0, %v1925
    %v1927 = vpop.f32.mrf.mxu0
    %1928 = vdwg.mxu0
    %1929 = vmatpush.bf16.msra.mxu0 0
    %1930 = vmatpush.bf16.msra.mxu0 0
    %1931 = vmatpush.bf16.msra.mxu0 0
    %1932 = vmatpush.bf16.msra.mxu0 0
    %1933 = vmatpush.bf16.msra.mxu0 0
    %1934 = vmatpush.bf16.msra.mxu0 0
    %1935 = vmatpush.bf16.msra.mxu0 %v1254
    %1936 = vmatpush.bf16.msra.mxu0 %v1250
    %1937 = vmatmul.bf16.gmra.mxu0 %v1914
    %v1938 = vpop.f32.mrf.mxu0
    %v1939 = vadd.f32 0.0, %v1938
    %v1940 = vpop.f32.mrf.mxu0
    %1941 = vdwg.mxu0
    %1942 = vmatpush.bf16.msra.mxu0 0
    %1943 = vmatpush.bf16.msra.mxu0 0
    %1944 = vmatpush.bf16.msra.mxu0 0
    %1945 = vmatpush.bf16.msra.mxu0 0
    %1946 = vmatpush.bf16.msra.mxu0 0
    %1947 = vmatpush.bf16.msra.mxu0 0
    %1948 = vmatpush.bf16.msra.mxu0 %v1255
    %1949 = vmatpush.bf16.msra.mxu0 %v1251
    %1950 = vmatmul.bf16.gmra.mxu0 %v1914
    %v1951 = vpop.f32.mrf.mxu0
    %v1952 = vadd.f32 0.0, %v1951
    %v1953 = vpop.f32.mrf.mxu0
    %1954 = vdwg.mxu0
    %1955 = vmatpush.bf16.msra.mxu0 0
    %1956 = vmatpush.bf16.msra.mxu0 0
    %1957 = vmatpush.bf16.msra.mxu0 0
    %1958 = vmatpush.bf16.msra.mxu0 0
    %1959 = vmatpush.bf16.msra.mxu0 0
    %1960 = vmatpush.bf16.msra.mxu0 0
    %1961 = vmatpush.bf16.msra.mxu0 %v1256
    %1962 = vmatpush.bf16.msra.mxu0 %v1252
    %1963 = vmatmul.bf16.gmra.mxu0 %v1914
    %v1964 = vpop.f32.mrf.mxu0
    %v1965 = vadd.f32 0.0, %v1964
    %v1966 = vpop.f32.mrf.mxu0
    %1967 = vdwg.mxu0
    %v1972 = vrot.slane %v1926, 2
    %v1973 = vrot.slane %v1939, 2
    %v1974 = vrot.slane %v1952, 2
    %v1975 = vrot.slane %v1965, 2
    %v1980 = vadd.f32 %v1173, %v1972
    %v1981 = vadd.f32 %v1187, %v1973
    %v1982 = vadd.f32 %v1201, %v1974
    %v1983 = vadd.f32 %v1215, %v1975
    %v1984 = vmul.f32 %v1980, 0.5
    %v1985 = vtanh.pop %v1984
    %v1986 = vmul.f32 %v1985, 0.5
    %v1987 = vadd.f32 %v1986, 0.5
    %v1988 = vmul.f32 %v1981, 0.5
    %v1989 = vtanh.pop %v1988
    %v1990 = vmul.f32 %v1989, 0.5
    %v1991 = vadd.f32 %v1990, 0.5
    %v1992 = vtanh.pop %v1982
    %v1993 = vmul.f32 %v1983, 0.5
    %v1994 = vtanh.pop %v1993
    %v1995 = vmul.f32 %v1994, 0.5
    %v1996 = vadd.f32 %v1995, 0.5
    %v1998 = vrot.slane %v1904, 6
    %v2000 = vmul.f32 %v1991, %v1998
    %v2001 = vmul.f32 %v1987, %v1992
    %v2002 = vadd.f32 %v2000, %v2001
    %v2003 = vtanh.pop %v2002
    %v2004 = vmul.f32 %v1996, %v2003
    %v2005 = vpack.c.bf16 %v2004, %v2004
    %2006 = vst.msk [vmem:[#allocation2 + $0x4] sm:$0x8] %vm676, %v2005
    %v2007 = vld [vmem:[#allocation3 + $0x240] sm:$0xf]
    %v2008 = vld [vmem:[#allocation3 + $0x250] sm:$0xf]
    %v2009 = vld [vmem:[#allocation3 + $0x260] sm:$0xf]
    %v2010 = vld [vmem:[#allocation3 + $0x270] sm:$0xf]
    %v2012 = vunpack.c.l.b16 %v2005
    %v2013 = vpack.c.b16 %v2012, %v2012
    %v2014 = vrot.slane %v2013, 3
    %v2019 = vunpack.c.l.b16 %v2007
    %v2020 = vunpack.c.l.b16 %v2008
    %v2021 = vunpack.c.l.b16 %v2009
    %v2022 = vunpack.c.l.b16 %v2010
    %v2023 = vpack.c.b16 %v2020, %v2019
    %v2024 = vpack.c.b16 %v2022, %v2021
    %v2028 = vsel %vm304, %v2014, 0
    %2030 = vmatpush.bf16.msra.mxu0 0
    %2031 = vmatpush.bf16.msra.mxu0 0
    %2032 = vmatpush.bf16.msra.mxu0 0
    %2033 = vmatpush.bf16.msra.mxu0 0
    %2034 = vmatpush.bf16.msra.mxu0 0
    %2035 = vmatpush.bf16.msra.mxu0 0
    %2036 = vmatpush.bf16.msra.mxu0 %v2024
    %2037 = vmatpush.bf16.msra.mxu0 %v2023
    %2038 = vmatmul.bf16.gmra.mxu0 %v2028
    %v2039 = vpop.f32.mrf.mxu0
    %v2040 = vadd.f32 0.0, %v2039
    %v2041 = vpop.f32.mrf.mxu0
    %2042 = vdwg.mxu0
    %v2043 = vadd.f32 %v1091, %v2040
    %v2044 = vld [vmem:[#allocation2] sm:$0xf]
    %v2045 = vld [vmem:[#allocation2 + $0x4] sm:$0xf]
    %v2046 = vld [vmem:[#allocation3 + $0x100] sm:$0xff]
    %v2047 = vld [vmem:[#allocation3 + $0x108] sm:$0xff]
    %v2048 = vld [vmem:[#allocation3 + $0x110] sm:$0xff]
    %v2049 = vld [vmem:[#allocation3 + $0x118] sm:$0xff]
    %v2050 = vld [vmem:[#allocation3 + $0x120] sm:$0xff]
    %v2051 = vld [vmem:[#allocation3 + $0x128] sm:$0xff]
    %v2052 = vld [vmem:[#allocation3 + $0x130] sm:$0xff]
    %v2053 = vld [vmem:[#allocation3 + $0x138] sm:$0xff]
    %s2054 = scalar_lea.vmem %s3, 2
    %v2055 = vld [vmem:[%s2054] ss:$8 sm:$0xf]
    %v2057 = vperm.slane %v2055, 0
    %v2058 = vperm.slane %v2055, 1
    %v2059 = vperm.slane %v2055, 2
    %v2060 = vperm.slane %v2055, 3
    %v2067 = vunpack.c.l.b16 %v2044
    %v2068 = vunpack.c.l.b16 %v2045
    %v2069 = vpack.c.b16 %v2068, %v2067
    %v2078 = vunpack.c.l.b16 %v2046
    %v2079 = vunpack.c.h.b16 %v2046
    %v2080 = vunpack.c.l.b16 %v2047
    %v2081 = vunpack.c.h.b16 %v2047
    %v2082 = vunpack.c.l.b16 %v2048
    %v2083 = vunpack.c.h.b16 %v2048
    %v2084 = vunpack.c.l.b16 %v2049
    %v2085 = vunpack.c.h.b16 %v2049
    %v2086 = vunpack.c.l.b16 %v2050
    %v2087 = vunpack.c.h.b16 %v2050
    %v2088 = vunpack.c.l.b16 %v2051
    %v2089 = vunpack.c.h.b16 %v2051
    %v2090 = vunpack.c.l.b16 %v2052
    %v2091 = vunpack.c.h.b16 %v2052
    %v2092 = vunpack.c.l.b16 %v2053
    %v2093 = vunpack.c.h.b16 %v2053
    %v2094 = vpack.c.b16 %v2082, %v2078
    %v2095 = vpack.c.b16 %v2083, %v2079
    %v2096 = vpack.c.b16 %v2084, %v2080
    %v2097 = vpack.c.b16 %v2085, %v2081
    %v2098 = vpack.c.b16 %v2090, %v2086
    %v2099 = vpack.c.b16 %v2091, %v2087
    %v2100 = vpack.c.b16 %v2092, %v2088
    %v2101 = vpack.c.b16 %v2093, %v2089
    %v2111 = vsel %vm304, %v2069, 0
    %2113 = vmatpush.bf16.msra.mxu0 0
    %2114 = vmatpush.bf16.msra.mxu0 0
    %2115 = vmatpush.bf16.msra.mxu0 0
    %2116 = vmatpush.bf16.msra.mxu0 0
    %2117 = vmatpush.bf16.msra.mxu0 0
    %2118 = vmatpush.bf16.msra.mxu0 0
    %2119 = vmatpush.bf16.msra.mxu0 %v2098
    %2120 = vmatpush.bf16.msra.mxu0 %v2094
    %2121 = vmatmul.bf16.gmra.mxu0 %v2111
    %v2122 = vpop.f32.mrf.mxu0
    %v2123 = vadd.f32 %v2057, %v2122
    %v2124 = vpop.f32.mrf.mxu0
    %v2125 = vadd.f32 %v2057, %v2124
    %2126 = vdwg.mxu0
    %2127 = vmatpush.bf16.msra.mxu0 0
    %2128 = vmatpush.bf16.msra.mxu0 0
    %2129 = vmatpush.bf16.msra.mxu0 0
    %2130 = vmatpush.bf16.msra.mxu0 0
    %2131 = vmatpush.bf16.msra.mxu0 0
    %2132 = vmatpush.bf16.msra.mxu0 0
    %2133 = vmatpush.bf16.msra.mxu0 %v2099
    %2134 = vmatpush.bf16.msra.mxu0 %v2095
    %2135 = vmatmul.bf16.gmra.mxu0 %v2111
    %v2136 = vpop.f32.mrf.mxu0
    %v2137 = vadd.f32 %v2058, %v2136
    %v2138 = vpop.f32.mrf.mxu0
    %v2139 = vadd.f32 %v2058, %v2138
    %2140 = vdwg.mxu0
    %2141 = vmatpush.bf16.msra.mxu0 0
    %2142 = vmatpush.bf16.msra.mxu0 0
    %2143 = vmatpush.bf16.msra.mxu0 0
    %2144 = vmatpush.bf16.msra.mxu0 0
    %2145 = vmatpush.bf16.msra.mxu0 0
    %2146 = vmatpush.bf16.msra.mxu0 0
    %2147 = vmatpush.bf16.msra.mxu0 %v2100
    %2148 = vmatpush.bf16.msra.mxu0 %v2096
    %2149 = vmatmul.bf16.gmra.mxu0 %v2111
    %v2150 = vpop.f32.mrf.mxu0
    %v2151 = vadd.f32 %v2059, %v2150
    %v2152 = vpop.f32.mrf.mxu0
    %v2153 = vadd.f32 %v2059, %v2152
    %2154 = vdwg.mxu0
    %2155 = vmatpush.bf16.msra.mxu0 0
    %2156 = vmatpush.bf16.msra.mxu0 0
    %2157 = vmatpush.bf16.msra.mxu0 0
    %2158 = vmatpush.bf16.msra.mxu0 0
    %2159 = vmatpush.bf16.msra.mxu0 0
    %2160 = vmatpush.bf16.msra.mxu0 0
    %2161 = vmatpush.bf16.msra.mxu0 %v2101
    %2162 = vmatpush.bf16.msra.mxu0 %v2097
    %2163 = vmatmul.bf16.gmra.mxu0 %v2111
    %v2164 = vpop.f32.mrf.mxu0
    %v2165 = vadd.f32 %v2060, %v2164
    %v2166 = vpop.f32.mrf.mxu0
    %v2167 = vadd.f32 %v2060, %v2166
    %2168 = vdwg.mxu0
    %v2169 = vld [vmem:[#allocation3 + $0x140] sm:$0xff]
    %v2170 = vld [vmem:[#allocation3 + $0x148] sm:$0xff]
    %v2171 = vld [vmem:[#allocation3 + $0x150] sm:$0xff]
    %v2172 = vld [vmem:[#allocation3 + $0x158] sm:$0xff]
    %v2173 = vld [vmem:[#allocation3 + $0x160] sm:$0xff]
    %v2174 = vld [vmem:[#allocation3 + $0x168] sm:$0xff]
    %v2175 = vld [vmem:[#allocation3 + $0x170] sm:$0xff]
    %v2176 = vld [vmem:[#allocation3 + $0x178] sm:$0xff]
    %v2185 = vunpack.c.l.b16 %v2169
    %v2186 = vunpack.c.h.b16 %v2169
    %v2187 = vunpack.c.l.b16 %v2170
    %v2188 = vunpack.c.h.b16 %v2170
    %v2189 = vunpack.c.l.b16 %v2171
    %v2190 = vunpack.c.h.b16 %v2171
    %v2191 = vunpack.c.l.b16 %v2172
    %v2192 = vunpack.c.h.b16 %v2172
    %v2193 = vunpack.c.l.b16 %v2173
    %v2194 = vunpack.c.h.b16 %v2173
    %v2195 = vunpack.c.l.b16 %v2174
    %v2196 = vunpack.c.h.b16 %v2174
    %v2197 = vunpack.c.l.b16 %v2175
    %v2198 = vunpack.c.h.b16 %v2175
    %v2199 = vunpack.c.l.b16 %v2176
    %v2200 = vunpack.c.h.b16 %v2176
    %v2201 = vpack.c.b16 %v2189, %v2185
    %v2202 = vpack.c.b16 %v2190, %v2186
    %v2203 = vpack.c.b16 %v2191, %v2187
    %v2204 = vpack.c.b16 %v2192, %v2188
    %v2205 = vpack.c.b16 %v2197, %v2193
    %v2206 = vpack.c.b16 %v2198, %v2194
    %v2207 = vpack.c.b16 %v2199, %v2195
    %v2208 = vpack.c.b16 %v2200, %v2196
    %2217 = vmatpush.bf16.msra.mxu0 0
    %2218 = vmatpush.bf16.msra.mxu0 0
    %2219 = vmatpush.bf16.msra.mxu0 0
    %2220 = vmatpush.bf16.msra.mxu0 0
    %2221 = vmatpush.bf16.msra.mxu0 0
    %2222 = vmatpush.bf16.msra.mxu0 0
    %2223 = vmatpush.bf16.msra.mxu0 %v2205
    %2224 = vmatpush.bf16.msra.mxu0 %v2201
    %2225 = vmatmul.bf16.gmra.mxu0 %v306
    %v2226 = vpop.f32.mrf.mxu0
    %v2227 = vadd.f32 0.0, %v2226
    %v2228 = vpop.f32.mrf.mxu0
    %2229 = vdwg.mxu0
    %2230 = vmatpush.bf16.msra.mxu0 0
    %2231 = vmatpush.bf16.msra.mxu0 0
    %2232 = vmatpush.bf16.msra.mxu0 0
    %2233 = vmatpush.bf16.msra.mxu0 0
    %2234 = vmatpush.bf16.msra.mxu0 0
    %2235 = vmatpush.bf16.msra.mxu0 0
    %2236 = vmatpush.bf16.msra.mxu0 %v2206
    %2237 = vmatpush.bf16.msra.mxu0 %v2202
    %2238 = vmatmul.bf16.gmra.mxu0 %v306
    %v2239 = vpop.f32.mrf.mxu0
    %v2240 = vadd.f32 0.0, %v2239
    %v2241 = vpop.f32.mrf.mxu0
    %2242 = vdwg.mxu0
    %2243 = vmatpush.bf16.msra.mxu0 0
    %2244 = vmatpush.bf16.msra.mxu0 0
    %2245 = vmatpush.bf16.msra.mxu0 0
    %2246 = vmatpush.bf16.msra.mxu0 0
    %2247 = vmatpush.bf16.msra.mxu0 0
    %2248 = vmatpush.bf16.msra.mxu0 0
    %2249 = vmatpush.bf16.msra.mxu0 %v2207
    %2250 = vmatpush.bf16.msra.mxu0 %v2203
    %2251 = vmatmul.bf16.gmra.mxu0 %v306
    %v2252 = vpop.f32.mrf.mxu0
    %v2253 = vadd.f32 0.0, %v2252
    %v2254 = vpop.f32.mrf.mxu0
    %2255 = vdwg.mxu0
    %2256 = vmatpush.bf16.msra.mxu0 0
    %2257 = vmatpush.bf16.msra.mxu0 0
    %2258 = vmatpush.bf16.msra.mxu0 0
    %2259 = vmatpush.bf16.msra.mxu0 0
    %2260 = vmatpush.bf16.msra.mxu0 0
    %2261 = vmatpush.bf16.msra.mxu0 0
    %2262 = vmatpush.bf16.msra.mxu0 %v2208
    %2263 = vmatpush.bf16.msra.mxu0 %v2204
    %2264 = vmatmul.bf16.gmra.mxu0 %v306
    %v2265 = vpop.f32.mrf.mxu0
    %v2266 = vadd.f32 0.0, %v2265
    %v2267 = vpop.f32.mrf.mxu0
    %2268 = vdwg.mxu0
    %v2269 = vadd.f32 %v2123, %v2227
    %v2270 = vadd.f32 %v2137, %v2240
    %v2271 = vadd.f32 %v2151, %v2253
    %v2272 = vadd.f32 %v2165, %v2266
    %v2273 = vmul.f32 %v2269, 0.5
    %v2274 = vtanh.pop %v2273
    %v2275 = vmul.f32 %v2274, 0.5
    %v2276 = vadd.f32 %v2275, 0.5
    %v2277 = vmul.f32 %v2270, 0.5
    %v2278 = vtanh.pop %v2277
    %v2279 = vmul.f32 %v2278, 0.5
    %v2280 = vadd.f32 %v2279, 0.5
    %v2281 = vtanh.pop %v2271
    %v2282 = vmul.f32 %v2272, 0.5
    %v2283 = vtanh.pop %v2282
    %v2284 = vmul.f32 %v2283, 0.5
    %v2285 = vadd.f32 %v2284, 0.5
    %v2286 = vmul.f32 %v2280, 0.0
    %v2287 = vmul.f32 %v2276, %v2281
    %v2288 = vadd.f32 %v2286, %v2287
    %v2289 = vtanh.pop %v2288
    %v2290 = vmul.f32 %v2285, %v2289
    %v2291 = vpack.c.bf16 %v2290, %v2290
    %2292 = vst.msk [vmem:[#allocation2] sm:$0x1] %vm383, %v2291
    %v2294 = vsel %vm304, %v2291, 0
    %2296 = vmatpush.bf16.msra.mxu0 0
    %2297 = vmatpush.bf16.msra.mxu0 0
    %2298 = vmatpush.bf16.msra.mxu0 0
    %2299 = vmatpush.bf16.msra.mxu0 0
    %2300 = vmatpush.bf16.msra.mxu0 0
    %2301 = vmatpush.bf16.msra.mxu0 0
    %2302 = vmatpush.bf16.msra.mxu0 %v2205
    %2303 = vmatpush.bf16.msra.mxu0 %v2201
    %2304 = vmatmul.bf16.gmra.mxu0 %v2294
    %v2305 = vpop.f32.mrf.mxu0
    %v2306 = vadd.f32 0.0, %v2305
    %v2307 = vpop.f32.mrf.mxu0
    %2308 = vdwg.mxu0
    %2309 = vmatpush.bf16.msra.mxu0 0
    %2310 = vmatpush.bf16.msra.mxu0 0
    %2311 = vmatpush.bf16.msra.mxu0 0
    %2312 = vmatpush.bf16.msra.mxu0 0
    %2313 = vmatpush.bf16.msra.mxu0 0
    %2314 = vmatpush.bf16.msra.mxu0 0
    %2315 = vmatpush.bf16.msra.mxu0 %v2206
    %2316 = vmatpush.bf16.msra.mxu0 %v2202
    %2317 = vmatmul.bf16.gmra.mxu0 %v2294
    %v2318 = vpop.f32.mrf.mxu0
    %v2319 = vadd.f32 0.0, %v2318
    %v2320 = vpop.f32.mrf.mxu0
    %2321 = vdwg.mxu0
    %2322 = vmatpush.bf16.msra.mxu0 0
    %2323 = vmatpush.bf16.msra.mxu0 0
    %2324 = vmatpush.bf16.msra.mxu0 0
    %2325 = vmatpush.bf16.msra.mxu0 0
    %2326 = vmatpush.bf16.msra.mxu0 0
    %2327 = vmatpush.bf16.msra.mxu0 0
    %2328 = vmatpush.bf16.msra.mxu0 %v2207
    %2329 = vmatpush.bf16.msra.mxu0 %v2203
    %2330 = vmatmul.bf16.gmra.mxu0 %v2294
    %v2331 = vpop.f32.mrf.mxu0
    %v2332 = vadd.f32 0.0, %v2331
    %v2333 = vpop.f32.mrf.mxu0
    %2334 = vdwg.mxu0
    %2335 = vmatpush.bf16.msra.mxu0 0
    %2336 = vmatpush.bf16.msra.mxu0 0
    %2337 = vmatpush.bf16.msra.mxu0 0
    %2338 = vmatpush.bf16.msra.mxu0 0
    %2339 = vmatpush.bf16.msra.mxu0 0
    %2340 = vmatpush.bf16.msra.mxu0 0
    %2341 = vmatpush.bf16.msra.mxu0 %v2208
    %2342 = vmatpush.bf16.msra.mxu0 %v2204
    %2343 = vmatmul.bf16.gmra.mxu0 %v2294
    %v2344 = vpop.f32.mrf.mxu0
    %v2345 = vadd.f32 0.0, %v2344
    %v2346 = vpop.f32.mrf.mxu0
    %2347 = vdwg.mxu0
    %v2352 = vrot.slane %v2306, 6
    %v2353 = vrot.slane %v2319, 6
    %v2354 = vrot.slane %v2332, 6
    %v2355 = vrot.slane %v2345, 6
    %v2360 = vadd.f32 %v2123, %v2352
    %v2361 = vadd.f32 %v2137, %v2353
    %v2362 = vadd.f32 %v2151, %v2354
    %v2363 = vadd.f32 %v2165, %v2355
    %v2364 = vmul.f32 %v2360, 0.5
    %v2365 = vtanh.pop %v2364
    %v2366 = vmul.f32 %v2365, 0.5
    %v2367 = vadd.f32 %v2366, 0.5
    %v2368 = vmul.f32 %v2361, 0.5
    %v2369 = vtanh.pop %v2368
    %v2370 = vmul.f32 %v2369, 0.5
    %v2371 = vadd.f32 %v2370, 0.5
    %v2372 = vtanh.pop %v2362
    %v2373 = vmul.f32 %v2363, 0.5
    %v2374 = vtanh.pop %v2373
    %v2375 = vmul.f32 %v2374, 0.5
    %v2376 = vadd.f32 %v2375, 0.5
    %v2378 = vrot.slane %v2288, 6
    %v2380 = vmul.f32 %v2371, %v2378
    %v2381 = vmul.f32 %v2367, %v2372
    %v2382 = vadd.f32 %v2380, %v2381
    %v2383 = vtanh.pop %v2382
    %v2384 = vmul.f32 %v2376, %v2383
    %v2385 = vpack.c.bf16 %v2384, %v2384
    %2386 = vst.msk [vmem:[#allocation2] sm:$0x2] %vm478, %v2385
    %v2388 = vunpack.c.l.b16 %v2385
    %v2389 = vpack.c.b16 %v2388, %v2388
    %v2390 = vrot.slane %v2389, 1
    %v2392 = vsel %vm304, %v2390, 0
    %2394 = vmatpush.bf16.msra.mxu0 0
    %2395 = vmatpush.bf16.msra.mxu0 0
    %2396 = vmatpush.bf16.msra.mxu0 0
    %2397 = vmatpush.bf16.msra.mxu0 0
    %2398 = vmatpush.bf16.msra.mxu0 0
    %2399 = vmatpush.bf16.msra.mxu0 0
    %2400 = vmatpush.bf16.msra.mxu0 %v2205
    %2401 = vmatpush.bf16.msra.mxu0 %v2201
    %2402 = vmatmul.bf16.gmra.mxu0 %v2392
    %v2403 = vpop.f32.mrf.mxu0
    %v2404 = vadd.f32 0.0, %v2403
    %v2405 = vpop.f32.mrf.mxu0
    %2406 = vdwg.mxu0
    %2407 = vmatpush.bf16.msra.mxu0 0
    %2408 = vmatpush.bf16.msra.mxu0 0
    %2409 = vmatpush.bf16.msra.mxu0 0
    %2410 = vmatpush.bf16.msra.mxu0 0
    %2411 = vmatpush.bf16.msra.mxu0 0
    %2412 = vmatpush.bf16.msra.mxu0 0
    %2413 = vmatpush.bf16.msra.mxu0 %v2206
    %2414 = vmatpush.bf16.msra.mxu0 %v2202
    %2415 = vmatmul.bf16.gmra.mxu0 %v2392
    %v2416 = vpop.f32.mrf.mxu0
    %v2417 = vadd.f32 0.0, %v2416
    %v2418 = vpop.f32.mrf.mxu0
    %2419 = vdwg.mxu0
    %2420 = vmatpush.bf16.msra.mxu0 0
    %2421 = vmatpush.bf16.msra.mxu0 0
    %2422 = vmatpush.bf16.msra.mxu0 0
    %2423 = vmatpush.bf16.msra.mxu0 0
    %2424 = vmatpush.bf16.msra.mxu0 0
    %2425 = vmatpush.bf16.msra.mxu0 0
    %2426 = vmatpush.bf16.msra.mxu0 %v2207
    %2427 = vmatpush.bf16.msra.mxu0 %v2203
    %2428 = vmatmul.bf16.gmra.mxu0 %v2392
    %v2429 = vpop.f32.mrf.mxu0
    %v2430 = vadd.f32 0.0, %v2429
    %v2431 = vpop.f32.mrf.mxu0
    %2432 = vdwg.mxu0
    %2433 = vmatpush.bf16.msra.mxu0 0
    %2434 = vmatpush.bf16.msra.mxu0 0
    %2435 = vmatpush.bf16.msra.mxu0 0
    %2436 = vmatpush.bf16.msra.mxu0 0
    %2437 = vmatpush.bf16.msra.mxu0 0
    %2438 = vmatpush.bf16.msra.mxu0 0
    %2439 = vmatpush.bf16.msra.mxu0 %v2208
    %2440 = vmatpush.bf16.msra.mxu0 %v2204
    %2441 = vmatmul.bf16.gmra.mxu0 %v2392
    %v2442 = vpop.f32.mrf.mxu0
    %v2443 = vadd.f32 0.0, %v2442
    %v2444 = vpop.f32.mrf.mxu0
    %2445 = vdwg.mxu0
    %v2450 = vrot.slane %v2404, 4
    %v2451 = vrot.slane %v2417, 4
    %v2452 = vrot.slane %v2430, 4
    %v2453 = vrot.slane %v2443, 4
    %v2458 = vadd.f32 %v2123, %v2450
    %v2459 = vadd.f32 %v2137, %v2451
    %v2460 = vadd.f32 %v2151, %v2452
    %v2461 = vadd.f32 %v2165, %v2453
    %v2462 = vmul.f32 %v2458, 0.5
    %v2463 = vtanh.pop %v2462
    %v2464 = vmul.f32 %v2463, 0.5
    %v2465 = vadd.f32 %v2464, 0.5
    %v2466 = vmul.f32 %v2459, 0.5
    %v2467 = vtanh.pop %v2466
    %v2468 = vmul.f32 %v2467, 0.5
    %v2469 = vadd.f32 %v2468, 0.5
    %v2470 = vtanh.pop %v2460
    %v2471 = vmul.f32 %v2461, 0.5
    %v2472 = vtanh.pop %v2471
    %v2473 = vmul.f32 %v2472, 0.5
    %v2474 = vadd.f32 %v2473, 0.5
    %v2476 = vrot.slane %v2382, 6
    %v2478 = vmul.f32 %v2469, %v2476
    %v2479 = vmul.f32 %v2465, %v2470
    %v2480 = vadd.f32 %v2478, %v2479
    %v2481 = vtanh.pop %v2480
    %v2482 = vmul.f32 %v2474, %v2481
    %v2483 = vpack.c.bf16 %v2482, %v2482
    %2484 = vst.msk [vmem:[#allocation2] sm:$0x4] %vm577, %v2483
    %v2486 = vunpack.c.l.b16 %v2483
    %v2487 = vpack.c.b16 %v2486, %v2486
    %v2488 = vrot.slane %v2487, 2
    %v2490 = vsel %vm304, %v2488, 0
    %2492 = vmatpush.bf16.msra.mxu0 0
    %2493 = vmatpush.bf16.msra.mxu0 0
    %2494 = vmatpush.bf16.msra.mxu0 0
    %2495 = vmatpush.bf16.msra.mxu0 0
    %2496 = vmatpush.bf16.msra.mxu0 0
    %2497 = vmatpush.bf16.msra.mxu0 0
    %2498 = vmatpush.bf16.msra.mxu0 %v2205
    %2499 = vmatpush.bf16.msra.mxu0 %v2201
    %2500 = vmatmul.bf16.gmra.mxu0 %v2490
    %v2501 = vpop.f32.mrf.mxu0
    %v2502 = vadd.f32 0.0, %v2501
    %v2503 = vpop.f32.mrf.mxu0
    %2504 = vdwg.mxu0
    %2505 = vmatpush.bf16.msra.mxu0 0
    %2506 = vmatpush.bf16.msra.mxu0 0
    %2507 = vmatpush.bf16.msra.mxu0 0
    %2508 = vmatpush.bf16.msra.mxu0 0
    %2509 = vmatpush.bf16.msra.mxu0 0
    %2510 = vmatpush.bf16.msra.mxu0 0
    %2511 = vmatpush.bf16.msra.mxu0 %v2206
    %2512 = vmatpush.bf16.msra.mxu0 %v2202
    %2513 = vmatmul.bf16.gmra.mxu0 %v2490
    %v2514 = vpop.f32.mrf.mxu0
    %v2515 = vadd.f32 0.0, %v2514
    %v2516 = vpop.f32.mrf.mxu0
    %2517 = vdwg.mxu0
    %2518 = vmatpush.bf16.msra.mxu0 0
    %2519 = vmatpush.bf16.msra.mxu0 0
    %2520 = vmatpush.bf16.msra.mxu0 0
    %2521 = vmatpush.bf16.msra.mxu0 0
    %2522 = vmatpush.bf16.msra.mxu0 0
    %2523 = vmatpush.bf16.msra.mxu0 0
    %2524 = vmatpush.bf16.msra.mxu0 %v2207
    %2525 = vmatpush.bf16.msra.mxu0 %v2203
    %2526 = vmatmul.bf16.gmra.mxu0 %v2490
    %v2527 = vpop.f32.mrf.mxu0
    %v2528 = vadd.f32 0.0, %v2527
    %v2529 = vpop.f32.mrf.mxu0
    %2530 = vdwg.mxu0
    %2531 = vmatpush.bf16.msra.mxu0 0
    %2532 = vmatpush.bf16.msra.mxu0 0
    %2533 = vmatpush.bf16.msra.mxu0 0
    %2534 = vmatpush.bf16.msra.mxu0 0
    %2535 = vmatpush.bf16.msra.mxu0 0
    %2536 = vmatpush.bf16.msra.mxu0 0
    %2537 = vmatpush.bf16.msra.mxu0 %v2208
    %2538 = vmatpush.bf16.msra.mxu0 %v2204
    %2539 = vmatmul.bf16.gmra.mxu0 %v2490
    %v2540 = vpop.f32.mrf.mxu0
    %v2541 = vadd.f32 0.0, %v2540
    %v2542 = vpop.f32.mrf.mxu0
    %2543 = vdwg.mxu0
    %v2548 = vrot.slane %v2502, 2
    %v2549 = vrot.slane %v2515, 2
    %v2550 = vrot.slane %v2528, 2
    %v2551 = vrot.slane %v2541, 2
    %v2556 = vadd.f32 %v2123, %v2548
    %v2557 = vadd.f32 %v2137, %v2549
    %v2558 = vadd.f32 %v2151, %v2550
    %v2559 = vadd.f32 %v2165, %v2551
    %v2560 = vmul.f32 %v2556, 0.5
    %v2561 = vtanh.pop %v2560
    %v2562 = vmul.f32 %v2561, 0.5
    %v2563 = vadd.f32 %v2562, 0.5
    %v2564 = vmul.f32 %v2557, 0.5
    %v2565 = vtanh.pop %v2564
    %v2566 = vmul.f32 %v2565, 0.5
    %v2567 = vadd.f32 %v2566, 0.5
    %v2568 = vtanh.pop %v2558
    %v2569 = vmul.f32 %v2559, 0.5
    %v2570 = vtanh.pop %v2569
    %v2571 = vmul.f32 %v2570, 0.5
    %v2572 = vadd.f32 %v2571, 0.5
    %v2574 = vrot.slane %v2480, 6
    %v2576 = vmul.f32 %v2567, %v2574
    %v2577 = vmul.f32 %v2563, %v2568
    %v2578 = vadd.f32 %v2576, %v2577
    %v2579 = vtanh.pop %v2578
    %v2580 = vmul.f32 %v2572, %v2579
    %v2581 = vpack.c.bf16 %v2580, %v2580
    %2582 = vst.msk [vmem:[#allocation2] sm:$0x8] %vm676, %v2581
    %v2584 = vunpack.c.l.b16 %v2581
    %v2585 = vpack.c.b16 %v2584, %v2584
    %v2586 = vrot.slane %v2585, 3
    %v2588 = vsel %vm304, %v2586, 0
    %2590 = vmatpush.bf16.msra.mxu0 0
    %2591 = vmatpush.bf16.msra.mxu0 0
    %2592 = vmatpush.bf16.msra.mxu0 0
    %2593 = vmatpush.bf16.msra.mxu0 0
    %2594 = vmatpush.bf16.msra.mxu0 0
    %2595 = vmatpush.bf16.msra.mxu0 0
    %2596 = vmatpush.bf16.msra.mxu0 %v2205
    %2597 = vmatpush.bf16.msra.mxu0 %v2201
    %2598 = vmatmul.bf16.gmra.mxu0 %v2588
    %v2599 = vpop.f32.mrf.mxu0
    %v2600 = vadd.f32 0.0, %v2599
    %v2601 = vpop.f32.mrf.mxu0
    %2602 = vdwg.mxu0
    %2603 = vmatpush.bf16.msra.mxu0 0
    %2604 = vmatpush.bf16.msra.mxu0 0
    %2605 = vmatpush.bf16.msra.mxu0 0
    %2606 = vmatpush.bf16.msra.mxu0 0
    %2607 = vmatpush.bf16.msra.mxu0 0
    %2608 = vmatpush.bf16.msra.mxu0 0
    %2609 = vmatpush.bf16.msra.mxu0 %v2206
    %2610 = vmatpush.bf16.msra.mxu0 %v2202
    %2611 = vmatmul.bf16.gmra.mxu0 %v2588
    %v2612 = vpop.f32.mrf.mxu0
    %v2613 = vadd.f32 0.0, %v2612
    %v2614 = vpop.f32.mrf.mxu0
    %2615 = vdwg.mxu0
    %2616 = vmatpush.bf16.msra.mxu0 0
    %2617 = vmatpush.bf16.msra.mxu0 0
    %2618 = vmatpush.bf16.msra.mxu0 0
    %2619 = vmatpush.bf16.msra.mxu0 0
    %2620 = vmatpush.bf16.msra.mxu0 0
    %2621 = vmatpush.bf16.msra.mxu0 0
    %2622 = vmatpush.bf16.msra.mxu0 %v2207
    %2623 = vmatpush.bf16.msra.mxu0 %v2203
    %2624 = vmatmul.bf16.gmra.mxu0 %v2588
    %v2625 = vpop.f32.mrf.mxu0
    %v2626 = vadd.f32 0.0, %v2625
    %v2627 = vpop.f32.mrf.mxu0
    %2628 = vdwg.mxu0
    %2629 = vmatpush.bf16.msra.mxu0 0
    %2630 = vmatpush.bf16.msra.mxu0 0
    %2631 = vmatpush.bf16.msra.mxu0 0
    %2632 = vmatpush.bf16.msra.mxu0 0
    %2633 = vmatpush.bf16.msra.mxu0 0
    %2634 = vmatpush.bf16.msra.mxu0 0
    %2635 = vmatpush.bf16.msra.mxu0 %v2208
    %2636 = vmatpush.bf16.msra.mxu0 %v2204
    %2637 = vmatmul.bf16.gmra.mxu0 %v2588
    %v2638 = vpop.f32.mrf.mxu0
    %v2639 = vadd.f32 0.0, %v2638
    %v2640 = vpop.f32.mrf.mxu0
    %2641 = vdwg.mxu0
    %v2642 = vadd.f32 %v2125, %v2600
    %v2643 = vadd.f32 %v2139, %v2613
    %v2644 = vadd.f32 %v2153, %v2626
    %v2645 = vadd.f32 %v2167, %v2639
    %v2646 = vmul.f32 %v2642, 0.5
    %v2647 = vtanh.pop %v2646
    %v2648 = vmul.f32 %v2647, 0.5
    %v2649 = vadd.f32 %v2648, 0.5
    %v2650 = vmul.f32 %v2643, 0.5
    %v2651 = vtanh.pop %v2650
    %v2652 = vmul.f32 %v2651, 0.5
    %v2653 = vadd.f32 %v2652, 0.5
    %v2654 = vtanh.pop %v2644
    %v2655 = vmul.f32 %v2645, 0.5
    %v2656 = vtanh.pop %v2655
    %v2657 = vmul.f32 %v2656, 0.5
    %v2658 = vadd.f32 %v2657, 0.5
    %v2660 = vrot.slane %v2578, 6
    %v2662 = vmul.f32 %v2653, %v2660
    %v2663 = vmul.f32 %v2649, %v2654
    %v2664 = vadd.f32 %v2662, %v2663
    %v2665 = vtanh.pop %v2664
    %v2666 = vmul.f32 %v2658, %v2665
    %v2667 = vpack.c.bf16 %v2666, %v2666
    %2668 = vst.msk [vmem:[#allocation2 + $0x4] sm:$0x1] %vm383, %v2667
    %v2670 = vsel %vm304, %v2667, 0
    %2672 = vmatpush.bf16.msra.mxu0 0
    %2673 = vmatpush.bf16.msra.mxu0 0
    %2674 = vmatpush.bf16.msra.mxu0 0
    %2675 = vmatpush.bf16.msra.mxu0 0
    %2676 = vmatpush.bf16.msra.mxu0 0
    %2677 = vmatpush.bf16.msra.mxu0 0
    %2678 = vmatpush.bf16.msra.mxu0 %v2205
    %2679 = vmatpush.bf16.msra.mxu0 %v2201
    %2680 = vmatmul.bf16.gmra.mxu0 %v2670
    %v2681 = vpop.f32.mrf.mxu0
    %v2682 = vadd.f32 0.0, %v2681
    %v2683 = vpop.f32.mrf.mxu0
    %2684 = vdwg.mxu0
    %2685 = vmatpush.bf16.msra.mxu0 0
    %2686 = vmatpush.bf16.msra.mxu0 0
    %2687 = vmatpush.bf16.msra.mxu0 0
    %2688 = vmatpush.bf16.msra.mxu0 0
    %2689 = vmatpush.bf16.msra.mxu0 0
    %2690 = vmatpush.bf16.msra.mxu0 0
    %2691 = vmatpush.bf16.msra.mxu0 %v2206
    %2692 = vmatpush.bf16.msra.mxu0 %v2202
    %2693 = vmatmul.bf16.gmra.mxu0 %v2670
    %v2694 = vpop.f32.mrf.mxu0
    %v2695 = vadd.f32 0.0, %v2694
    %v2696 = vpop.f32.mrf.mxu0
    %2697 = vdwg.mxu0
    %2698 = vmatpush.bf16.msra.mxu0 0
    %2699 = vmatpush.bf16.msra.mxu0 0
    %2700 = vmatpush.bf16.msra.mxu0 0
    %2701 = vmatpush.bf16.msra.mxu0 0
    %2702 = vmatpush.bf16.msra.mxu0 0
    %2703 = vmatpush.bf16.msra.mxu0 0
    %2704 = vmatpush.bf16.msra.mxu0 %v2207
    %2705 = vmatpush.bf16.msra.mxu0 %v2203
    %2706 = vmatmul.bf16.gmra.mxu0 %v2670
    %v2707 = vpop.f32.mrf.mxu0
    %v2708 = vadd.f32 0.0, %v2707
    %v2709 = vpop.f32.mrf.mxu0
    %2710 = vdwg.mxu0
    %2711 = vmatpush.bf16.msra.mxu0 0
    %2712 = vmatpush.bf16.msra.mxu0 0
    %2713 = vmatpush.bf16.msra.mxu0 0
    %2714 = vmatpush.bf16.msra.mxu0 0
    %2715 = vmatpush.bf16.msra.mxu0 0
    %2716 = vmatpush.bf16.msra.mxu0 0
    %2717 = vmatpush.bf16.msra.mxu0 %v2208
    %2718 = vmatpush.bf16.msra.mxu0 %v2204
    %2719 = vmatmul.bf16.gmra.mxu0 %v2670
    %v2720 = vpop.f32.mrf.mxu0
    %v2721 = vadd.f32 0.0, %v2720
    %v2722 = vpop.f32.mrf.mxu0
    %2723 = vdwg.mxu0
    %v2728 = vrot.slane %v2682, 6
    %v2729 = vrot.slane %v2695, 6
    %v2730 = vrot.slane %v2708, 6
    %v2731 = vrot.slane %v2721, 6
    %v2736 = vadd.f32 %v2125, %v2728
    %v2737 = vadd.f32 %v2139, %v2729
    %v2738 = vadd.f32 %v2153, %v2730
    %v2739 = vadd.f32 %v2167, %v2731
    %v2740 = vmul.f32 %v2736, 0.5
    %v2741 = vtanh.pop %v2740
    %v2742 = vmul.f32 %v2741, 0.5
    %v2743 = vadd.f32 %v2742, 0.5
    %v2744 = vmul.f32 %v2737, 0.5
    %v2745 = vtanh.pop %v2744
    %v2746 = vmul.f32 %v2745, 0.5
    %v2747 = vadd.f32 %v2746, 0.5
    %v2748 = vtanh.pop %v2738
    %v2749 = vmul.f32 %v2739, 0.5
    %v2750 = vtanh.pop %v2749
    %v2751 = vmul.f32 %v2750, 0.5
    %v2752 = vadd.f32 %v2751, 0.5
    %v2754 = vrot.slane %v2664, 6
    %v2756 = vmul.f32 %v2747, %v2754
    %v2757 = vmul.f32 %v2743, %v2748
    %v2758 = vadd.f32 %v2756, %v2757
    %v2759 = vtanh.pop %v2758
    %v2760 = vmul.f32 %v2752, %v2759
    %v2761 = vpack.c.bf16 %v2760, %v2760
    %2762 = vst.msk [vmem:[#allocation2 + $0x4] sm:$0x2] %vm478, %v2761
    %v2764 = vunpack.c.l.b16 %v2761
    %v2765 = vpack.c.b16 %v2764, %v2764
    %v2766 = vrot.slane %v2765, 1
    %v2768 = vsel %vm304, %v2766, 0
    %2770 = vmatpush.bf16.msra.mxu0 0
    %2771 = vmatpush.bf16.msra.mxu0 0
    %2772 = vmatpush.bf16.msra.mxu0 0
    %2773 = vmatpush.bf16.msra.mxu0 0
    %2774 = vmatpush.bf16.msra.mxu0 0
    %2775 = vmatpush.bf16.msra.mxu0 0
    %2776 = vmatpush.bf16.msra.mxu0 %v2205
    %2777 = vmatpush.bf16.msra.mxu0 %v2201
    %2778 = vmatmul.bf16.gmra.mxu0 %v2768
    %v2779 = vpop.f32.mrf.mxu0
    %v2780 = vadd.f32 0.0, %v2779
    %v2781 = vpop.f32.mrf.mxu0
    %2782 = vdwg.mxu0
    %2783 = vmatpush.bf16.msra.mxu0 0
    %2784 = vmatpush.bf16.msra.mxu0 0
    %2785 = vmatpush.bf16.msra.mxu0 0
    %2786 = vmatpush.bf16.msra.mxu0 0
    %2787 = vmatpush.bf16.msra.mxu0 0
    %2788 = vmatpush.bf16.msra.mxu0 0
    %2789 = vmatpush.bf16.msra.mxu0 %v2206
    %2790 = vmatpush.bf16.msra.mxu0 %v2202
    %2791 = vmatmul.bf16.gmra.mxu0 %v2768
    %v2792 = vpop.f32.mrf.mxu0
    %v2793 = vadd.f32 0.0, %v2792
    %v2794 = vpop.f32.mrf.mxu0
    %2795 = vdwg.mxu0
    %2796 = vmatpush.bf16.msra.mxu0 0
    %2797 = vmatpush.bf16.msra.mxu0 0
    %2798 = vmatpush.bf16.msra.mxu0 0
    %2799 = vmatpush.bf16.msra.mxu0 0
    %2800 = vmatpush.bf16.msra.mxu0 0
    %2801 = vmatpush.bf16.msra.mxu0 0
    %2802 = vmatpush.bf16.msra.mxu0 %v2207
    %2803 = vmatpush.bf16.msra.mxu0 %v2203
    %2804 = vmatmul.bf16.gmra.mxu0 %v2768
    %v2805 = vpop.f32.mrf.mxu0
    %v2806 = vadd.f32 0.0, %v2805
    %v2807 = vpop.f32.mrf.mxu0
    %2808 = vdwg.mxu0
    %2809 = vmatpush.bf16.msra.mxu0 0
    %2810 = vmatpush.bf16.msra.mxu0 0
    %2811 = vmatpush.bf16.msra.mxu0 0
    %2812 = vmatpush.bf16.msra.mxu0 0
    %2813 = vmatpush.bf16.msra.mxu0 0
    %2814 = vmatpush.bf16.msra.mxu0 0
    %2815 = vmatpush.bf16.msra.mxu0 %v2208
    %2816 = vmatpush.bf16.msra.mxu0 %v2204
    %2817 = vmatmul.bf16.gmra.mxu0 %v2768
    %v2818 = vpop.f32.mrf.mxu0
    %v2819 = vadd.f32 0.0, %v2818
    %v2820 = vpop.f32.mrf.mxu0
    %2821 = vdwg.mxu0
    %v2826 = vrot.slane %v2780, 4
    %v2827 = vrot.slane %v2793, 4
    %v2828 = vrot.slane %v2806, 4
    %v2829 = vrot.slane %v2819, 4
    %v2834 = vadd.f32 %v2125, %v2826
    %v2835 = vadd.f32 %v2139, %v2827
    %v2836 = vadd.f32 %v2153, %v2828
    %v2837 = vadd.f32 %v2167, %v2829
    %v2838 = vmul.f32 %v2834, 0.5
    %v2839 = vtanh.pop %v2838
    %v2840 = vmul.f32 %v2839, 0.5
    %v2841 = vadd.f32 %v2840, 0.5
    %v2842 = vmul.f32 %v2835, 0.5
    %v2843 = vtanh.pop %v2842
    %v2844 = vmul.f32 %v2843, 0.5
    %v2845 = vadd.f32 %v2844, 0.5
    %v2846 = vtanh.pop %v2836
    %v2847 = vmul.f32 %v2837, 0.5
    %v2848 = vtanh.pop %v2847
    %v2849 = vmul.f32 %v2848, 0.5
    %v2850 = vadd.f32 %v2849, 0.5
    %v2852 = vrot.slane %v2758, 6
    %v2854 = vmul.f32 %v2845, %v2852
    %v2855 = vmul.f32 %v2841, %v2846
    %v2856 = vadd.f32 %v2854, %v2855
    %v2857 = vtanh.pop %v2856
    %v2858 = vmul.f32 %v2850, %v2857
    %v2859 = vpack.c.bf16 %v2858, %v2858
    %2860 = vst.msk [vmem:[#allocation2 + $0x4] sm:$0x4] %vm577, %v2859
    %v2862 = vunpack.c.l.b16 %v2859
    %v2863 = vpack.c.b16 %v2862, %v2862
    %v2864 = vrot.slane %v2863, 2
    %v2866 = vsel %vm304, %v2864, 0
    %2868 = vmatpush.bf16.msra.mxu0 0
    %2869 = vmatpush.bf16.msra.mxu0 0
    %2870 = vmatpush.bf16.msra.mxu0 0
    %2871 = vmatpush.bf16.msra.mxu0 0
    %2872 = vmatpush.bf16.msra.mxu0 0
    %2873 = vmatpush.bf16.msra.mxu0 0
    %2874 = vmatpush.bf16.msra.mxu0 %v2205
    %2875 = vmatpush.bf16.msra.mxu0 %v2201
    %2876 = vmatmul.bf16.gmra.mxu0 %v2866
    %v2877 = vpop.f32.mrf.mxu0
    %v2878 = vadd.f32 0.0, %v2877
    %v2879 = vpop.f32.mrf.mxu0
    %2880 = vdwg.mxu0
    %2881 = vmatpush.bf16.msra.mxu0 0
    %2882 = vmatpush.bf16.msra.mxu0 0
    %2883 = vmatpush.bf16.msra.mxu0 0
    %2884 = vmatpush.bf16.msra.mxu0 0
    %2885 = vmatpush.bf16.msra.mxu0 0
    %2886 = vmatpush.bf16.msra.mxu0 0
    %2887 = vmatpush.bf16.msra.mxu0 %v2206
    %2888 = vmatpush.bf16.msra.mxu0 %v2202
    %2889 = vmatmul.bf16.gmra.mxu0 %v2866
    %v2890 = vpop.f32.mrf.mxu0
    %v2891 = vadd.f32 0.0, %v2890
    %v2892 = vpop.f32.mrf.mxu0
    %2893 = vdwg.mxu0
    %2894 = vmatpush.bf16.msra.mxu0 0
    %2895 = vmatpush.bf16.msra.mxu0 0
    %2896 = vmatpush.bf16.msra.mxu0 0
    %2897 = vmatpush.bf16.msra.mxu0 0
    %2898 = vmatpush.bf16.msra.mxu0 0
    %2899 = vmatpush.bf16.msra.mxu0 0
    %2900 = vmatpush.bf16.msra.mxu0 %v2207
    %2901 = vmatpush.bf16.msra.mxu0 %v2203
    %2902 = vmatmul.bf16.gmra.mxu0 %v2866
    %v2903 = vpop.f32.mrf.mxu0
    %v2904 = vadd.f32 0.0, %v2903
    %v2905 = vpop.f32.mrf.mxu0
    %2906 = vdwg.mxu0
    %2907 = vmatpush.bf16.msra.mxu0 0
    %2908 = vmatpush.bf16.msra.mxu0 0
    %2909 = vmatpush.bf16.msra.mxu0 0
    %2910 = vmatpush.bf16.msra.mxu0 0
    %2911 = vmatpush.bf16.msra.mxu0 0
    %2912 = vmatpush.bf16.msra.mxu0 0
    %2913 = vmatpush.bf16.msra.mxu0 %v2208
    %2914 = vmatpush.bf16.msra.mxu0 %v2204
    %2915 = vmatmul.bf16.gmra.mxu0 %v2866
    %v2916 = vpop.f32.mrf.mxu0
    %v2917 = vadd.f32 0.0, %v2916
    %v2918 = vpop.f32.mrf.mxu0
    %2919 = vdwg.mxu0
    %v2924 = vrot.slane %v2878, 2
    %v2925 = vrot.slane %v2891, 2
    %v2926 = vrot.slane %v2904, 2
    %v2927 = vrot.slane %v2917, 2
    %v2932 = vadd.f32 %v2125, %v2924
    %v2933 = vadd.f32 %v2139, %v2925
    %v2934 = vadd.f32 %v2153, %v2926
    %v2935 = vadd.f32 %v2167, %v2927
    %v2936 = vmul.f32 %v2932, 0.5
    %v2937 = vtanh.pop %v2936
    %v2938 = vmul.f32 %v2937, 0.5
    %v2939 = vadd.f32 %v2938, 0.5
    %v2940 = vmul.f32 %v2933, 0.5
    %v2941 = vtanh.pop %v2940
    %v2942 = vmul.f32 %v2941, 0.5
    %v2943 = vadd.f32 %v2942, 0.5
    %v2944 = vtanh.pop %v2934
    %v2945 = vmul.f32 %v2935, 0.5
    %v2946 = vtanh.pop %v2945
    %v2947 = vmul.f32 %v2946, 0.5
    %v2948 = vadd.f32 %v2947, 0.5
    %v2950 = vrot.slane %v2856, 6
    %v2952 = vmul.f32 %v2943, %v2950
    %v2953 = vmul.f32 %v2939, %v2944
    %v2954 = vadd.f32 %v2952, %v2953
    %v2955 = vtanh.pop %v2954
    %v2956 = vmul.f32 %v2948, %v2955
    %v2957 = vpack.c.bf16 %v2956, %v2956
    %2958 = vst.msk [vmem:[#allocation2 + $0x4] sm:$0x8] %vm676, %v2957
    %v2959 = vld [vmem:[#allocation3 + $0x280] sm:$0xf]
    %v2960 = vld [vmem:[#allocation3 + $0x290] sm:$0xf]
    %v2961 = vld [vmem:[#allocation3 + $0x2a0] sm:$0xf]
    %v2962 = vld [vmem:[#allocation3 + $0x2b0] sm:$0xf]
    %v2964 = vunpack.c.l.b16 %v2957
    %v2965 = vpack.c.b16 %v2964, %v2964
    %v2966 = vrot.slane %v2965, 3
    %v2971 = vunpack.c.l.b16 %v2959
    %v2972 = vunpack.c.l.b16 %v2960
    %v2973 = vunpack.c.l.b16 %v2961
    %v2974 = vunpack.c.l.b16 %v2962
    %v2975 = vpack.c.b16 %v2972, %v2971
    %v2976 = vpack.c.b16 %v2974, %v2973
    %v2980 = vsel %vm304, %v2966, 0
    %2982 = vmatpush.bf16.msra.mxu0 0
    %2983 = vmatpush.bf16.msra.mxu0 0
    %2984 = vmatpush.bf16.msra.mxu0 0
    %2985 = vmatpush.bf16.msra.mxu0 0
    %2986 = vmatpush.bf16.msra.mxu0 0
    %2987 = vmatpush.bf16.msra.mxu0 0
    %2988 = vmatpush.bf16.msra.mxu0 %v2976
    %2989 = vmatpush.bf16.msra.mxu0 %v2975
    %2990 = vmatmul.bf16.gmra.mxu0 %v2980
    %v2991 = vpop.f32.mrf.mxu0
    %v2992 = vadd.f32 0.0, %v2991
    %v2993 = vpop.f32.mrf.mxu0
    %2994 = vdwg.mxu0
    %v2995 = vadd.f32 %v2043, %v2992
    %v2996 = vld [vmem:[#allocation2] sm:$0xf]
    %v2997 = vld [vmem:[#allocation2 + $0x4] sm:$0xf]
    %v2998 = vld [vmem:[#allocation3 + $0x180] sm:$0xff]
    %v2999 = vld [vmem:[#allocation3 + $0x188] sm:$0xff]
    %v3000 = vld [vmem:[#allocation3 + $0x190] sm:$0xff]
    %v3001 = vld [vmem:[#allocation3 + $0x198] sm:$0xff]
    %v3002 = vld [vmem:[#allocation3 + $0x1a0] sm:$0xff]
    %v3003 = vld [vmem:[#allocation3 + $0x1a8] sm:$0xff]
    %v3004 = vld [vmem:[#allocation3 + $0x1b0] sm:$0xff]
    %v3005 = vld [vmem:[#allocation3 + $0x1b8] sm:$0xff]
    %s3006 = scalar_lea.vmem %s3, 3
    %v3007 = vld [vmem:[%s3006] ss:$8 sm:$0xf]
    %v3009 = vperm.slane %v3007, 0
    %v3010 = vperm.slane %v3007, 1
    %v3011 = vperm.slane %v3007, 2
    %v3012 = vperm.slane %v3007, 3
    %v3019 = vunpack.c.l.b16 %v2996
    %v3020 = vunpack.c.l.b16 %v2997
    %v3021 = vpack.c.b16 %v3020, %v3019
    %v3030 = vunpack.c.l.b16 %v2998
    %v3031 = vunpack.c.h.b16 %v2998
    %v3032 = vunpack.c.l.b16 %v2999
    %v3033 = vunpack.c.h.b16 %v2999
    %v3034 = vunpack.c.l.b16 %v3000
    %v3035 = vunpack.c.h.b16 %v3000
    %v3036 = vunpack.c.l.b16 %v3001
    %v3037 = vunpack.c.h.b16 %v3001
    %v3038 = vunpack.c.l.b16 %v3002
    %v3039 = vunpack.c.h.b16 %v3002
    %v3040 = vunpack.c.l.b16 %v3003
    %v3041 = vunpack.c.h.b16 %v3003
    %v3042 = vunpack.c.l.b16 %v3004
    %v3043 = vunpack.c.h.b16 %v3004
    %v3044 = vunpack.c.l.b16 %v3005
    %v3045 = vunpack.c.h.b16 %v3005
    %v3046 = vpack.c.b16 %v3034, %v3030
    %v3047 = vpack.c.b16 %v3035, %v3031
    %v3048 = vpack.c.b16 %v3036, %v3032
    %v3049 = vpack.c.b16 %v3037, %v3033
    %v3050 = vpack.c.b16 %v3042, %v3038
    %v3051 = vpack.c.b16 %v3043, %v3039
    %v3052 = vpack.c.b16 %v3044, %v3040
    %v3053 = vpack.c.b16 %v3045, %v3041
    %v3063 = vsel %vm304, %v3021, 0
    %3065 = vmatpush.bf16.msra.mxu0 0
    %3066 = vmatpush.bf16.msra.mxu0 0
    %3067 = vmatpush.bf16.msra.mxu0 0
    %3068 = vmatpush.bf16.msra.mxu0 0
    %3069 = vmatpush.bf16.msra.mxu0 0
    %3070 = vmatpush.bf16.msra.mxu0 0
    %3071 = vmatpush.bf16.msra.mxu0 %v3050
    %3072 = vmatpush.bf16.msra.mxu0 %v3046
    %3073 = vmatmul.bf16.gmra.mxu0 %v3063
    %v3074 = vpop.f32.mrf.mxu0
    %v3075 = vadd.f32 %v3009, %v3074
    %v3076 = vpop.f32.mrf.mxu0
    %v3077 = vadd.f32 %v3009, %v3076
    %3078 = vdwg.mxu0
    %3079 = vmatpush.bf16.msra.mxu0 0
    %3080 = vmatpush.bf16.msra.mxu0 0
    %3081 = vmatpush.bf16.msra.mxu0 0
    %3082 = vmatpush.bf16.msra.mxu0 0
    %3083 = vmatpush.bf16.msra.mxu0 0
    %3084 = vmatpush.bf16.msra.mxu0 0
    %3085 = vmatpush.bf16.msra.mxu0 %v3051
    %3086 = vmatpush.bf16.msra.mxu0 %v3047
    %3087 = vmatmul.bf16.gmra.mxu0 %v3063
    %v3088 = vpop.f32.mrf.mxu0
    %v3089 = vadd.f32 %v3010, %v3088
    %v3090 = vpop.f32.mrf.mxu0
    %v3091 = vadd.f32 %v3010, %v3090
    %3092 = vdwg.mxu0
    %3093 = vmatpush.bf16.msra.mxu0 0
    %3094 = vmatpush.bf16.msra.mxu0 0
    %3095 = vmatpush.bf16.msra.mxu0 0
    %3096 = vmatpush.bf16.msra.mxu0 0
    %3097 = vmatpush.bf16.msra.mxu0 0
    %3098 = vmatpush.bf16.msra.mxu0 0
    %3099 = vmatpush.bf16.msra.mxu0 %v3052
    %3100 = vmatpush.bf16.msra.mxu0 %v3048
    %3101 = vmatmul.bf16.gmra.mxu0 %v3063
    %v3102 = vpop.f32.mrf.mxu0
    %v3103 = vadd.f32 %v3011, %v3102
    %v3104 = vpop.f32.mrf.mxu0
    %v3105 = vadd.f32 %v3011, %v3104
    %3106 = vdwg.mxu0
    %3107 = vmatpush.bf16.msra.mxu0 0
    %3108 = vmatpush.bf16.msra.mxu0 0
    %3109 = vmatpush.bf16.msra.mxu0 0
    %3110 = vmatpush.bf16.msra.mxu0 0
    %3111 = vmatpush.bf16.msra.mxu0 0
    %3112 = vmatpush.bf16.msra.mxu0 0
    %3113 = vmatpush.bf16.msra.mxu0 %v3053
    %3114 = vmatpush.bf16.msra.mxu0 %v3049
    %3115 = vmatmul.bf16.gmra.mxu0 %v3063
    %v3116 = vpop.f32.mrf.mxu0
    %v3117 = vadd.f32 %v3012, %v3116
    %v3118 = vpop.f32.mrf.mxu0
    %v3119 = vadd.f32 %v3012, %v3118
    %3120 = vdwg.mxu0
    %v3121 = vld [vmem:[#allocation3 + $0x1c0] sm:$0xff]
    %v3122 = vld [vmem:[#allocation3 + $0x1c8] sm:$0xff]
    %v3123 = vld [vmem:[#allocation3 + $0x1d0] sm:$0xff]
    %v3124 = vld [vmem:[#allocation3 + $0x1d8] sm:$0xff]
    %v3125 = vld [vmem:[#allocation3 + $0x1e0] sm:$0xff]
    %v3126 = vld [vmem:[#allocation3 + $0x1e8] sm:$0xff]
    %v3127 = vld [vmem:[#allocation3 + $0x1f0] sm:$0xff]
    %v3128 = vld [vmem:[#allocation3 + $0x1f8] sm:$0xff]
    %v3137 = vunpack.c.l.b16 %v3121
    %v3138 = vunpack.c.h.b16 %v3121
    %v3139 = vunpack.c.l.b16 %v3122
    %v3140 = vunpack.c.h.b16 %v3122
    %v3141 = vunpack.c.l.b16 %v3123
    %v3142 = vunpack.c.h.b16 %v3123
    %v3143 = vunpack.c.l.b16 %v3124
    %v3144 = vunpack.c.h.b16 %v3124
    %v3145 = vunpack.c.l.b16 %v3125
    %v3146 = vunpack.c.h.b16 %v3125
    %v3147 = vunpack.c.l.b16 %v3126
    %v3148 = vunpack.c.h.b16 %v3126
    %v3149 = vunpack.c.l.b16 %v3127
    %v3150 = vunpack.c.h.b16 %v3127
    %v3151 = vunpack.c.l.b16 %v3128
    %v3152 = vunpack.c.h.b16 %v3128
    %v3153 = vpack.c.b16 %v3141, %v3137
    %v3154 = vpack.c.b16 %v3142, %v3138
    %v3155 = vpack.c.b16 %v3143, %v3139
    %v3156 = vpack.c.b16 %v3144, %v3140
    %v3157 = vpack.c.b16 %v3149, %v3145
    %v3158 = vpack.c.b16 %v3150, %v3146
    %v3159 = vpack.c.b16 %v3151, %v3147
    %v3160 = vpack.c.b16 %v3152, %v3148
    %3169 = vmatpush.bf16.msra.mxu0 0
    %3170 = vmatpush.bf16.msra.mxu0 0
    %3171 = vmatpush.bf16.msra.mxu0 0
    %3172 = vmatpush.bf16.msra.mxu0 0
    %3173 = vmatpush.bf16.msra.mxu0 0
    %3174 = vmatpush.bf16.msra.mxu0 0
    %3175 = vmatpush.bf16.msra.mxu0 %v3157
    %3176 = vmatpush.bf16.msra.mxu0 %v3153
    %3177 = vmatmul.bf16.gmra.mxu0 %v306
    %v3178 = vpop.f32.mrf.mxu0
    %v3179 = vadd.f32 0.0, %v3178
    %v3180 = vpop.f32.mrf.mxu0
    %3181 = vdwg.mxu0
    %3182 = vmatpush.bf16.msra.mxu0 0
    %3183 = vmatpush.bf16.msra.mxu0 0
    %3184 = vmatpush.bf16.msra.mxu0 0
    %3185 = vmatpush.bf16.msra.mxu0 0
    %3186 = vmatpush.bf16.msra.mxu0 0
    %3187 = vmatpush.bf16.msra.mxu0 0
    %3188 = vmatpush.bf16.msra.mxu0 %v3158
    %3189 = vmatpush.bf16.msra.mxu0 %v3154
    %3190 = vmatmul.bf16.gmra.mxu0 %v306
    %v3191 = vpop.f32.mrf.mxu0
    %v3192 = vadd.f32 0.0, %v3191
    %v3193 = vpop.f32.mrf.mxu0
    %3194 = vdwg.mxu0
    %3195 = vmatpush.bf16.msra.mxu0 0
    %3196 = vmatpush.bf16.msra.mxu0 0
    %3197 = vmatpush.bf16.msra.mxu0 0
    %3198 = vmatpush.bf16.msra.mxu0 0
    %3199 = vmatpush.bf16.msra.mxu0 0
    %3200 = vmatpush.bf16.msra.mxu0 0
    %3201 = vmatpush.bf16.msra.mxu0 %v3159
    %3202 = vmatpush.bf16.msra.mxu0 %v3155
    %3203 = vmatmul.bf16.gmra.mxu0 %v306
    %v3204 = vpop.f32.mrf.mxu0
    %v3205 = vadd.f32 0.0, %v3204
    %v3206 = vpop.f32.mrf.mxu0
    %3207 = vdwg.mxu0
    %3208 = vmatpush.bf16.msra.mxu0 0
    %3209 = vmatpush.bf16.msra.mxu0 0
    %3210 = vmatpush.bf16.msra.mxu0 0
    %3211 = vmatpush.bf16.msra.mxu0 0
    %3212 = vmatpush.bf16.msra.mxu0 0
    %3213 = vmatpush.bf16.msra.mxu0 0
    %3214 = vmatpush.bf16.msra.mxu0 %v3160
    %3215 = vmatpush.bf16.msra.mxu0 %v3156
    %3216 = vmatmul.bf16.gmra.mxu0 %v306
    %v3217 = vpop.f32.mrf.mxu0
    %v3218 = vadd.f32 0.0, %v3217
    %v3219 = vpop.f32.mrf.mxu0
    %3220 = vdwg.mxu0
    %v3221 = vadd.f32 %v3075, %v3179
    %v3222 = vadd.f32 %v3089, %v3192
    %v3223 = vadd.f32 %v3103, %v3205
    %v3224 = vadd.f32 %v3117, %v3218
    %v3225 = vmul.f32 %v3221, 0.5
    %v3226 = vtanh.pop %v3225
    %v3227 = vmul.f32 %v3226, 0.5
    %v3228 = vadd.f32 %v3227, 0.5
    %v3229 = vmul.f32 %v3222, 0.5
    %v3230 = vtanh.pop %v3229
    %v3231 = vmul.f32 %v3230, 0.5
    %v3232 = vadd.f32 %v3231, 0.5
    %v3233 = vtanh.pop %v3223
    %v3234 = vmul.f32 %v3224, 0.5
    %v3235 = vtanh.pop %v3234
    %v3236 = vmul.f32 %v3235, 0.5
    %v3237 = vadd.f32 %v3236, 0.5
    %v3238 = vmul.f32 %v3232, 0.0
    %v3239 = vmul.f32 %v3228, %v3233
    %v3240 = vadd.f32 %v3238, %v3239
    %v3241 = vtanh.pop %v3240
    %v3242 = vmul.f32 %v3237, %v3241
    %v3243 = vpack.c.bf16 %v3242, %v3242
    %v3245 = vsel %vm304, %v3243, 0
    %3247 = vmatpush.bf16.msra.mxu0 0
    %3248 = vmatpush.bf16.msra.mxu0 0
    %3249 = vmatpush.bf16.msra.mxu0 0
    %3250 = vmatpush.bf16.msra.mxu0 0
    %3251 = vmatpush.bf16.msra.mxu0 0
    %3252 = vmatpush.bf16.msra.mxu0 0
    %3253 = vmatpush.bf16.msra.mxu0 %v3157
    %3254 = vmatpush.bf16.msra.mxu0 %v3153
    %3255 = vmatmul.bf16.gmra.mxu0 %v3245
    %v3256 = vpop.f32.mrf.mxu0
    %v3257 = vadd.f32 0.0, %v3256
    %v3258 = vpop.f32.mrf.mxu0
    %3259 = vdwg.mxu0
    %3260 = vmatpush.bf16.msra.mxu0 0
    %3261 = vmatpush.bf16.msra.mxu0 0
    %3262 = vmatpush.bf16.msra.mxu0 0
    %3263 = vmatpush.bf16.msra.mxu0 0
    %3264 = vmatpush.bf16.msra.mxu0 0
    %3265 = vmatpush.bf16.msra.mxu0 0
    %3266 = vmatpush.bf16.msra.mxu0 %v3158
    %3267 = vmatpush.bf16.msra.mxu0 %v3154
    %3268 = vmatmul.bf16.gmra.mxu0 %v3245
    %v3269 = vpop.f32.mrf.mxu0
    %v3270 = vadd.f32 0.0, %v3269
    %v3271 = vpop.f32.mrf.mxu0
    %3272 = vdwg.mxu0
    %3273 = vmatpush.bf16.msra.mxu0 0
    %3274 = vmatpush.bf16.msra.mxu0 0
    %3275 = vmatpush.bf16.msra.mxu0 0
    %3276 = vmatpush.bf16.msra.mxu0 0
    %3277 = vmatpush.bf16.msra.mxu0 0
    %3278 = vmatpush.bf16.msra.mxu0 0
    %3279 = vmatpush.bf16.msra.mxu0 %v3159
    %3280 = vmatpush.bf16.msra.mxu0 %v3155
    %3281 = vmatmul.bf16.gmra.mxu0 %v3245
    %v3282 = vpop.f32.mrf.mxu0
    %v3283 = vadd.f32 0.0, %v3282
    %v3284 = vpop.f32.mrf.mxu0
    %3285 = vdwg.mxu0
    %3286 = vmatpush.bf16.msra.mxu0 0
    %3287 = vmatpush.bf16.msra.mxu0 0
    %3288 = vmatpush.bf16.msra.mxu0 0
    %3289 = vmatpush.bf16.msra.mxu0 0
    %3290 = vmatpush.bf16.msra.mxu0 0
    %3291 = vmatpush.bf16.msra.mxu0 0
    %3292 = vmatpush.bf16.msra.mxu0 %v3160
    %3293 = vmatpush.bf16.msra.mxu0 %v3156
    %3294 = vmatmul.bf16.gmra.mxu0 %v3245
    %v3295 = vpop.f32.mrf.mxu0
    %v3296 = vadd.f32 0.0, %v3295
    %v3297 = vpop.f32.mrf.mxu0
    %3298 = vdwg.mxu0
    %v3303 = vrot.slane %v3257, 6
    %v3304 = vrot.slane %v3270, 6
    %v3305 = vrot.slane %v3283, 6
    %v3306 = vrot.slane %v3296, 6
    %v3311 = vadd.f32 %v3075, %v3303
    %v3312 = vadd.f32 %v3089, %v3304
    %v3313 = vadd.f32 %v3103, %v3305
    %v3314 = vadd.f32 %v3117, %v3306
    %v3315 = vmul.f32 %v3311, 0.5
    %v3316 = vtanh.pop %v3315
    %v3317 = vmul.f32 %v3316, 0.5
    %v3318 = vadd.f32 %v3317, 0.5
    %v3319 = vmul.f32 %v3312, 0.5
    %v3320 = vtanh.pop %v3319
    %v3321 = vmul.f32 %v3320, 0.5
    %v3322 = vadd.f32 %v3321, 0.5
    %v3323 = vtanh.pop %v3313
    %v3324 = vmul.f32 %v3314, 0.5
    %v3325 = vtanh.pop %v3324
    %v3326 = vmul.f32 %v3325, 0.5
    %v3327 = vadd.f32 %v3326, 0.5
    %v3329 = vrot.slane %v3240, 6
    %v3331 = vmul.f32 %v3322, %v3329
    %v3332 = vmul.f32 %v3318, %v3323
    %v3333 = vadd.f32 %v3331, %v3332
    %v3334 = vtanh.pop %v3333
    %v3335 = vmul.f32 %v3327, %v3334
    %v3336 = vpack.c.bf16 %v3335, %v3335
    %v3338 = vrot.slane %v3336, 1
    %v3340 = vsel %vm304, %v3338, 0
    %3342 = vmatpush.bf16.msra.mxu0 0
    %3343 = vmatpush.bf16.msra.mxu0 0
    %3344 = vmatpush.bf16.msra.mxu0 0
    %3345 = vmatpush.bf16.msra.mxu0 0
    %3346 = vmatpush.bf16.msra.mxu0 0
    %3347 = vmatpush.bf16.msra.mxu0 0
    %3348 = vmatpush.bf16.msra.mxu0 %v3157
    %3349 = vmatpush.bf16.msra.mxu0 %v3153
    %3350 = vmatmul.bf16.gmra.mxu0 %v3340
    %v3351 = vpop.f32.mrf.mxu0
    %v3352 = vadd.f32 0.0, %v3351
    %v3353 = vpop.f32.mrf.mxu0
    %3354 = vdwg.mxu0
    %3355 = vmatpush.bf16.msra.mxu0 0
    %3356 = vmatpush.bf16.msra.mxu0 0
    %3357 = vmatpush.bf16.msra.mxu0 0
    %3358 = vmatpush.bf16.msra.mxu0 0
    %3359 = vmatpush.bf16.msra.mxu0 0
    %3360 = vmatpush.bf16.msra.mxu0 0
    %3361 = vmatpush.bf16.msra.mxu0 %v3158
    %3362 = vmatpush.bf16.msra.mxu0 %v3154
    %3363 = vmatmul.bf16.gmra.mxu0 %v3340
    %v3364 = vpop.f32.mrf.mxu0
    %v3365 = vadd.f32 0.0, %v3364
    %v3366 = vpop.f32.mrf.mxu0
    %3367 = vdwg.mxu0
    %3368 = vmatpush.bf16.msra.mxu0 0
    %3369 = vmatpush.bf16.msra.mxu0 0
    %3370 = vmatpush.bf16.msra.mxu0 0
    %3371 = vmatpush.bf16.msra.mxu0 0
    %3372 = vmatpush.bf16.msra.mxu0 0
    %3373 = vmatpush.bf16.msra.mxu0 0
    %3374 = vmatpush.bf16.msra.mxu0 %v3159
    %3375 = vmatpush.bf16.msra.mxu0 %v3155
    %3376 = vmatmul.bf16.gmra.mxu0 %v3340
    %v3377 = vpop.f32.mrf.mxu0
    %v3378 = vadd.f32 0.0, %v3377
    %v3379 = vpop.f32.mrf.mxu0
    %3380 = vdwg.mxu0
    %3381 = vmatpush.bf16.msra.mxu0 0
    %3382 = vmatpush.bf16.msra.mxu0 0
    %3383 = vmatpush.bf16.msra.mxu0 0
    %3384 = vmatpush.bf16.msra.mxu0 0
    %3385 = vmatpush.bf16.msra.mxu0 0
    %3386 = vmatpush.bf16.msra.mxu0 0
    %3387 = vmatpush.bf16.msra.mxu0 %v3160
    %3388 = vmatpush.bf16.msra.mxu0 %v3156
    %3389 = vmatmul.bf16.gmra.mxu0 %v3340
    %v3390 = vpop.f32.mrf.mxu0
    %v3391 = vadd.f32 0.0, %v3390
    %v3392 = vpop.f32.mrf.mxu0
    %3393 = vdwg.mxu0
    %v3398 = vrot.slane %v3352, 4
    %v3399 = vrot.slane %v3365, 4
    %v3400 = vrot.slane %v3378, 4
    %v3401 = vrot.slane %v3391, 4
    %v3406 = vadd.f32 %v3075, %v3398
    %v3407 = vadd.f32 %v3089, %v3399
    %v3408 = vadd.f32 %v3103, %v3400
    %v3409 = vadd.f32 %v3117, %v3401
    %v3410 = vmul.f32 %v3406, 0.5
    %v3411 = vtanh.pop %v3410
    %v3412 = vmul.f32 %v3411, 0.5
    %v3413 = vadd.f32 %v3412, 0.5
    %v3414 = vmul.f32 %v3407, 0.5
    %v3415 = vtanh.pop %v3414
    %v3416 = vmul.f32 %v3415, 0.5
    %v3417 = vadd.f32 %v3416, 0.5
    %v3418 = vtanh.pop %v3408
    %v3419 = vmul.f32 %v3409, 0.5
    %v3420 = vtanh.pop %v3419
    %v3421 = vmul.f32 %v3420, 0.5
    %v3422 = vadd.f32 %v3421, 0.5
    %v3424 = vrot.slane %v3333, 6
    %v3426 = vmul.f32 %v3417, %v3424
    %v3427 = vmul.f32 %v3413, %v3418
    %v3428 = vadd.f32 %v3426, %v3427
    %v3429 = vtanh.pop %v3428
    %v3430 = vmul.f32 %v3422, %v3429
    %v3431 = vpack.c.bf16 %v3430, %v3430
    %v3433 = vrot.slane %v3431, 2
    %v3435 = vsel %vm304, %v3433, 0
    %3437 = vmatpush.bf16.msra.mxu0 0
    %3438 = vmatpush.bf16.msra.mxu0 0
    %3439 = vmatpush.bf16.msra.mxu0 0
    %3440 = vmatpush.bf16.msra.mxu0 0
    %3441 = vmatpush.bf16.msra.mxu0 0
    %3442 = vmatpush.bf16.msra.mxu0 0
    %3443 = vmatpush.bf16.msra.mxu0 %v3157
    %3444 = vmatpush.bf16.msra.mxu0 %v3153
    %3445 = vmatmul.bf16.gmra.mxu0 %v3435
    %v3446 = vpop.f32.mrf.mxu0
    %v3447 = vadd.f32 0.0, %v3446
    %v3448 = vpop.f32.mrf.mxu0
    %3449 = vdwg.mxu0
    %3450 = vmatpush.bf16.msra.mxu0 0
    %3451 = vmatpush.bf16.msra.mxu0 0
    %3452 = vmatpush.bf16.msra.mxu0 0
    %3453 = vmatpush.bf16.msra.mxu0 0
    %3454 = vmatpush.bf16.msra.mxu0 0
    %3455 = vmatpush.bf16.msra.mxu0 0
    %3456 = vmatpush.bf16.msra.mxu0 %v3158
    %3457 = vmatpush.bf16.msra.mxu0 %v3154
    %3458 = vmatmul.bf16.gmra.mxu0 %v3435
    %v3459 = vpop.f32.mrf.mxu0
    %v3460 = vadd.f32 0.0, %v3459
    %v3461 = vpop.f32.mrf.mxu0
    %3462 = vdwg.mxu0
    %3463 = vmatpush.bf16.msra.mxu0 0
    %3464 = vmatpush.bf16.msra.mxu0 0
    %3465 = vmatpush.bf16.msra.mxu0 0
    %3466 = vmatpush.bf16.msra.mxu0 0
    %3467 = vmatpush.bf16.msra.mxu0 0
    %3468 = vmatpush.bf16.msra.mxu0 0
    %3469 = vmatpush.bf16.msra.mxu0 %v3159
    %3470 = vmatpush.bf16.msra.mxu0 %v3155
    %3471 = vmatmul.bf16.gmra.mxu0 %v3435
    %v3472 = vpop.f32.mrf.mxu0
    %v3473 = vadd.f32 0.0, %v3472
    %v3474 = vpop.f32.mrf.mxu0
    %3475 = vdwg.mxu0
    %3476 = vmatpush.bf16.msra.mxu0 0
    %3477 = vmatpush.bf16.msra.mxu0 0
    %3478 = vmatpush.bf16.msra.mxu0 0
    %3479 = vmatpush.bf16.msra.mxu0 0
    %3480 = vmatpush.bf16.msra.mxu0 0
    %3481 = vmatpush.bf16.msra.mxu0 0
    %3482 = vmatpush.bf16.msra.mxu0 %v3160
    %3483 = vmatpush.bf16.msra.mxu0 %v3156
    %3484 = vmatmul.bf16.gmra.mxu0 %v3435
    %v3485 = vpop.f32.mrf.mxu0
    %v3486 = vadd.f32 0.0, %v3485
    %v3487 = vpop.f32.mrf.mxu0
    %3488 = vdwg.mxu0
    %v3493 = vrot.slane %v3447, 2
    %v3494 = vrot.slane %v3460, 2
    %v3495 = vrot.slane %v3473, 2
    %v3496 = vrot.slane %v3486, 2
    %v3501 = vadd.f32 %v3075, %v3493
    %v3502 = vadd.f32 %v3089, %v3494
    %v3503 = vadd.f32 %v3103, %v3495
    %v3504 = vadd.f32 %v3117, %v3496
    %v3505 = vmul.f32 %v3501, 0.5
    %v3506 = vtanh.pop %v3505
    %v3507 = vmul.f32 %v3506, 0.5
    %v3508 = vadd.f32 %v3507, 0.5
    %v3509 = vmul.f32 %v3502, 0.5
    %v3510 = vtanh.pop %v3509
    %v3511 = vmul.f32 %v3510, 0.5
    %v3512 = vadd.f32 %v3511, 0.5
    %v3513 = vtanh.pop %v3503
    %v3514 = vmul.f32 %v3504, 0.5
    %v3515 = vtanh.pop %v3514
    %v3516 = vmul.f32 %v3515, 0.5
    %v3517 = vadd.f32 %v3516, 0.5
    %v3519 = vrot.slane %v3428, 6
    %v3521 = vmul.f32 %v3512, %v3519
    %v3522 = vmul.f32 %v3508, %v3513
    %v3523 = vadd.f32 %v3521, %v3522
    %v3524 = vtanh.pop %v3523
    %v3525 = vmul.f32 %v3517, %v3524
    %v3526 = vpack.c.bf16 %v3525, %v3525
    %v3528 = vrot.slane %v3526, 3
    %v3530 = vsel %vm304, %v3528, 0
    %3532 = vmatpush.bf16.msra.mxu0 0
    %3533 = vmatpush.bf16.msra.mxu0 0
    %3534 = vmatpush.bf16.msra.mxu0 0
    %3535 = vmatpush.bf16.msra.mxu0 0
    %3536 = vmatpush.bf16.msra.mxu0 0
    %3537 = vmatpush.bf16.msra.mxu0 0
    %3538 = vmatpush.bf16.msra.mxu0 %v3157
    %3539 = vmatpush.bf16.msra.mxu0 %v3153
    %3540 = vmatmul.bf16.gmra.mxu0 %v3530
    %v3541 = vpop.f32.mrf.mxu0
    %v3542 = vadd.f32 0.0, %v3541
    %v3543 = vpop.f32.mrf.mxu0
    %3544 = vdwg.mxu0
    %3545 = vmatpush.bf16.msra.mxu0 0
    %3546 = vmatpush.bf16.msra.mxu0 0
    %3547 = vmatpush.bf16.msra.mxu0 0
    %3548 = vmatpush.bf16.msra.mxu0 0
    %3549 = vmatpush.bf16.msra.mxu0 0
    %3550 = vmatpush.bf16.msra.mxu0 0
    %3551 = vmatpush.bf16.msra.mxu0 %v3158
    %3552 = vmatpush.bf16.msra.mxu0 %v3154
    %3553 = vmatmul.bf16.gmra.mxu0 %v3530
    %v3554 = vpop.f32.mrf.mxu0
    %v3555 = vadd.f32 0.0, %v3554
    %v3556 = vpop.f32.mrf.mxu0
    %3557 = vdwg.mxu0
    %3558 = vmatpush.bf16.msra.mxu0 0
    %3559 = vmatpush.bf16.msra.mxu0 0
    %3560 = vmatpush.bf16.msra.mxu0 0
    %3561 = vmatpush.bf16.msra.mxu0 0
    %3562 = vmatpush.bf16.msra.mxu0 0
    %3563 = vmatpush.bf16.msra.mxu0 0
    %3564 = vmatpush.bf16.msra.mxu0 %v3159
    %3565 = vmatpush.bf16.msra.mxu0 %v3155
    %3566 = vmatmul.bf16.gmra.mxu0 %v3530
    %v3567 = vpop.f32.mrf.mxu0
    %v3568 = vadd.f32 0.0, %v3567
    %v3569 = vpop.f32.mrf.mxu0
    %3570 = vdwg.mxu0
    %3571 = vmatpush.bf16.msra.mxu0 0
    %3572 = vmatpush.bf16.msra.mxu0 0
    %3573 = vmatpush.bf16.msra.mxu0 0
    %3574 = vmatpush.bf16.msra.mxu0 0
    %3575 = vmatpush.bf16.msra.mxu0 0
    %3576 = vmatpush.bf16.msra.mxu0 0
    %3577 = vmatpush.bf16.msra.mxu0 %v3160
    %3578 = vmatpush.bf16.msra.mxu0 %v3156
    %3579 = vmatmul.bf16.gmra.mxu0 %v3530
    %v3580 = vpop.f32.mrf.mxu0
    %v3581 = vadd.f32 0.0, %v3580
    %v3582 = vpop.f32.mrf.mxu0
    %3583 = vdwg.mxu0
    %v3584 = vadd.f32 %v3077, %v3542
    %v3585 = vadd.f32 %v3091, %v3555
    %v3586 = vadd.f32 %v3105, %v3568
    %v3587 = vadd.f32 %v3119, %v3581
    %v3588 = vmul.f32 %v3584, 0.5
    %v3589 = vtanh.pop %v3588
    %v3590 = vmul.f32 %v3589, 0.5
    %v3591 = vadd.f32 %v3590, 0.5
    %v3592 = vmul.f32 %v3585, 0.5
    %v3593 = vtanh.pop %v3592
    %v3594 = vmul.f32 %v3593, 0.5
    %v3595 = vadd.f32 %v3594, 0.5
    %v3596 = vtanh.pop %v3586
    %v3597 = vmul.f32 %v3587, 0.5
    %v3598 = vtanh.pop %v3597
    %v3599 = vmul.f32 %v3598, 0.5
    %v3600 = vadd.f32 %v3599, 0.5
    %v3602 = vrot.slane %v3523, 6
    %v3604 = vmul.f32 %v3595, %v3602
    %v3605 = vmul.f32 %v3591, %v3596
    %v3606 = vadd.f32 %v3604, %v3605
    %v3607 = vtanh.pop %v3606
    %v3608 = vmul.f32 %v3600, %v3607
    %v3609 = vpack.c.bf16 %v3608, %v3608
    %v3611 = vsel %vm304, %v3609, 0
    %3613 = vmatpush.bf16.msra.mxu0 0
    %3614 = vmatpush.bf16.msra.mxu0 0
    %3615 = vmatpush.bf16.msra.mxu0 0
    %3616 = vmatpush.bf16.msra.mxu0 0
    %3617 = vmatpush.bf16.msra.mxu0 0
    %3618 = vmatpush.bf16.msra.mxu0 0
    %3619 = vmatpush.bf16.msra.mxu0 %v3157
    %3620 = vmatpush.bf16.msra.mxu0 %v3153
    %3621 = vmatmul.bf16.gmra.mxu0 %v3611
    %v3622 = vpop.f32.mrf.mxu0
    %v3623 = vadd.f32 0.0, %v3622
    %v3624 = vpop.f32.mrf.mxu0
    %3625 = vdwg.mxu0
    %3626 = vmatpush.bf16.msra.mxu0 0
    %3627 = vmatpush.bf16.msra.mxu0 0
    %3628 = vmatpush.bf16.msra.mxu0 0
    %3629 = vmatpush.bf16.msra.mxu0 0
    %3630 = vmatpush.bf16.msra.mxu0 0
    %3631 = vmatpush.bf16.msra.mxu0 0
    %3632 = vmatpush.bf16.msra.mxu0 %v3158
    %3633 = vmatpush.bf16.msra.mxu0 %v3154
    %3634 = vmatmul.bf16.gmra.mxu0 %v3611
    %v3635 = vpop.f32.mrf.mxu0
    %v3636 = vadd.f32 0.0, %v3635
    %v3637 = vpop.f32.mrf.mxu0
    %3638 = vdwg.mxu0
    %3639 = vmatpush.bf16.msra.mxu0 0
    %3640 = vmatpush.bf16.msra.mxu0 0
    %3641 = vmatpush.bf16.msra.mxu0 0
    %3642 = vmatpush.bf16.msra.mxu0 0
    %3643 = vmatpush.bf16.msra.mxu0 0
    %3644 = vmatpush.bf16.msra.mxu0 0
    %3645 = vmatpush.bf16.msra.mxu0 %v3159
    %3646 = vmatpush.bf16.msra.mxu0 %v3155
    %3647 = vmatmul.bf16.gmra.mxu0 %v3611
    %v3648 = vpop.f32.mrf.mxu0
    %v3649 = vadd.f32 0.0, %v3648
    %v3650 = vpop.f32.mrf.mxu0
    %3651 = vdwg.mxu0
    %3652 = vmatpush.bf16.msra.mxu0 0
    %3653 = vmatpush.bf16.msra.mxu0 0
    %3654 = vmatpush.bf16.msra.mxu0 0
    %3655 = vmatpush.bf16.msra.mxu0 0
    %3656 = vmatpush.bf16.msra.mxu0 0
    %3657 = vmatpush.bf16.msra.mxu0 0
    %3658 = vmatpush.bf16.msra.mxu0 %v3160
    %3659 = vmatpush.bf16.msra.mxu0 %v3156
    %3660 = vmatmul.bf16.gmra.mxu0 %v3611
    %v3661 = vpop.f32.mrf.mxu0
    %v3662 = vadd.f32 0.0, %v3661
    %v3663 = vpop.f32.mrf.mxu0
    %3664 = vdwg.mxu0
    %v3669 = vrot.slane %v3623, 6
    %v3670 = vrot.slane %v3636, 6
    %v3671 = vrot.slane %v3649, 6
    %v3672 = vrot.slane %v3662, 6
    %v3677 = vadd.f32 %v3077, %v3669
    %v3678 = vadd.f32 %v3091, %v3670
    %v3679 = vadd.f32 %v3105, %v3671
    %v3680 = vadd.f32 %v3119, %v3672
    %v3681 = vmul.f32 %v3677, 0.5
    %v3682 = vtanh.pop %v3681
    %v3683 = vmul.f32 %v3682, 0.5
    %v3684 = vadd.f32 %v3683, 0.5
    %v3685 = vmul.f32 %v3678, 0.5
    %v3686 = vtanh.pop %v3685
    %v3687 = vmul.f32 %v3686, 0.5
    %v3688 = vadd.f32 %v3687, 0.5
    %v3689 = vtanh.pop %v3679
    %v3690 = vmul.f32 %v3680, 0.5
    %v3691 = vtanh.pop %v3690
    %v3692 = vmul.f32 %v3691, 0.5
    %v3693 = vadd.f32 %v3692, 0.5
    %v3695 = vrot.slane %v3606, 6
    %v3697 = vmul.f32 %v3688, %v3695
    %v3698 = vmul.f32 %v3684, %v3689
    %v3699 = vadd.f32 %v3697, %v3698
    %v3700 = vtanh.pop %v3699
    %v3701 = vmul.f32 %v3693, %v3700
    %v3702 = vpack.c.bf16 %v3701, %v3701
    %v3704 = vrot.slane %v3702, 1
    %v3706 = vsel %vm304, %v3704, 0
    %3708 = vmatpush.bf16.msra.mxu0 0
    %3709 = vmatpush.bf16.msra.mxu0 0
    %3710 = vmatpush.bf16.msra.mxu0 0
    %3711 = vmatpush.bf16.msra.mxu0 0
    %3712 = vmatpush.bf16.msra.mxu0 0
    %3713 = vmatpush.bf16.msra.mxu0 0
    %3714 = vmatpush.bf16.msra.mxu0 %v3157
    %3715 = vmatpush.bf16.msra.mxu0 %v3153
    %3716 = vmatmul.bf16.gmra.mxu0 %v3706
    %v3717 = vpop.f32.mrf.mxu0
    %v3718 = vadd.f32 0.0, %v3717
    %v3719 = vpop.f32.mrf.mxu0
    %3720 = vdwg.mxu0
    %3721 = vmatpush.bf16.msra.mxu0 0
    %3722 = vmatpush.bf16.msra.mxu0 0
    %3723 = vmatpush.bf16.msra.mxu0 0
    %3724 = vmatpush.bf16.msra.mxu0 0
    %3725 = vmatpush.bf16.msra.mxu0 0
    %3726 = vmatpush.bf16.msra.mxu0 0
    %3727 = vmatpush.bf16.msra.mxu0 %v3158
    %3728 = vmatpush.bf16.msra.mxu0 %v3154
    %3729 = vmatmul.bf16.gmra.mxu0 %v3706
    %v3730 = vpop.f32.mrf.mxu0
    %v3731 = vadd.f32 0.0, %v3730
    %v3732 = vpop.f32.mrf.mxu0
    %3733 = vdwg.mxu0
    %3734 = vmatpush.bf16.msra.mxu0 0
    %3735 = vmatpush.bf16.msra.mxu0 0
    %3736 = vmatpush.bf16.msra.mxu0 0
    %3737 = vmatpush.bf16.msra.mxu0 0
    %3738 = vmatpush.bf16.msra.mxu0 0
    %3739 = vmatpush.bf16.msra.mxu0 0
    %3740 = vmatpush.bf16.msra.mxu0 %v3159
    %3741 = vmatpush.bf16.msra.mxu0 %v3155
    %3742 = vmatmul.bf16.gmra.mxu0 %v3706
    %v3743 = vpop.f32.mrf.mxu0
    %v3744 = vadd.f32 0.0, %v3743
    %v3745 = vpop.f32.mrf.mxu0
    %3746 = vdwg.mxu0
    %3747 = vmatpush.bf16.msra.mxu0 0
    %3748 = vmatpush.bf16.msra.mxu0 0
    %3749 = vmatpush.bf16.msra.mxu0 0
    %3750 = vmatpush.bf16.msra.mxu0 0
    %3751 = vmatpush.bf16.msra.mxu0 0
    %3752 = vmatpush.bf16.msra.mxu0 0
    %3753 = vmatpush.bf16.msra.mxu0 %v3160
    %3754 = vmatpush.bf16.msra.mxu0 %v3156
    %3755 = vmatmul.bf16.gmra.mxu0 %v3706
    %v3756 = vpop.f32.mrf.mxu0
    %v3757 = vadd.f32 0.0, %v3756
    %v3758 = vpop.f32.mrf.mxu0
    %3759 = vdwg.mxu0
    %v3764 = vrot.slane %v3718, 4
    %v3765 = vrot.slane %v3731, 4
    %v3766 = vrot.slane %v3744, 4
    %v3767 = vrot.slane %v3757, 4
    %v3772 = vadd.f32 %v3077, %v3764
    %v3773 = vadd.f32 %v3091, %v3765
    %v3774 = vadd.f32 %v3105, %v3766
    %v3775 = vadd.f32 %v3119, %v3767
    %v3776 = vmul.f32 %v3772, 0.5
    %v3777 = vtanh.pop %v3776
    %v3778 = vmul.f32 %v3777, 0.5
    %v3779 = vadd.f32 %v3778, 0.5
    %v3780 = vmul.f32 %v3773, 0.5
    %v3781 = vtanh.pop %v3780
    %v3782 = vmul.f32 %v3781, 0.5
    %v3783 = vadd.f32 %v3782, 0.5
    %v3784 = vtanh.pop %v3774
    %v3785 = vmul.f32 %v3775, 0.5
    %v3786 = vtanh.pop %v3785
    %v3787 = vmul.f32 %v3786, 0.5
    %v3788 = vadd.f32 %v3787, 0.5
    %v3790 = vrot.slane %v3699, 6
    %v3792 = vmul.f32 %v3783, %v3790
    %v3793 = vmul.f32 %v3779, %v3784
    %v3794 = vadd.f32 %v3792, %v3793
    %v3795 = vtanh.pop %v3794
    %v3796 = vmul.f32 %v3788, %v3795
    %v3797 = vpack.c.bf16 %v3796, %v3796
    %v3799 = vrot.slane %v3797, 2
    %v3801 = vsel %vm304, %v3799, 0
    %3803 = vmatpush.bf16.msra.mxu0 0
    %3804 = vmatpush.bf16.msra.mxu0 0
    %3805 = vmatpush.bf16.msra.mxu0 0
    %3806 = vmatpush.bf16.msra.mxu0 0
    %3807 = vmatpush.bf16.msra.mxu0 0
    %3808 = vmatpush.bf16.msra.mxu0 0
    %3809 = vmatpush.bf16.msra.mxu0 %v3157
    %3810 = vmatpush.bf16.msra.mxu0 %v3153
    %3811 = vmatmul.bf16.gmra.mxu0 %v3801
    %v3812 = vpop.f32.mrf.mxu0
    %v3813 = vadd.f32 0.0, %v3812
    %v3814 = vpop.f32.mrf.mxu0
    %3815 = vdwg.mxu0
    %3816 = vmatpush.bf16.msra.mxu0 0
    %3817 = vmatpush.bf16.msra.mxu0 0
    %3818 = vmatpush.bf16.msra.mxu0 0
    %3819 = vmatpush.bf16.msra.mxu0 0
    %3820 = vmatpush.bf16.msra.mxu0 0
    %3821 = vmatpush.bf16.msra.mxu0 0
    %3822 = vmatpush.bf16.msra.mxu0 %v3158
    %3823 = vmatpush.bf16.msra.mxu0 %v3154
    %3824 = vmatmul.bf16.gmra.mxu0 %v3801
    %v3825 = vpop.f32.mrf.mxu0
    %v3826 = vadd.f32 0.0, %v3825
    %v3827 = vpop.f32.mrf.mxu0
    %3828 = vdwg.mxu0
    %3829 = vmatpush.bf16.msra.mxu0 0
    %3830 = vmatpush.bf16.msra.mxu0 0
    %3831 = vmatpush.bf16.msra.mxu0 0
    %3832 = vmatpush.bf16.msra.mxu0 0
    %3833 = vmatpush.bf16.msra.mxu0 0
    %3834 = vmatpush.bf16.msra.mxu0 0
    %3835 = vmatpush.bf16.msra.mxu0 %v3159
    %3836 = vmatpush.bf16.msra.mxu0 %v3155
    %3837 = vmatmul.bf16.gmra.mxu0 %v3801
    %v3838 = vpop.f32.mrf.mxu0
    %v3839 = vadd.f32 0.0, %v3838
    %v3840 = vpop.f32.mrf.mxu0
    %3841 = vdwg.mxu0
    %3842 = vmatpush.bf16.msra.mxu0 0
    %3843 = vmatpush.bf16.msra.mxu0 0
    %3844 = vmatpush.bf16.msra.mxu0 0
    %3845 = vmatpush.bf16.msra.mxu0 0
    %3846 = vmatpush.bf16.msra.mxu0 0
    %3847 = vmatpush.bf16.msra.mxu0 0
    %3848 = vmatpush.bf16.msra.mxu0 %v3160
    %3849 = vmatpush.bf16.msra.mxu0 %v3156
    %3850 = vmatmul.bf16.gmra.mxu0 %v3801
    %v3851 = vpop.f32.mrf.mxu0
    %v3852 = vadd.f32 0.0, %v3851
    %v3853 = vpop.f32.mrf.mxu0
    %3854 = vdwg.mxu0
    %v3859 = vrot.slane %v3813, 2
    %v3860 = vrot.slane %v3826, 2
    %v3861 = vrot.slane %v3839, 2
    %v3862 = vrot.slane %v3852, 2
    %v3867 = vadd.f32 %v3077, %v3859
    %v3868 = vadd.f32 %v3091, %v3860
    %v3869 = vadd.f32 %v3105, %v3861
    %v3870 = vadd.f32 %v3119, %v3862
    %v3871 = vmul.f32 %v3867, 0.5
    %v3872 = vtanh.pop %v3871
    %v3873 = vmul.f32 %v3872, 0.5
    %v3874 = vadd.f32 %v3873, 0.5
    %v3875 = vmul.f32 %v3868, 0.5
    %v3876 = vtanh.pop %v3875
    %v3877 = vmul.f32 %v3876, 0.5
    %v3878 = vadd.f32 %v3877, 0.5
    %v3879 = vtanh.pop %v3869
    %v3880 = vmul.f32 %v3870, 0.5
    %v3881 = vtanh.pop %v3880
    %v3882 = vmul.f32 %v3881, 0.5
    %v3883 = vadd.f32 %v3882, 0.5
    %v3885 = vrot.slane %v3794, 6
    %v3887 = vmul.f32 %v3878, %v3885
    %v3888 = vmul.f32 %v3874, %v3879
    %v3889 = vadd.f32 %v3887, %v3888
    %v3890 = vtanh.pop %v3889
    %v3891 = vmul.f32 %v3883, %v3890
    %v3892 = vpack.c.bf16 %v3891, %v3891
    %v3893 = vld [vmem:[#allocation3 + $0x2c0] sm:$0xf]
    %v3894 = vld [vmem:[#allocation3 + $0x2d0] sm:$0xf]
    %v3895 = vld [vmem:[#allocation3 + $0x2e0] sm:$0xf]
    %v3896 = vld [vmem:[#allocation3 + $0x2f0] sm:$0xf]
    %v3898 = vrot.slane %v3892, 3
    %v3903 = vunpack.c.l.b16 %v3893
    %v3904 = vunpack.c.l.b16 %v3894
    %v3905 = vunpack.c.l.b16 %v3895
    %v3906 = vunpack.c.l.b16 %v3896
    %v3907 = vpack.c.b16 %v3904, %v3903
    %v3908 = vpack.c.b16 %v3906, %v3905
    %v3912 = vsel %vm304, %v3898, 0
    %3914 = vmatpush.bf16.msra.mxu0 0
    %3915 = vmatpush.bf16.msra.mxu0 0
    %3916 = vmatpush.bf16.msra.mxu0 0
    %3917 = vmatpush.bf16.msra.mxu0 0
    %3918 = vmatpush.bf16.msra.mxu0 0
    %3919 = vmatpush.bf16.msra.mxu0 0
    %3920 = vmatpush.bf16.msra.mxu0 %v3908
    %3921 = vmatpush.bf16.msra.mxu0 %v3907
    %3922 = vmatmul.bf16.gmra.mxu0 %v3912
    %v3923 = vpop.f32.mrf.mxu0
    %v3924 = vadd.f32 0.0, %v3923
    %v3925 = vpop.f32.mrf.mxu0
    %3926 = vdwg.mxu0
    %v3927 = vadd.f32 %v2995, %v3924
    %v3928 = vmax.f32 %v3927, 0.0
    %v3929 = vld [vmem:[#allocation3 + $0x300] sm:$0xf]
    %v3930 = vld [vmem:[#allocation3 + $0x310] sm:$0xf]
    %v3931 = vld [vmem:[#allocation3 + $0x320] sm:$0xf]
    %v3932 = vld [vmem:[#allocation3 + $0x330] sm:$0xf]
    %v3933 = vld [vmem:[#allocation3 + $0x340] sm:$0xf]
    %v3934 = vld [vmem:[#allocation3 + $0x350] sm:$0xf]
    %v3935 = vld [vmem:[#allocation3 + $0x360] sm:$0xf]
    %v3936 = vld [vmem:[#allocation3 + $0x370] sm:$0xf]
    %v3937 = vld [vmem:[#allocation3 + $0x380] sm:$0xf]
    %v3938 = vld [vmem:[#allocation3 + $0x390] sm:$0xf]
    %v3939 = vld [vmem:[#allocation3 + $0x3a0] sm:$0xf]
    %v3940 = vld [vmem:[#allocation3 + $0x3b0] sm:$0xf]
    %v3941 = vld [vmem:[#allocation3 + $0x3c0] sm:$0xf]
    %v3942 = vld [vmem:[#allocation3 + $0x3d0] sm:$0xf]
    %v3943 = vld [vmem:[#allocation3 + $0x3e0] sm:$0xf]
    %v3944 = vld [vmem:[#allocation3 + $0x3f0] sm:$0xf]
    %v3945 = vpack.c.bf16 %v3928, %v3928
    %v3946 = vld [vmem:[%s3 + $0x5] ss:$0 sm:$0xff]
    %v3963 = vunpack.c.l.b16 %v3929
    %v3964 = vunpack.c.l.b16 %v3930
    %v3965 = vunpack.c.l.b16 %v3931
    %v3966 = vunpack.c.l.b16 %v3932
    %v3967 = vunpack.c.l.b16 %v3933
    %v3968 = vunpack.c.l.b16 %v3934
    %v3969 = vunpack.c.l.b16 %v3935
    %v3970 = vunpack.c.l.b16 %v3936
    %v3971 = vunpack.c.l.b16 %v3937
    %v3972 = vunpack.c.l.b16 %v3938
    %v3973 = vunpack.c.l.b16 %v3939
    %v3974 = vunpack.c.l.b16 %v3940
    %v3975 = vunpack.c.l.b16 %v3941
    %v3976 = vunpack.c.l.b16 %v3942
    %v3977 = vunpack.c.l.b16 %v3943
    %v3978 = vunpack.c.l.b16 %v3944
    %v3979 = vpack.c.b16 %v3964, %v3963
    %v3980 = vpack.c.b16 %v3966, %v3965
    %v3981 = vpack.c.b16 %v3968, %v3967
    %v3982 = vpack.c.b16 %v3970, %v3969
    %v3983 = vpack.c.b16 %v3972, %v3971
    %v3984 = vpack.c.b16 %v3974, %v3973
    %v3985 = vpack.c.b16 %v3976, %v3975
    %v3986 = vpack.c.b16 %v3978, %v3977
    %3995 = vmatpush.bf16.msra.mxu0 %v3986
    %3996 = vmatpush.bf16.msra.mxu0 %v3985
    %3997 = vmatpush.bf16.msra.mxu0 %v3984
    %3998 = vmatpush.bf16.msra.mxu0 %v3983
    %3999 = vmatpush.bf16.msra.mxu0 %v3982
    %4000 = vmatpush.bf16.msra.mxu0 %v3981
    %4001 = vmatpush.bf16.msra.mxu0 %v3980
    %4002 = vmatpush.bf16.msra.mxu0 %v3979
    %4003 = vmatmul.bf16.gmra.mxu0 %v3945
    %v4004 = vpop.f32.mrf.mxu0
    %v4005 = vadd.f32 %v3946, %v4004
    %v4006 = vpop.f32.mrf.mxu0
    %4007 = vdwg.mxu0
    %v4008 = vmax.f32 %v4005, 0.0
    %v4009 = vld [vmem:[#allocation3 + $0x400] sm:$0xf]
    %v4010 = vld [vmem:[#allocation3 + $0x410] sm:$0xf]
    %v4011 = vld [vmem:[#allocation3 + $0x420] sm:$0xf]
    %v4012 = vld [vmem:[#allocation3 + $0x430] sm:$0xf]
    %v4013 = vld [vmem:[#allocation3 + $0x440] sm:$0xf]
    %v4014 = vld [vmem:[#allocation3 + $0x450] sm:$0xf]
    %v4015 = vld [vmem:[#allocation3 + $0x460] sm:$0xf]
    %v4016 = vld [vmem:[#allocation3 + $0x470] sm:$0xf]
    %v4017 = vld [vmem:[#allocation3 + $0x480] sm:$0xf]
    %v4018 = vld [vmem:[#allocation3 + $0x490] sm:$0xf]
    %v4019 = vld [vmem:[#allocation3 + $0x4a0] sm:$0xf]
    %v4020 = vld [vmem:[#allocation3 + $0x4b0] sm:$0xf]
    %v4021 = vld [vmem:[#allocation3 + $0x4c0] sm:$0xf]
    %v4022 = vld [vmem:[#allocation3 + $0x4d0] sm:$0xf]
    %v4023 = vld [vmem:[#allocation3 + $0x4e0] sm:$0xf]
    %v4024 = vld [vmem:[#allocation3 + $0x4f0] sm:$0xf]
    %v4025 = vpack.c.bf16 %v4008, %v4008
    %v4026 = vld [vmem:[%s3 + $0x6] ss:$0 sm:$0xff]
    %v4043 = vunpack.c.l.b16 %v4009
    %v4044 = vunpack.c.l.b16 %v4010
    %v4045 = vunpack.c.l.b16 %v4011
    %v4046 = vunpack.c.l.b16 %v4012
    %v4047 = vunpack.c.l.b16 %v4013
    %v4048 = vunpack.c.l.b16 %v4014
    %v4049 = vunpack.c.l.b16 %v4015
    %v4050 = vunpack.c.l.b16 %v4016
    %v4051 = vunpack.c.l.b16 %v4017
    %v4052 = vunpack.c.l.b16 %v4018
    %v4053 = vunpack.c.l.b16 %v4019
    %v4054 = vunpack.c.l.b16 %v4020
    %v4055 = vunpack.c.l.b16 %v4021
    %v4056 = vunpack.c.l.b16 %v4022
    %v4057 = vunpack.c.l.b16 %v4023
    %v4058 = vunpack.c.l.b16 %v4024
    %v4059 = vpack.c.b16 %v4044, %v4043
    %v4060 = vpack.c.b16 %v4046, %v4045
    %v4061 = vpack.c.b16 %v4048, %v4047
    %v4062 = vpack.c.b16 %v4050, %v4049
    %v4063 = vpack.c.b16 %v4052, %v4051
    %v4064 = vpack.c.b16 %v4054, %v4053
    %v4065 = vpack.c.b16 %v4056, %v4055
    %v4066 = vpack.c.b16 %v4058, %v4057
    %4075 = vmatpush.bf16.msra.mxu0 %v4066
    %4076 = vmatpush.bf16.msra.mxu0 %v4065
    %4077 = vmatpush.bf16.msra.mxu0 %v4064
    %4078 = vmatpush.bf16.msra.mxu0 %v4063
    %4079 = vmatpush.bf16.msra.mxu0 %v4062
    %4080 = vmatpush.bf16.msra.mxu0 %v4061
    %4081 = vmatpush.bf16.msra.mxu0 %v4060
    %4082 = vmatpush.bf16.msra.mxu0 %v4059
    %4083 = vmatmul.bf16.gmra.mxu0 %v4025
    %v4084 = vpop.f32.mrf.mxu0
    %v4085 = vadd.f32 %v4026, %v4084
    %v4086 = vpop.f32.mrf.mxu0
    %4087 = vdwg.mxu0
    %v4088 = vsel %vm162, %v4085, -inf
    %4089 = vmax.xlane.f32.xlu0 %v4088
    %v4090 = vpop.xlane.xlu0 %4089
    %v4091 = vsub.f32 %v4085, %v4090
    %v4092 = vmul.f32 %v4091, 1.442695
    %v4093 = vpow.pop %v4092
    %v4094 = vsel %vm162, %v4093, 0.0
    %4095 = vadd.xlane.f32.xlu0 %v4094
    %v4096 = vpop.xlane.xlu0 %4095
    %v4097 = vrcp.pop %v4096
    %v4098 = vmul.f32 %v4096, %v4097
    %v4099 = vsub.f32 1.0, %v4098
    %v4100 = vmul.f32 %v4097, %v4099
    %v4101 = vadd.f32 %v4097, %v4100
    %vm4102 = vweird.f32 %v4096
    %vm4103 = vweird.f32 %v4097
    %vm4104 = vmor %vm4102, %vm4103
    %v4105 = vsel %vm4104, %v4097, %v4101
    %v4106 = vand.u32 2147483647, %v4096
    %vm4107 = vcmp.eq.f32.partialorder %v4106, 8.507059e+37
    %v4108 = vand.u32 %v4096, 2147483648
    %v4109 = vor.u32 1.1754944e-38, %v4108
    %v4110 = vsel %vm4107, %v4109, %v4105
    %v4111 = vmul.f32 %v4093, %v4110
    %4112 = vst [vmem:[#allocation6] sm:$0x3] %v4111
    // Predicated region
    $region22: #{forward.1} parent=1 // pred_check
      _
    $region23: #{forward.1} parent=1 // pred_check_branch
      %4114 = sbr.rel (0) target = $region25
    $region24: #{forward.1} parent=1 // pred_region
      %4116 = vsyncadd [#allocation5], 0
      %s4118 = sshll.u32 [#allocation6], 4
      %s4119 = int_to_ptr.vmem [resolvable:$true] %s4118
      %s4120 = sshll.u32 %s4, 4
      %s4121 = int_to_ptr.hbm [resolvable:$true] %s4120
      %4123 = dma.vmem_to_hbm [thread:$0]  %s4119, 32, %s4121, [#allocation5]
    $region25: #{forward.1} parent=1 // pred_fallthru
      _
    // Predicated region
    $region26: #{forward.1} parent=1 // pred_check
      _
    $region27: #{forward.1} parent=1 // pred_check_branch
      %4125 = sbr.rel (0) target = $region29
    $region28: #{forward.1} parent=1 // pred_region
      %4127 = dma.done [#allocation5], 32
    $region29: #{forward.1} parent=1 // pred_fallthru
      _
    %4128 = vsyncpa [#allocation4], 1
    %4129 = vsyncpa [#allocation5], 1

</llo_original>
